<compile_context>
chip_gen: v7x
topology: tpu7x:2x2x1
jax: 0.10.0
libtpu: 0.0.40
codegen_flags: <defaults>
</compile_context>

<pallas_src>
import math
import functools

import jax
import jax.numpy as jnp
from jax.experimental import pallas as pl
from jax.experimental.pallas import tpu as pltpu


def lambda_init_fn(depth):
    return 0.8 - 0.6 * math.exp(-0.3 * depth)


# --------------------------------------------------------------------------- #
# Kernel
# --------------------------------------------------------------------------- #
def _diff_attn_kernel(scal_ref,                      # SMEM (2,): [lambda_full, rms_eps]
                      q_in, k_in, v_in,              # VMEM (Bt*T,H), (Bt*N,H), (Bt*N,H)
                      wq_t, bq, wk_t, bk, wv_t, bv,  # VMEM (H,H) [bf16/f32], (1,H) f32
                      wo_t, bo,                      # VMEM (H,H), (1,H)
                      o_ref,                         # VMEM (Bt*T, H)
                      *, batch_block, q_len, kv_len, num_heads, head_size,
                      causal_mask, use_bf16, strict_nan_to_num):
    Bt, T, N = batch_block, q_len, kv_len
    nh, hs = num_heads, head_size
    half = hs // 2
    H = nh * hs
    G = nh * Bt
    cdt = jnp.bfloat16 if use_bf16 else jnp.float32

    lam_full = scal_ref[0]
    eps = scal_ref[1]

    def mm(a, b):  # MXU matmul, f32 accumulation
        return jnp.dot(a, b, preferred_element_type=jnp.float32)

    # ---- fused linear projections over all Bt*T (resp. Bt*N) rows ------------
    # (1/sqrt(half) is folded into wq_t / bq by the wrapper).  Cast to bf16
    # *before* any head re-layout so the stacking copies move half the bytes.
    q = (mm(q_in[...].astype(cdt), wq_t[...]) + bq[...]).astype(cdt)   # (Bt*T, H)
    k = (mm(k_in[...].astype(cdt), wk_t[...]) + bk[...]).astype(cdt)   # (Bt*N, H)
    v = (mm(v_in[...].astype(cdt), wv_t[...]) + bv[...]).astype(cdt)   # (Bt*N, H)

    # ---- sub-head stacking: rows ordered (branch, head, batch) ---------------
    # TODO(synk): replace the lane slices + leading concat with a branch-major
    # weight-column permutation + reshape/einshape once mixed-dim transposes are
    # confirmed supported by the installed Mosaic; keep the lowering-safe form here.
    def head_stack(x2d, rows, width, offsets):
        x3 = x2d.reshape(Bt, rows, H)
        return jnp.concatenate([x3[:, :, c0:c0 + width] for c0 in offsets], axis=0)

    b0_off = [h * hs for h in range(nh)]             # branch-0 channel starts
    b1_off = [h * hs + half for h in range(nh)]      # branch-1 channel starts
    qs = head_stack(q, T, half, b0_off + b1_off)     # (2*nh*Bt, T, half)
    ks = head_stack(k, N, half, b0_off + b1_off)     # (2*nh*Bt, N, half)
    vs = head_stack(v, N, hs, b0_off)                # (nh*Bt, N, head_size)

    # ---- scores + softmax: one batched matmul for all sub-head instances -----
    # NOTE: contraction dim is head_size/2 (< MXU width); acceptable at these
    # shapes -- keep T/N tiles 128-aligned when scaling up.
    s = jnp.einsum('gqd,gkd->gqk', qs, ks,
                   preferred_element_type=jnp.float32)       # (2*nh*Bt, T, N) f32

    fmin = jnp.finfo(jnp.float32).min
    if strict_nan_to_num:
        # mirror torch.nan_to_num (cannot trigger with finite f32 inputs)
        s = jnp.where(jnp.isnan(s), jnp.float32(0.0), s)
        s = jnp.clip(s, fmin, jnp.finfo(jnp.float32).max)
    if causal_mask:
        # (1, T, N) mask broadcast against (2*nh*Bt, T, N)
        row = jax.lax.broadcasted_iota(jnp.int32, (1, T, N), 1)
        col = jax.lax.broadcasted_iota(jnp.int32, (1, T, N), 2)
        s = jnp.where(col <= row, s, fmin)

    m = jnp.max(s, axis=-1, keepdims=True)
    e = jnp.exp(s - m)
    denom = jnp.sum(e, axis=-1, keepdims=True)
    if use_bf16:
        prob = e * pl.reciprocal(denom, approx=True)          # EUP slot
    else:
        prob = e / denom                                      # bit-faithful path

    # ---- differential combine + attn @ V -------------------------------------
    # TODO(synk): flash-style KV tiling (online softmax over a KV grid axis) so
    # s / e / prob / attn are never materialized at full (2*nh*Bt, T, N).
    attn = prob[:G] - lam_full * prob[G:]                     # (nh*Bt, T, N) f32
    # NOTE: casting `attn` to bf16 after the p0 - lam*p1 cancellation is the main
    # source of the bf16-path error; keep it f32 here if tighter accuracy is needed.
    oh = jnp.einsum('gqk,gkd->gqd', attn.astype(cdt), vs,
                    preferred_element_type=jnp.float32)       # (nh*Bt, T, head_size)

    # RMSNorm over the head dim (affine weight and (1-lambda_init) folded into wo_t)
    ms = jnp.mean(oh * oh, axis=-1, keepdims=True)
    oh = oh * jax.lax.rsqrt(ms + eps)

    # ---- output projection: per-head lane-dense matmuls accumulated in f32 ---
    # (replaces the per-head masked scatter into a VMEM scratch + reload)
    oh3 = oh.astype(cdt).reshape(nh, Bt * T, hs)              # leading-dim reshape only
    wo3 = wo_t[...].reshape(nh, hs, H)                        # rows are head-major
    out = mm(oh3[0], wo3[0])
    for h in range(1, nh):
        out = out + mm(oh3[h], wo3[h])
    out = out + bo[...]                                       # (Bt*T, H) f32
    # TODO(synk): nn.Dropout is an identity in eval mode; training-time dropout not modeled.
    o_ref[...] = out.astype(o_ref.dtype)


# --------------------------------------------------------------------------- #
# Wrapper helpers
# --------------------------------------------------------------------------- #
def _vmem_capacity_bytes():
    """Per-TensorCore VMEM capacity; conservative v7x fallback (64 MiB)."""
    try:
        cap = int(pltpu.get_tpu_info().vmem_capacity_bytes)
        if cap > 0:
            return cap
    except Exception:
        pass
    return 64 * 1024 * 1024


def _vmem_bytes_estimate(Bt, *, T, N, H, nh, hs, act_bytes, w_bytes, out_bytes):
    """Rough peak-live VMEM bytes for one grid step at batch block Bt."""
    io = 2 * (Bt * T * H + 2 * Bt * N * H) * 4          # double-buffered f32 q/k/v blocks
    io += 2 * Bt * T * H * out_bytes                    # double-buffered output block
    wts = 2 * (4 * H * H * w_bytes + 4 * H * 4)         # (double-buffered) weights + biases
    proj = 2 * Bt * (T + 2 * N) * H * act_bytes         # projected q/k/v + stacked copies
    scores = 4 * (2 * nh) * Bt * T * N * 4              # s, e, prob (+slack), f32
    tail = nh * Bt * T * N * 4 + 2 * nh * Bt * T * hs * 4 + Bt * T * H * 4
    return io + wts + proj + scores + tail


def _pick_batch_block(B, T, N, budget_bytes, est_fn):
    """Largest divisor of B whose VMEM estimate fits the budget, keeping >=2 grid
    steps (pipelining on all chips, and v7x's two TensorCores) when B > 1."""
    best = 1
    for Bt in range(1, B + 1):
        if B % Bt:
            continue
        if Bt != B and (((Bt * T) % 8) or ((Bt * N) % 8)):
            continue                          # keep (8,128)-friendly block dims
        if B > 1 and B // Bt < 2:
            continue
        if est_fn(Bt) <= budget_bytes:
            best = Bt
    return best
    # TODO(synk): for B == 1 with long T, add a second 'parallel' grid axis over
    # query tiles so v7x's two TensorCores both get work.


# --------------------------------------------------------------------------- #
# Public wrapper
# --------------------------------------------------------------------------- #
def diff_mha_pallas(query, key, value, p, *, num_heads, head_size, lambda_init,
                    causal_mask=True, use_bf16=True, strict_nan_to_num=False,
                    out_dtype=None, single_buffer_weights=False):
    B, T, H = query.shape
    N = key.shape[1]
    assert H == num_heads * head_size and head_size % 2 == 0
    nh, hs = num_heads, head_size
    out_dtype = query.dtype if out_dtype is None else out_dtype

    act_bytes = 2 if use_bf16 else 4
    w_bytes = 2 if use_bf16 else 4
    out_bytes = jnp.dtype(out_dtype).itemsize

    # Generation-aware VMEM budget (v5e/v6e: 128 MiB -> ~108 MiB limit,
    # v7x: 64 MiB -> ~54 MiB limit) and a Bt that fits it.
    cap = _vmem_capacity_bytes()
    vmem_limit = max(32 << 20, min(int(cap * 0.85), cap - (2 << 20)))
    budget = int(vmem_limit * 0.85)
    est = functools.partial(_vmem_bytes_estimate, T=T, N=N, H=H, nh=nh, hs=hs,
                            act_bytes=act_bytes, w_bytes=w_bytes, out_bytes=out_bytes)
    Bt = _pick_batch_block(B, T, N, budget, est)
    grid = (B // Bt,)

    # Tiny scalar glue (lambda_full from the lambda vectors) prefetched into SMEM.
    lam1 = jnp.exp(jnp.sum(p["lambda_q1"] * p["lambda_k1"]))
    lam2 = jnp.exp(jnp.sum(p["lambda_q2"] * p["lambda_k2"]))
    lambda_full = lam1 - lam2 + jnp.float32(lambda_init)
    scalars = jnp.stack([lambda_full, jnp.float32(1e-5)]).astype(jnp.float32)

    # One-time weight prep (outside the kernel):
    #  * PyTorch Linear is y = x @ W^T + b -> pass W^T,
    #  * fold 1/sqrt(half) into Wq / bq,
    #  * fold RMSNorm affine weight and (1 - lambda_init) into the rows of Wo.
    scale = 1.0 / math.sqrt(head_size // 2)
    wq_t = p["wq"].T * scale
    bq = (p["bq"] * scale).reshape(1, H).astype(jnp.float32)
    wk_t = p["wk"].T
    bk = p["bk"].reshape(1, H).astype(jnp.float32)
    wv_t = p["wv"].T
    bv = p["bv"].reshape(1, H).astype(jnp.float32)
    g_scale = jnp.tile(p["rms_w"], num_heads) * jnp.float32(1.0 - lambda_init)  # (H,)
    wo_t = p["wo"].T * g_scale[:, None]
    bo = p["bo"].reshape(1, H).astype(jnp.float32)

    wdt = jnp.bfloat16 if use_bf16 else jnp.float32
    wq_t, wk_t, wv_t, wo_t = (w.astype(wdt) for w in (wq_t, wk_t, wv_t, wo_t))

    # Flatten (batch, seq) so each grid step feeds Bt*T / Bt*N rows to the MXU.
    qf = query.reshape(B * T, H)
    kf = key.reshape(B * N, H)
    vf = value.reshape(B * N, H)

    kernel = functools.partial(
        _diff_attn_kernel, batch_block=Bt, q_len=T, kv_len=N,
        num_heads=nh, head_size=hs, causal_mask=causal_mask,
        use_bf16=use_bf16, strict_nan_to_num=strict_nan_to_num)

    # Weight blocks are grid-invariant (no re-DMA after step 0); optionally drop
    # their double buffering entirely.
    wkw = dict(pipeline_mode=pl.Buffered(1)) if single_buffer_weights else {}
    mat_spec = pl.BlockSpec((H, H), lambda i, s: (0, 0), **wkw)
    vec_spec = pl.BlockSpec((1, H), lambda i, s: (0, 0), **wkw)
    q_spec = pl.BlockSpec((Bt * T, H), lambda i, s: (i, 0))
    kv_spec = pl.BlockSpec((Bt * N, H), lambda i, s: (i, 0))
    o_spec = pl.BlockSpec((Bt * T, H), lambda i, s: (i, 0))

    grid_spec = pltpu.PrefetchScalarGridSpec(
        num_scalar_prefetch=1,
        grid=grid,
        in_specs=[q_spec, kv_spec, kv_spec,
                  mat_spec, vec_spec, mat_spec, vec_spec, mat_spec, vec_spec,
                  mat_spec, vec_spec],
        out_specs=o_spec,
    )

    # Advisory cost hint for XLA's scheduler around the custom call.
    flops = (2 * B * (T + 2 * N) * H * H      # q/k/v projections
             + 4 * B * T * N * H              # scores (2 branches) + attn @ V
             + 2 * B * T * H * H)             # output projection
    transcendentals = 2 * nh * B * T * N      # softmax exp
    bytes_accessed = (4 * (2 * B * T * H + 2 * B * N * H)
                      + 4 * H * H * w_bytes + 8 * H * 4)
    cost = pl.CostEstimate(flops=int(flops), transcendentals=int(transcendentals),
                           bytes_accessed=int(bytes_accessed))

    out2d = pl.pallas_call(
        kernel,
        out_shape=jax.ShapeDtypeStruct((B * T, H), out_dtype),
        grid_spec=grid_spec,
        compiler_params=pltpu.CompilerParams(
            dimension_semantics=("parallel",),
            vmem_limit_bytes=int(vmem_limit)),
        cost_estimate=cost,
    )(scalars, qf, kf, vf, wq_t, bq, wk_t, bk, wv_t, bv, wo_t, bo)

    return out2d.reshape(B, T, H)


# --------------------------------------------------------------------------- #
# Pure-JAX reference (transcription of the PyTorch forward, eval mode)
# --------------------------------------------------------------------------- #
def diff_mha_reference(query, key, value, p, *, num_heads, head_size, lambda_init,
                       causal_mask=True):
    B, T, H = query.shape
    N = key.shape[1]
    half = head_size // 2
    q = query @ p["wq"].T + p["bq"]
    k = key @ p["wk"].T + p["bk"]
    v = value @ p["wv"].T + p["bv"]
    lam1 = jnp.exp(jnp.sum(p["lambda_q1"] * p["lambda_k1"]))
    lam2 = jnp.exp(jnp.sum(p["lambda_q2"] * p["lambda_k2"]))
    lambda_full = lam1 - lam2 + lambda_init
    q = q.reshape(B, T, 2 * num_heads, half).transpose(0, 2, 1, 3)
    k = k.reshape(B, N, 2 * num_heads, half).transpose(0, 2, 1, 3)
    v = v.reshape(B, N, num_heads, head_size).transpose(0, 2, 1, 3)
    att = jnp.einsum('bhtd,bhnd->bhtn', q, k) / math.sqrt(half)
    att = jnp.nan_to_num(att)
    if causal_mask:
        mask = jnp.tril(jnp.ones((T, N), jnp.float32))
        att = jnp.where(mask == 0, jnp.finfo(att.dtype).min, att)
    att = jax.nn.softmax(att, axis=-1)
    att = att.reshape(B, num_heads, 2, T, N)
    attn = att[:, :, 0] - lambda_full * att[:, :, 1]
    out = jnp.einsum('bhtn,bhnd->bhtd', attn, v)
    ms = jnp.mean(out * out, axis=-1, keepdims=True)
    out = out * jax.lax.rsqrt(ms + 1e-5) * p["rms_w"]
    out = out * (1.0 - lambda_init)
    out = out.transpose(0, 2, 1, 3).reshape(B, T, H)
    out = out @ p["wo"].T + p["bo"]
    return out


if __name__ == "__main__":
    B, T, N, H, NH = 8, 8, 8, 64, 4           # batch, q-len, kv-len, hidden, diff_num_heads
    HD = H // NH                               # diff_head_size = 16
    depth = 2
    lam_init = lambda_init_fn(depth)

    keys = jax.random.split(jax.random.PRNGKey(0), 16)
    f32 = jnp.float32
    p = {
        "wq": 0.05 * jax.random.normal(keys[0], (H, H), f32),
        "bq": 0.05 * jax.random.normal(keys[1], (H,), f32),
        "wk": 0.05 * jax.random.normal(keys[2], (H, H), f32),
        "bk": 0.05 * jax.random.normal(keys[3], (H,), f32),
        "wv": 0.05 * jax.random.normal(keys[4], (H, H), f32),
        "bv": 0.05 * jax.random.normal(keys[5], (H,), f32),
        "wo": 0.05 * jax.random.normal(keys[6], (H, H), f32),
        "bo": 0.05 * jax.random.normal(keys[7], (H,), f32),
        "lambda_q1": 0.1 * jax.random.normal(keys[8], (HD // 2,), f32),
        "lambda_q2": 0.1 * jax.random.normal(keys[9], (HD // 2,), f32),
        "lambda_k1": 0.1 * jax.random.normal(keys[10], (HD // 2,), f32),
        "lambda_k2": 0.1 * jax.random.normal(keys[11], (HD // 2,), f32),
        "rms_w": 1.0 + 0.1 * jax.random.normal(keys[12], (HD,), f32),
    }
    query = jax.random.normal(keys[13], (B, T, H), f32)
    key_in = jax.random.normal(keys[14], (B, N, H), f32)
    value = jax.random.normal(keys[15], (B, N, H), f32)

    ref = diff_mha_reference(query, key_in, value, p,
                             num_heads=NH, head_size=HD, lambda_init=lam_init)

    # Strict path: f32 MXU operands + exact softmax division (tight tolerance).
    out_f32 = jax.block_until_ready(
        diff_mha_pallas(query, key_in, value, p, num_heads=NH, head_size=HD,
                        lambda_init=lam_init, use_bf16=False))
    assert out_f32.shape == (B, T, H), out_f32.shape
    err_f32 = float(jnp.max(jnp.abs(out_f32 - ref)))
    assert err_f32 < 1e-3, f"f32 path max abs err vs reference: {err_f32}"

    # Fast path: bf16 MXU operands, f32 accumulation, approx reciprocal.
    out_bf16 = jax.block_until_ready(
        diff_mha_pallas(query, key_in, value, p, num_heads=NH, head_size=HD,
                        lambda_init=lam_init, use_bf16=True))
    err_bf16 = float(jnp.max(jnp.abs(out_bf16 - ref)))
    assert err_bf16 < 6e-2, f"bf16 path max abs err vs reference: {err_bf16}"

    # bf16 output dtype (halves HBM writeback) -- smoke test.
    out_bf16o = jax.block_until_ready(
        diff_mha_pallas(query, key_in, value, p, num_heads=NH, head_size=HD,
                        lambda_init=lam_init, use_bf16=True, out_dtype=jnp.bfloat16))
    assert out_bf16o.shape == (B, T, H) and out_bf16o.dtype == jnp.bfloat16
    assert bool(jnp.isfinite(out_bf16o.astype(jnp.float32)).all())

    print("KERNEL_OK")
</pallas_src>

<mosaic_0001>
module attributes {stable_mosaic.version = 11 : i64} {
  func.func @_diff_attn_kernel(%arg0: i32, %arg1: memref<2xf32, #tpu.memory_space<smem>>, %arg2: memref<32x64xf32, #tpu.memory_space<vmem>>, %arg3: memref<32x64xf32, #tpu.memory_space<vmem>>, %arg4: memref<32x64xf32, #tpu.memory_space<vmem>>, %arg5: memref<64x64xf32, #tpu.memory_space<vmem>>, %arg6: memref<1x64xf32, #tpu.memory_space<vmem>>, %arg7: memref<64x64xf32, #tpu.memory_space<vmem>>, %arg8: memref<1x64xf32, #tpu.memory_space<vmem>>, %arg9: memref<64x64xf32, #tpu.memory_space<vmem>>, %arg10: memref<1x64xf32, #tpu.memory_space<vmem>>, %arg11: memref<64x64xf32, #tpu.memory_space<vmem>>, %arg12: memref<1x64xf32, #tpu.memory_space<vmem>>, %arg13: memref<32x64xf32, #tpu.memory_space<vmem>>) attributes {dimension_semantics = [#tpu.dimension_semantics<parallel>], iteration_bounds = array<i64: 2>, scalar_prefetch = 1 : i64, scratch_operands = 0 : i64, tpu.core_type = #tpu.core_type<tc>, window_params = [{transform_indices = @transform_0, window_bounds = array<i64: 32, 64>}, {transform_indices = @transform_1, window_bounds = array<i64: 32, 64>}, {transform_indices = @transform_2, window_bounds = array<i64: 32, 64>}, {pipeline_mode = #tpu.pipeline_mode<synchronous>, transform_indices = @transform_3, window_bounds = array<i64: 64, 64>}, {pipeline_mode = #tpu.pipeline_mode<synchronous>, transform_indices = @transform_4, window_bounds = array<i64: 1, 64>}, {pipeline_mode = #tpu.pipeline_mode<synchronous>, transform_indices = @transform_5, window_bounds = array<i64: 64, 64>}, {pipeline_mode = #tpu.pipeline_mode<synchronous>, transform_indices = @transform_6, window_bounds = array<i64: 1, 64>}, {pipeline_mode = #tpu.pipeline_mode<synchronous>, transform_indices = @transform_7, window_bounds = array<i64: 64, 64>}, {pipeline_mode = #tpu.pipeline_mode<synchronous>, transform_indices = @transform_8, window_bounds = array<i64: 1, 64>}, {pipeline_mode = #tpu.pipeline_mode<synchronous>, transform_indices = @transform_9, window_bounds = array<i64: 64, 64>}, {pipeline_mode = #tpu.pipeline_mode<synchronous>, transform_indices = @transform_10, window_bounds = array<i64: 1, 64>}, {transform_indices = @transform_11, window_bounds = array<i64: 32, 64>}]} {
    %c0 = arith.constant 0 : index
    %0 = memref.load %arg1[%c0] : memref<2xf32, #tpu.memory_space<smem>>
    %c1 = arith.constant 1 : index
    %1 = memref.load %arg1[%c1] : memref<2xf32, #tpu.memory_space<smem>>
    %c0_0 = arith.constant 0 : index
    %c0_1 = arith.constant 0 : index
    %2 = vector.load %arg2[%c0_0, %c0_1] : memref<32x64xf32, #tpu.memory_space<vmem>>, vector<32x64xf32>
    %c0_2 = arith.constant 0 : index
    %c0_3 = arith.constant 0 : index
    %3 = vector.load %arg5[%c0_2, %c0_3] : memref<64x64xf32, #tpu.memory_space<vmem>>, vector<64x64xf32>
    %cst = arith.constant dense<0.000000e+00> : vector<32x64xf32>
    %4 = tpu.matmul %2, %3, %cst {dimension_numbers = #tpu.dot_dimension_numbers<[1], [0], [0], [1], [0, 0, 1, 1], [], []>} : vector<32x64xf32>, vector<64x64xf32>, vector<32x64xf32> -> vector<32x64xf32>
    %c0_4 = arith.constant 0 : index
    %c0_5 = arith.constant 0 : index
    %5 = vector.load %arg6[%c0_4, %c0_5] : memref<1x64xf32, #tpu.memory_space<vmem>>, vector<1x64xf32>
    %6 = vector.broadcast %5 : vector<1x64xf32> to vector<32x64xf32>
    %7 = arith.addf %4, %6 : vector<32x64xf32>
    %c0_6 = arith.constant 0 : index
    %c0_7 = arith.constant 0 : index
    %8 = vector.load %arg3[%c0_6, %c0_7] : memref<32x64xf32, #tpu.memory_space<vmem>>, vector<32x64xf32>
    %c0_8 = arith.constant 0 : index
    %c0_9 = arith.constant 0 : index
    %9 = vector.load %arg7[%c0_8, %c0_9] : memref<64x64xf32, #tpu.memory_space<vmem>>, vector<64x64xf32>
    %cst_10 = arith.constant dense<0.000000e+00> : vector<32x64xf32>
    %10 = tpu.matmul %8, %9, %cst_10 {dimension_numbers = #tpu.dot_dimension_numbers<[1], [0], [0], [1], [0, 0, 1, 1], [], []>} : vector<32x64xf32>, vector<64x64xf32>, vector<32x64xf32> -> vector<32x64xf32>
    %c0_11 = arith.constant 0 : index
    %c0_12 = arith.constant 0 : index
    %11 = vector.load %arg8[%c0_11, %c0_12] : memref<1x64xf32, #tpu.memory_space<vmem>>, vector<1x64xf32>
    %12 = vector.broadcast %11 : vector<1x64xf32> to vector<32x64xf32>
    %13 = arith.addf %10, %12 : vector<32x64xf32>
    %c0_13 = arith.constant 0 : index
    %c0_14 = arith.constant 0 : index
    %14 = vector.load %arg4[%c0_13, %c0_14] : memref<32x64xf32, #tpu.memory_space<vmem>>, vector<32x64xf32>
    %c0_15 = arith.constant 0 : index
    %c0_16 = arith.constant 0 : index
    %15 = vector.load %arg9[%c0_15, %c0_16] : memref<64x64xf32, #tpu.memory_space<vmem>>, vector<64x64xf32>
    %cst_17 = arith.constant dense<0.000000e+00> : vector<32x64xf32>
    %16 = tpu.matmul %14, %15, %cst_17 {dimension_numbers = #tpu.dot_dimension_numbers<[1], [0], [0], [1], [0, 0, 1, 1], [], []>} : vector<32x64xf32>, vector<64x64xf32>, vector<32x64xf32> -> vector<32x64xf32>
    %c0_18 = arith.constant 0 : index
    %c0_19 = arith.constant 0 : index
    %17 = vector.load %arg10[%c0_18, %c0_19] : memref<1x64xf32, #tpu.memory_space<vmem>>, vector<1x64xf32>
    %18 = vector.broadcast %17 : vector<1x64xf32> to vector<32x64xf32>
    %19 = arith.addf %16, %18 : vector<32x64xf32>
    %20 = vector.shape_cast %7 : vector<32x64xf32> to vector<4x8x64xf32>
    %21 = vector.extract_strided_slice %20 {offsets = [0, 0, 0], sizes = [4, 8, 8], strides = [1, 1, 1]} : vector<4x8x64xf32> to vector<4x8x8xf32>
    %22 = vector.extract_strided_slice %20 {offsets = [0, 0, 16], sizes = [4, 8, 8], strides = [1, 1, 1]} : vector<4x8x64xf32> to vector<4x8x8xf32>
    %23 = vector.extract_strided_slice %20 {offsets = [0, 0, 32], sizes = [4, 8, 8], strides = [1, 1, 1]} : vector<4x8x64xf32> to vector<4x8x8xf32>
    %24 = vector.extract_strided_slice %20 {offsets = [0, 0, 48], sizes = [4, 8, 8], strides = [1, 1, 1]} : vector<4x8x64xf32> to vector<4x8x8xf32>
    %25 = vector.extract_strided_slice %20 {offsets = [0, 0, 8], sizes = [4, 8, 8], strides = [1, 1, 1]} : vector<4x8x64xf32> to vector<4x8x8xf32>
    %26 = vector.extract_strided_slice %20 {offsets = [0, 0, 24], sizes = [4, 8, 8], strides = [1, 1, 1]} : vector<4x8x64xf32> to vector<4x8x8xf32>
    %27 = vector.extract_strided_slice %20 {offsets = [0, 0, 40], sizes = [4, 8, 8], strides = [1, 1, 1]} : vector<4x8x64xf32> to vector<4x8x8xf32>
    %28 = vector.extract_strided_slice %20 {offsets = [0, 0, 56], sizes = [4, 8, 8], strides = [1, 1, 1]} : vector<4x8x64xf32> to vector<4x8x8xf32>
    %29 = tpu.concatenate %21, %22, %23, %24, %25, %26, %27, %28 in 0 : vector<4x8x8xf32>, vector<4x8x8xf32>, vector<4x8x8xf32>, vector<4x8x8xf32>, vector<4x8x8xf32>, vector<4x8x8xf32>, vector<4x8x8xf32>, vector<4x8x8xf32> -> vector<32x8x8xf32>
    %30 = vector.shape_cast %13 : vector<32x64xf32> to vector<4x8x64xf32>
    %31 = vector.extract_strided_slice %30 {offsets = [0, 0, 0], sizes = [4, 8, 8], strides = [1, 1, 1]} : vector<4x8x64xf32> to vector<4x8x8xf32>
    %32 = vector.extract_strided_slice %30 {offsets = [0, 0, 16], sizes = [4, 8, 8], strides = [1, 1, 1]} : vector<4x8x64xf32> to vector<4x8x8xf32>
    %33 = vector.extract_strided_slice %30 {offsets = [0, 0, 32], sizes = [4, 8, 8], strides = [1, 1, 1]} : vector<4x8x64xf32> to vector<4x8x8xf32>
    %34 = vector.extract_strided_slice %30 {offsets = [0, 0, 48], sizes = [4, 8, 8], strides = [1, 1, 1]} : vector<4x8x64xf32> to vector<4x8x8xf32>
    %35 = vector.extract_strided_slice %30 {offsets = [0, 0, 8], sizes = [4, 8, 8], strides = [1, 1, 1]} : vector<4x8x64xf32> to vector<4x8x8xf32>
    %36 = vector.extract_strided_slice %30 {offsets = [0, 0, 24], sizes = [4, 8, 8], strides = [1, 1, 1]} : vector<4x8x64xf32> to vector<4x8x8xf32>
    %37 = vector.extract_strided_slice %30 {offsets = [0, 0, 40], sizes = [4, 8, 8], strides = [1, 1, 1]} : vector<4x8x64xf32> to vector<4x8x8xf32>
    %38 = vector.extract_strided_slice %30 {offsets = [0, 0, 56], sizes = [4, 8, 8], strides = [1, 1, 1]} : vector<4x8x64xf32> to vector<4x8x8xf32>
    %39 = tpu.concatenate %31, %32, %33, %34, %35, %36, %37, %38 in 0 : vector<4x8x8xf32>, vector<4x8x8xf32>, vector<4x8x8xf32>, vector<4x8x8xf32>, vector<4x8x8xf32>, vector<4x8x8xf32>, vector<4x8x8xf32>, vector<4x8x8xf32> -> vector<32x8x8xf32>
    %40 = vector.shape_cast %19 : vector<32x64xf32> to vector<4x8x64xf32>
    %41 = vector.extract_strided_slice %40 {offsets = [0, 0, 0], sizes = [4, 8, 16], strides = [1, 1, 1]} : vector<4x8x64xf32> to vector<4x8x16xf32>
    %42 = vector.extract_strided_slice %40 {offsets = [0, 0, 16], sizes = [4, 8, 16], strides = [1, 1, 1]} : vector<4x8x64xf32> to vector<4x8x16xf32>
    %43 = vector.extract_strided_slice %40 {offsets = [0, 0, 32], sizes = [4, 8, 16], strides = [1, 1, 1]} : vector<4x8x64xf32> to vector<4x8x16xf32>
    %44 = vector.extract_strided_slice %40 {offsets = [0, 0, 48], sizes = [4, 8, 16], strides = [1, 1, 1]} : vector<4x8x64xf32> to vector<4x8x16xf32>
    %45 = tpu.concatenate %41, %42, %43, %44 in 0 : vector<4x8x16xf32>, vector<4x8x16xf32>, vector<4x8x16xf32>, vector<4x8x16xf32> -> vector<16x8x16xf32>
    "tpu.trace_start"() <{level = 10 : i32, message = "gqd,gkd->gqk"}> : () -> ()
    %cst_20 = arith.constant dense<0.000000e+00> : vector<32x8x8xf32>
    %46 = tpu.matmul %29, %39, %cst_20 {dimension_numbers = #tpu.dot_dimension_numbers<[2], [2], [1], [1], [0, 0, 0, 1, 1, 1], [0], [0]>} : vector<32x8x8xf32>, vector<32x8x8xf32>, vector<32x8x8xf32> -> vector<32x8x8xf32>
    "tpu.trace_stop"() : () -> ()
    %47 = tpu.iota {dimensions = array<i32: 1>} : vector<1x8x8xi32>
    %48 = tpu.iota {dimensions = array<i32: 2>} : vector<1x8x8xi32>
    %49 = arith.cmpi sle, %48, %47 : vector<1x8x8xi32>
    %cst_21 = arith.constant -3.40282347E+38 : f32
    %50 = vector.shape_cast %49 : vector<1x8x8xi1> to vector<1x8x8xi1>
    %51 = vector.broadcast %50 : vector<1x8x8xi1> to vector<32x8x8xi1>
    %52 = vector.broadcast %cst_21 : f32 to vector<32x8x8xf32>
    %53 = arith.select %51, %46, %52 : vector<32x8x8xi1>, vector<32x8x8xf32>
    %cst_22 = arith.constant dense<0xFF800000> : vector<32x8xf32>
    %54 = vector.multi_reduction <maximumf>, %53, %cst_22 [2] : vector<32x8x8xf32> to vector<32x8xf32>
    %55 = vector.shape_cast %54 : vector<32x8xf32> to vector<32x8x1xf32>
    %56 = vector.broadcast %55 : vector<32x8x1xf32> to vector<32x8x8xf32>
    %57 = arith.subf %53, %56 : vector<32x8x8xf32>
    %58 = math.exp %57 : vector<32x8x8xf32>
    %cst_23 = arith.constant dense<0.000000e+00> : vector<32x8xf32>
    %59 = vector.multi_reduction <add>, %58, %cst_23 [2] : vector<32x8x8xf32> to vector<32x8xf32>
    %60 = vector.shape_cast %59 : vector<32x8xf32> to vector<32x8x1xf32>
    %61 = vector.broadcast %60 : vector<32x8x1xf32> to vector<32x8x8xf32>
    %62 = arith.divf %58, %61 : vector<32x8x8xf32>
    %63 = vector.extract_strided_slice %62 {offsets = [0, 0, 0], sizes = [16, 8, 8], strides = [1, 1, 1]} : vector<32x8x8xf32> to vector<16x8x8xf32>
    %64 = vector.extract_strided_slice %62 {offsets = [16, 0, 0], sizes = [16, 8, 8], strides = [1, 1, 1]} : vector<32x8x8xf32> to vector<16x8x8xf32>
    %65 = vector.broadcast %0 : f32 to vector<16x8x8xf32>
    %66 = arith.mulf %65, %64 : vector<16x8x8xf32>
    %67 = arith.subf %63, %66 : vector<16x8x8xf32>
    "tpu.trace_start"() <{level = 10 : i32, message = "gqk,gkd->gqd"}> : () -> ()
    %cst_24 = arith.constant dense<0.000000e+00> : vector<16x8x16xf32>
    %68 = tpu.matmul %67, %45, %cst_24 {dimension_numbers = #tpu.dot_dimension_numbers<[2], [1], [1], [2], [0, 0, 0, 1, 1, 2], [0], [0]>} : vector<16x8x8xf32>, vector<16x8x16xf32>, vector<16x8x16xf32> -> vector<16x8x16xf32>
    "tpu.trace_stop"() : () -> ()
    %69 = arith.mulf %68, %68 : vector<16x8x16xf32>
    %cst_25 = arith.constant dense<0.000000e+00> : vector<16x8xf32>
    %70 = vector.multi_reduction <add>, %69, %cst_25 [2] : vector<16x8x16xf32> to vector<16x8xf32>
    %71 = vector.shape_cast %70 : vector<16x8xf32> to vector<16x8x1xf32>
    %cst_26 = arith.constant 1.600000e+01 : f32
    %72 = vector.broadcast %cst_26 : f32 to vector<16x8x1xf32>
    %73 = arith.divf %71, %72 : vector<16x8x1xf32>
    %74 = vector.broadcast %1 : f32 to vector<16x8x1xf32>
    %75 = arith.addf %73, %74 : vector<16x8x1xf32>
    %76 = math.rsqrt %75 : vector<16x8x1xf32>
    %77 = vector.broadcast %76 : vector<16x8x1xf32> to vector<16x8x16xf32>
    %78 = arith.mulf %68, %77 : vector<16x8x16xf32>
    %79 = vector.shape_cast %78 : vector<16x8x16xf32> to vector<4x32x16xf32>
    %c0_27 = arith.constant 0 : index
    %c0_28 = arith.constant 0 : index
    %80 = vector.load %arg11[%c0_27, %c0_28] : memref<64x64xf32, #tpu.memory_space<vmem>>, vector<64x64xf32>
    %81 = vector.shape_cast %80 : vector<64x64xf32> to vector<4x16x64xf32>
    %82 = vector.extract_strided_slice %79 {offsets = [0, 0, 0], sizes = [1, 32, 16], strides = [1, 1, 1]} : vector<4x32x16xf32> to vector<1x32x16xf32>
    %83 = vector.shape_cast %82 : vector<1x32x16xf32> to vector<32x16xf32>
    %84 = vector.extract_strided_slice %81 {offsets = [0, 0, 0], sizes = [1, 16, 64], strides = [1, 1, 1]} : vector<4x16x64xf32> to vector<1x16x64xf32>
    %85 = vector.shape_cast %84 : vector<1x16x64xf32> to vector<16x64xf32>
    %cst_29 = arith.constant dense<0.000000e+00> : vector<32x64xf32>
    %86 = tpu.matmul %83, %85, %cst_29 {dimension_numbers = #tpu.dot_dimension_numbers<[1], [0], [0], [1], [0, 0, 1, 1], [], []>} : vector<32x16xf32>, vector<16x64xf32>, vector<32x64xf32> -> vector<32x64xf32>
    %87 = vector.extract_strided_slice %79 {offsets = [1, 0, 0], sizes = [1, 32, 16], strides = [1, 1, 1]} : vector<4x32x16xf32> to vector<1x32x16xf32>
    %88 = vector.shape_cast %87 : vector<1x32x16xf32> to vector<32x16xf32>
    %89 = vector.extract_strided_slice %81 {offsets = [1, 0, 0], sizes = [1, 16, 64], strides = [1, 1, 1]} : vector<4x16x64xf32> to vector<1x16x64xf32>
    %90 = vector.shape_cast %89 : vector<1x16x64xf32> to vector<16x64xf32>
    %cst_30 = arith.constant dense<0.000000e+00> : vector<32x64xf32>
    %91 = tpu.matmul %88, %90, %cst_30 {dimension_numbers = #tpu.dot_dimension_numbers<[1], [0], [0], [1], [0, 0, 1, 1], [], []>} : vector<32x16xf32>, vector<16x64xf32>, vector<32x64xf32> -> vector<32x64xf32>
    %92 = arith.addf %86, %91 : vector<32x64xf32>
    %93 = vector.extract_strided_slice %79 {offsets = [2, 0, 0], sizes = [1, 32, 16], strides = [1, 1, 1]} : vector<4x32x16xf32> to vector<1x32x16xf32>
    %94 = vector.shape_cast %93 : vector<1x32x16xf32> to vector<32x16xf32>
    %95 = vector.extract_strided_slice %81 {offsets = [2, 0, 0], sizes = [1, 16, 64], strides = [1, 1, 1]} : vector<4x16x64xf32> to vector<1x16x64xf32>
    %96 = vector.shape_cast %95 : vector<1x16x64xf32> to vector<16x64xf32>
    %cst_31 = arith.constant dense<0.000000e+00> : vector<32x64xf32>
    %97 = tpu.matmul %94, %96, %cst_31 {dimension_numbers = #tpu.dot_dimension_numbers<[1], [0], [0], [1], [0, 0, 1, 1], [], []>} : vector<32x16xf32>, vector<16x64xf32>, vector<32x64xf32> -> vector<32x64xf32>
    %98 = arith.addf %92, %97 : vector<32x64xf32>
    %99 = vector.extract_strided_slice %79 {offsets = [3, 0, 0], sizes = [1, 32, 16], strides = [1, 1, 1]} : vector<4x32x16xf32> to vector<1x32x16xf32>
    %100 = vector.shape_cast %99 : vector<1x32x16xf32> to vector<32x16xf32>
    %101 = vector.extract_strided_slice %81 {offsets = [3, 0, 0], sizes = [1, 16, 64], strides = [1, 1, 1]} : vector<4x16x64xf32> to vector<1x16x64xf32>
    %102 = vector.shape_cast %101 : vector<1x16x64xf32> to vector<16x64xf32>
    %cst_32 = arith.constant dense<0.000000e+00> : vector<32x64xf32>
    %103 = tpu.matmul %100, %102, %cst_32 {dimension_numbers = #tpu.dot_dimension_numbers<[1], [0], [0], [1], [0, 0, 1, 1], [], []>} : vector<32x16xf32>, vector<16x64xf32>, vector<32x64xf32> -> vector<32x64xf32>
    %104 = arith.addf %98, %103 : vector<32x64xf32>
    %c0_33 = arith.constant 0 : index
    %c0_34 = arith.constant 0 : index
    %105 = vector.load %arg12[%c0_33, %c0_34] : memref<1x64xf32, #tpu.memory_space<vmem>>, vector<1x64xf32>
    %106 = vector.broadcast %105 : vector<1x64xf32> to vector<32x64xf32>
    %107 = arith.addf %104, %106 : vector<32x64xf32>
    %c0_35 = arith.constant 0 : index
    %c0_36 = arith.constant 0 : index
    %108 = vector.load %arg13[%c0_35, %c0_36] : memref<32x64xf32, #tpu.memory_space<vmem>>, vector<32x64xf32>
    tpu.vector_store %arg13[%c0_35, %c0_36], %107 {strides = array<i32>} : memref<32x64xf32, #tpu.memory_space<vmem>>, vector<32x64xf32>,
    return
  }
  func.func @transform_0(%arg0: i32, %arg1: memref<2xf32, #tpu.memory_space<smem>>) -> (i32, i32) {
    %c0_i32 = arith.constant 0 : i32
    %c0_i32_0 = arith.constant 0 : i32
    return %arg0, %c0_i32 : i32, i32
  }
  func.func @transform_1(%arg0: i32, %arg1: memref<2xf32, #tpu.memory_space<smem>>) -> (i32, i32) {
    %c0_i32 = arith.constant 0 : i32
    %c0_i32_0 = arith.constant 0 : i32
    return %arg0, %c0_i32 : i32, i32
  }
  func.func @transform_2(%arg0: i32, %arg1: memref<2xf32, #tpu.memory_space<smem>>) -> (i32, i32) {
    %c0_i32 = arith.constant 0 : i32
    %c0_i32_0 = arith.constant 0 : i32
    return %arg0, %c0_i32 : i32, i32
  }
  func.func @transform_3(%arg0: i32, %arg1: memref<2xf32, #tpu.memory_space<smem>>) -> (i32, i32) {
    %c0_i32 = arith.constant 0 : i32
    %c0_i32_0 = arith.constant 0 : i32
    %c0_i32_1 = arith.constant 0 : i32
    return %c0_i32, %c0_i32_0 : i32, i32
  }
  func.func @transform_4(%arg0: i32, %arg1: memref<2xf32, #tpu.memory_space<smem>>) -> (i32, i32) {
    %c0_i32 = arith.constant 0 : i32
    %c0_i32_0 = arith.constant 0 : i32
    %c0_i32_1 = arith.constant 0 : i32
    return %c0_i32, %c0_i32_0 : i32, i32
  }
  func.func @transform_5(%arg0: i32, %arg1: memref<2xf32, #tpu.memory_space<smem>>) -> (i32, i32) {
    %c0_i32 = arith.constant 0 : i32
    %c0_i32_0 = arith.constant 0 : i32
    %c0_i32_1 = arith.constant 0 : i32
    return %c0_i32, %c0_i32_0 : i32, i32
  }
  func.func @transform_6(%arg0: i32, %arg1: memref<2xf32, #tpu.memory_space<smem>>) -> (i32, i32) {
    %c0_i32 = arith.constant 0 : i32
    %c0_i32_0 = arith.constant 0 : i32
    %c0_i32_1 = arith.constant 0 : i32
    return %c0_i32, %c0_i32_0 : i32, i32
  }
  func.func @transform_7(%arg0: i32, %arg1: memref<2xf32, #tpu.memory_space<smem>>) -> (i32, i32) {
    %c0_i32 = arith.constant 0 : i32
    %c0_i32_0 = arith.constant 0 : i32
    %c0_i32_1 = arith.constant 0 : i32
    return %c0_i32, %c0_i32_0 : i32, i32
  }
  func.func @transform_8(%arg0: i32, %arg1: memref<2xf32, #tpu.memory_space<smem>>) -> (i32, i32) {
    %c0_i32 = arith.constant 0 : i32
    %c0_i32_0 = arith.constant 0 : i32
    %c0_i32_1 = arith.constant 0 : i32
    return %c0_i32, %c0_i32_0 : i32, i32
  }
  func.func @transform_9(%arg0: i32, %arg1: memref<2xf32, #tpu.memory_space<smem>>) -> (i32, i32) {
    %c0_i32 = arith.constant 0 : i32
    %c0_i32_0 = arith.constant 0 : i32
    %c0_i32_1 = arith.constant 0 : i32
    return %c0_i32, %c0_i32_0 : i32, i32
  }
  func.func @transform_10(%arg0: i32, %arg1: memref<2xf32, #tpu.memory_space<smem>>) -> (i32, i32) {
    %c0_i32 = arith.constant 0 : i32
    %c0_i32_0 = arith.constant 0 : i32
    %c0_i32_1 = arith.constant 0 : i32
    return %c0_i32, %c0_i32_0 : i32, i32
  }
  func.func @transform_11(%arg0: i32, %arg1: memref<2xf32, #tpu.memory_space<smem>>) -> (i32, i32) {
    %c0_i32 = arith.constant 0 : i32
    %c0_i32_0 = arith.constant 0 : i32
    return %arg0, %c0_i32 : i32, i32
  }
}

</mosaic_0001>

<llo_original>
// kernel: tpu_custom_call.1
$region0: #{tpu_custom_call.1}
  #allocation0 [shape = 'u32[]', space=smem, size = 0x4, offset = 0x4, fixed_abs, tag = 'smem constant byte address 0x4 - core index']
  #allocation1 [shape = 'u32[144,128]{1,0:T(1,128)}', space=vmem, size = 0x12000, scoped, tag = 'internal scratch']
  #allocation2 [shape = 's32[1]{0}', space=sflag, size = 0x4, scoped, tag = 'scoped memory for tpu_custom_call.1']
  #allocation3 [shape = 'u8[512]{0}', space=smem, size = 0x200, scoped, tag = 'prefetched SMEM operand 0']
  %s0 = inlined_call_operand.hbm [shape: f32[2], index: 0, kind: input, shape index: {}]
  %s1 = inlined_call_operand.hbm [shape: f32[64,64], index: 1, kind: input, shape index: {}]
  %s2 = inlined_call_operand.hbm [shape: f32[64,64], index: 2, kind: input, shape index: {}]
  %s3 = inlined_call_operand.hbm [shape: f32[64,64], index: 3, kind: input, shape index: {}]
  %s4 = inlined_call_operand.hbm [shape: f32[64,64], index: 4, kind: input, shape index: {}]
  %s5 = inlined_call_operand.vmem [shape: f32[1,64], index: 5, kind: input, shape index: {}]
  %s6 = inlined_call_operand.hbm [shape: f32[64,64], index: 6, kind: input, shape index: {}]
  %s7 = inlined_call_operand.vmem [shape: f32[1,64], index: 7, kind: input, shape index: {}]
  %s8 = inlined_call_operand.hbm [shape: f32[64,64], index: 8, kind: input, shape index: {}]
  %s9 = inlined_call_operand.vmem [shape: f32[1,64], index: 9, kind: input, shape index: {}]
  %s10 = inlined_call_operand.hbm [shape: f32[64,64], index: 10, kind: input, shape index: {}]
  %s11 = inlined_call_operand.vmem [shape: f32[1,64], index: 11, kind: input, shape index: {}]
  %s12 = inlined_call_operand.hbm [shape: f32[64,64], index: 12, kind: output, shape index: {}]
  %s13 = sld [smem:[#allocation0]]
  $region105: #{tpu_custom_call.1} parent=0
    _
  %s15 = ssub.s32 1, %s13
  %s16 = scalar_select 0, %s15, %s13
  %18 = dma.hbm_to_smem %s0, 16, [#allocation3], [#allocation2]
  %19 = dma.done [#allocation2], 16
  %20 = sfence
  $region1: #{tpu_custom_call.1} parent=0
    #allocation4 [shape = 'u8[32768]{0}', space=vmem, size = 0x8000, scoped, tag = 'input window, operand 1']
    #allocation5 [shape = 's32[2]{0}', space=sflag, size = 0x8, scoped, tag = 'scoped memory for tpu_custom_call.1']
    #allocation6 [shape = 's32[2]{0}', space=sflag, size = 0x8, scoped, tag = 'scoped memory for tpu_custom_call.1']
    #allocation7 [shape = 'u8[32768]{0}', space=vmem, size = 0x8000, scoped, tag = 'input window, operand 2']
    #allocation8 [shape = 's32[2]{0}', space=sflag, size = 0x8, scoped, tag = 'scoped memory for tpu_custom_call.1']
    #allocation9 [shape = 'u8[32768]{0}', space=vmem, size = 0x8000, scoped, tag = 'input window, operand 3']
    #allocation10 [shape = 'u8[32768]{0}', space=vmem, size = 0x8000, scoped, tag = 'input window, operand 4, single buffered']
    #allocation11 [shape = 's32[1]{0}', space=sflag, size = 0x4, scoped, tag = 'scoped memory for tpu_custom_call.1']
    #allocation12 [shape = 'u8[32768]{0}', space=vmem, size = 0x8000, scoped, tag = 'input window, operand 6, single buffered']
    #allocation13 [shape = 'u8[32768]{0}', space=vmem, size = 0x8000, scoped, tag = 'input window, operand 8, single buffered']
    #allocation14 [shape = 's32[1]{0}', space=sflag, size = 0x4, scoped, tag = 'scoped memory for tpu_custom_call.1']
    #allocation15 [shape = 'u8[32768]{0}', space=vmem, size = 0x8000, scoped, tag = 'input window, operand 10, single buffered']
    #allocation16 [shape = 'u8[32768]{0}', space=vmem, size = 0x8000, scoped, tag = 'output window, operand 0']
    %21 = vsyncpa [#allocation5], 0
    %s22 = scalar_lea.sflag [#allocation5], 1
    %23 = vsyncpa %s22, 0
    %24 = vsyncpa [#allocation8], 0
    %s25 = scalar_lea.sflag [#allocation8], 1
    %26 = vsyncpa %s25, 0
    %27 = vsyncpa [#allocation11], 0
    %28 = vsyncpa [#allocation14], 0
    %29 = vsyncpa [#allocation6], 0
    %s30 = scalar_lea.sflag [#allocation6], 1
    %31 = vsyncpa %s30, 0
    loop: start=0, step=1, limit=4
    $region2: #{tpu_custom_call.1} parent=1 // loop_pre_header
      _
    $region3: #{tpu_custom_call.1} parent=1 // loop_header
      %s33 = sphi 0, %s37
      %p34 = scmp.ge.s32.totalorder %s33, 4
      %s43 = sphi 0, %s45
      %s46 = sphi 0, %s43
      %s47 = sphi 0, %s46
      %s63 = sphi 0, %s47
      %s69 = sphi 0, %s71
      %s72 = sphi 0, %s69
      %s73 = sphi 0, %s72
      %s89 = sphi 0, %s73
      %s95 = sphi 0, %s97
      %s98 = sphi 0, %s95
      %s99 = sphi 0, %s98
      %s115 = sphi 0, %s99
      %s119 = sphi 0, %s119
      %s121 = sphi 0, %s119
      %s122 = sphi 0, %s121
      %s136 = sphi 0, %s122
      %s140 = sphi 0, %s140
      %s142 = sphi 0, %s140
      %s143 = sphi 0, %s142
      %s157 = sphi 0, %s143
      %s161 = sphi 0, %s161
      %s163 = sphi 0, %s161
      %s164 = sphi 0, %s163
      %s178 = sphi 0, %s164
      %s182 = sphi 0, %s182
      %s184 = sphi 0, %s182
      %s185 = sphi 0, %s184
      %s199 = sphi 0, %s185
      %s203 = sphi 0, %s203
      %s205 = sphi 0, %s203
      %s206 = sphi 0, %s205
      %s220 = sphi 0, %s206
      %s224 = sphi 0, %s224
      %s226 = sphi 0, %s224
      %s227 = sphi 0, %s226
      %s241 = sphi 0, %s227
      %s245 = sphi 0, %s245
      %s247 = sphi 0, %s245
      %s248 = sphi 0, %s247
      %s262 = sphi 0, %s248
      %s266 = sphi 0, %s266
      %s268 = sphi 0, %s266
      %s269 = sphi 0, %s268
      %s283 = sphi 0, %s269
      %s289 = sphi 0, %s291
      %s292 = sphi 0, %s289
      %s293 = sphi 0, %s292
      %s309 = sphi 0, %s293
    $region4: #{tpu_custom_call.1} parent=1 // loop_header_branch
      %36 = sbr.rel (%p34) target = $region8
    $region5: #{tpu_custom_call.1} parent=1 // loop_body
      %s38 = ssub.s32 %s33, 1
      %s39 = ssub.s32 %s33, 2
      %s40 = sadd.s32 %s33, 1
      %s41 = ssub.s32 %s33, %s40
      %p42 = scmp.eq.s32.totalorder %s41, 0
      %s44 = sadd.s32 %s43, 1
      %s45 = scalar_select %p42, %s43, %s44
      %p48 = pneg %p42
      %p49 = scmp.eq.s32.totalorder %s33, 1
      %p50 = por %p48, %p49
      %p51 = scmp.ne.s32.totalorder %s43, %s46
      %p52 = scmp.eq.s32.totalorder %s33, 0
      %p53 = por %p51, %p52
      %p54 = scmp.ne.s32.totalorder %s43, %s46
      %p55 = scmp.eq.s32.totalorder %s38, 1
      %p56 = por %p54, %p55
      %p57 = scmp.ne.s32.totalorder %s46, %s47
      %p58 = scmp.eq.s32.totalorder %s38, 0
      %p59 = por %p57, %p58
      %p60 = scmp.ne.s32.totalorder %s46, %s47
      %p61 = scmp.eq.s32.totalorder %s39, 1
      %p62 = por %p60, %p61
      %p64 = scmp.ne.s32.totalorder %s47, %s63
      %p65 = scmp.eq.s32.totalorder %s39, 0
      %p66 = por %p64, %p65
      %s67 = ssub.s32 %s33, %s40
      %p68 = scmp.eq.s32.totalorder %s67, 0
      %s70 = sadd.s32 %s69, 1
      %s71 = scalar_select %p68, %s69, %s70
      %p74 = pneg %p68
      %p75 = scmp.eq.s32.totalorder %s33, 1
      %p76 = por %p74, %p75
      %p77 = scmp.ne.s32.totalorder %s69, %s72
      %p78 = scmp.eq.s32.totalorder %s33, 0
      %p79 = por %p77, %p78
      %p80 = scmp.ne.s32.totalorder %s69, %s72
      %p81 = scmp.eq.s32.totalorder %s38, 1
      %p82 = por %p80, %p81
      %p83 = scmp.ne.s32.totalorder %s72, %s73
      %p84 = scmp.eq.s32.totalorder %s38, 0
      %p85 = por %p83, %p84
      %p86 = scmp.ne.s32.totalorder %s72, %s73
      %p87 = scmp.eq.s32.totalorder %s39, 1
      %p88 = por %p86, %p87
      %p90 = scmp.ne.s32.totalorder %s73, %s89
      %p91 = scmp.eq.s32.totalorder %s39, 0
      %p92 = por %p90, %p91
      %s93 = ssub.s32 %s33, %s40
      %p94 = scmp.eq.s32.totalorder %s93, 0
      %s96 = sadd.s32 %s95, 1
      %s97 = scalar_select %p94, %s95, %s96
      %p100 = pneg %p94
      %p101 = scmp.eq.s32.totalorder %s33, 1
      %p102 = por %p100, %p101
      %p103 = scmp.ne.s32.totalorder %s95, %s98
      %p104 = scmp.eq.s32.totalorder %s33, 0
      %p105 = por %p103, %p104
      %p106 = scmp.ne.s32.totalorder %s95, %s98
      %p107 = scmp.eq.s32.totalorder %s38, 1
      %p108 = por %p106, %p107
      %p109 = scmp.ne.s32.totalorder %s98, %s99
      %p110 = scmp.eq.s32.totalorder %s38, 0
      %p111 = por %p109, %p110
      %p112 = scmp.ne.s32.totalorder %s98, %s99
      %p113 = scmp.eq.s32.totalorder %s39, 1
      %p114 = por %p112, %p113
      %p116 = scmp.ne.s32.totalorder %s99, %s115
      %p117 = scmp.eq.s32.totalorder %s39, 0
      %p118 = por %p116, %p117
      %s120 = sadd.s32 %s119, 1
      %p123 = scmp.eq.s32.totalorder %s33, 1
      %p124 = scmp.ne.s32.totalorder %s119, %s121
      %p125 = scmp.eq.s32.totalorder %s33, 0
      %p126 = por %p124, %p125
      %p127 = scmp.ne.s32.totalorder %s119, %s121
      %p128 = scmp.eq.s32.totalorder %s38, 1
      %p129 = por %p127, %p128
      %p130 = scmp.ne.s32.totalorder %s121, %s122
      %p131 = scmp.eq.s32.totalorder %s38, 0
      %p132 = por %p130, %p131
      %p133 = scmp.ne.s32.totalorder %s121, %s122
      %p134 = scmp.eq.s32.totalorder %s39, 1
      %p135 = por %p133, %p134
      %p137 = scmp.ne.s32.totalorder %s122, %s136
      %p138 = scmp.eq.s32.totalorder %s39, 0
      %p139 = por %p137, %p138
      %s141 = sadd.s32 %s140, 1
      %p144 = scmp.eq.s32.totalorder %s33, 1
      %p145 = scmp.ne.s32.totalorder %s140, %s142
      %p146 = scmp.eq.s32.totalorder %s33, 0
      %p147 = por %p145, %p146
      %p148 = scmp.ne.s32.totalorder %s140, %s142
      %p149 = scmp.eq.s32.totalorder %s38, 1
      %p150 = por %p148, %p149
      %p151 = scmp.ne.s32.totalorder %s142, %s143
      %p152 = scmp.eq.s32.totalorder %s38, 0
      %p153 = por %p151, %p152
      %p154 = scmp.ne.s32.totalorder %s142, %s143
      %p155 = scmp.eq.s32.totalorder %s39, 1
      %p156 = por %p154, %p155
      %p158 = scmp.ne.s32.totalorder %s143, %s157
      %p159 = scmp.eq.s32.totalorder %s39, 0
      %p160 = por %p158, %p159
      %s162 = sadd.s32 %s161, 1
      %p165 = scmp.eq.s32.totalorder %s33, 1
      %p166 = scmp.ne.s32.totalorder %s161, %s163
      %p167 = scmp.eq.s32.totalorder %s33, 0
      %p168 = por %p166, %p167
      %p169 = scmp.ne.s32.totalorder %s161, %s163
      %p170 = scmp.eq.s32.totalorder %s38, 1
      %p171 = por %p169, %p170
      %p172 = scmp.ne.s32.totalorder %s163, %s164
      %p173 = scmp.eq.s32.totalorder %s38, 0
      %p174 = por %p172, %p173
      %p175 = scmp.ne.s32.totalorder %s163, %s164
      %p176 = scmp.eq.s32.totalorder %s39, 1
      %p177 = por %p175, %p176
      %p179 = scmp.ne.s32.totalorder %s164, %s178
      %p180 = scmp.eq.s32.totalorder %s39, 0
      %p181 = por %p179, %p180
      %s183 = sadd.s32 %s182, 1
      %p186 = scmp.eq.s32.totalorder %s33, 1
      %p187 = scmp.ne.s32.totalorder %s182, %s184
      %p188 = scmp.eq.s32.totalorder %s33, 0
      %p189 = por %p187, %p188
      %p190 = scmp.ne.s32.totalorder %s182, %s184
      %p191 = scmp.eq.s32.totalorder %s38, 1
      %p192 = por %p190, %p191
      %p193 = scmp.ne.s32.totalorder %s184, %s185
      %p194 = scmp.eq.s32.totalorder %s38, 0
      %p195 = por %p193, %p194
      %p196 = scmp.ne.s32.totalorder %s184, %s185
      %p197 = scmp.eq.s32.totalorder %s39, 1
      %p198 = por %p196, %p197
      %p200 = scmp.ne.s32.totalorder %s185, %s199
      %p201 = scmp.eq.s32.totalorder %s39, 0
      %p202 = por %p200, %p201
      %s204 = sadd.s32 %s203, 1
      %p207 = scmp.eq.s32.totalorder %s33, 1
      %p208 = scmp.ne.s32.totalorder %s203, %s205
      %p209 = scmp.eq.s32.totalorder %s33, 0
      %p210 = por %p208, %p209
      %p211 = scmp.ne.s32.totalorder %s203, %s205
      %p212 = scmp.eq.s32.totalorder %s38, 1
      %p213 = por %p211, %p212
      %p214 = scmp.ne.s32.totalorder %s205, %s206
      %p215 = scmp.eq.s32.totalorder %s38, 0
      %p216 = por %p214, %p215
      %p217 = scmp.ne.s32.totalorder %s205, %s206
      %p218 = scmp.eq.s32.totalorder %s39, 1
      %p219 = por %p217, %p218
      %p221 = scmp.ne.s32.totalorder %s206, %s220
      %p222 = scmp.eq.s32.totalorder %s39, 0
      %p223 = por %p221, %p222
      %s225 = sadd.s32 %s224, 1
      %p228 = scmp.eq.s32.totalorder %s33, 1
      %p229 = scmp.ne.s32.totalorder %s224, %s226
      %p230 = scmp.eq.s32.totalorder %s33, 0
      %p231 = por %p229, %p230
      %p232 = scmp.ne.s32.totalorder %s224, %s226
      %p233 = scmp.eq.s32.totalorder %s38, 1
      %p234 = por %p232, %p233
      %p235 = scmp.ne.s32.totalorder %s226, %s227
      %p236 = scmp.eq.s32.totalorder %s38, 0
      %p237 = por %p235, %p236
      %p238 = scmp.ne.s32.totalorder %s226, %s227
      %p239 = scmp.eq.s32.totalorder %s39, 1
      %p240 = por %p238, %p239
      %p242 = scmp.ne.s32.totalorder %s227, %s241
      %p243 = scmp.eq.s32.totalorder %s39, 0
      %p244 = por %p242, %p243
      %s246 = sadd.s32 %s245, 1
      %p249 = scmp.eq.s32.totalorder %s33, 1
      %p250 = scmp.ne.s32.totalorder %s245, %s247
      %p251 = scmp.eq.s32.totalorder %s33, 0
      %p252 = por %p250, %p251
      %p253 = scmp.ne.s32.totalorder %s245, %s247
      %p254 = scmp.eq.s32.totalorder %s38, 1
      %p255 = por %p253, %p254
      %p256 = scmp.ne.s32.totalorder %s247, %s248
      %p257 = scmp.eq.s32.totalorder %s38, 0
      %p258 = por %p256, %p257
      %p259 = scmp.ne.s32.totalorder %s247, %s248
      %p260 = scmp.eq.s32.totalorder %s39, 1
      %p261 = por %p259, %p260
      %p263 = scmp.ne.s32.totalorder %s248, %s262
      %p264 = scmp.eq.s32.totalorder %s39, 0
      %p265 = por %p263, %p264
      %s267 = sadd.s32 %s266, 1
      %p270 = scmp.eq.s32.totalorder %s33, 1
      %p271 = scmp.ne.s32.totalorder %s266, %s268
      %p272 = scmp.eq.s32.totalorder %s33, 0
      %p273 = por %p271, %p272
      %p274 = scmp.ne.s32.totalorder %s266, %s268
      %p275 = scmp.eq.s32.totalorder %s38, 1
      %p276 = por %p274, %p275
      %p277 = scmp.ne.s32.totalorder %s268, %s269
      %p278 = scmp.eq.s32.totalorder %s38, 0
      %p279 = por %p277, %p278
      %p280 = scmp.ne.s32.totalorder %s268, %s269
      %p281 = scmp.eq.s32.totalorder %s39, 1
      %p282 = por %p280, %p281
      %p284 = scmp.ne.s32.totalorder %s269, %s283
      %p285 = scmp.eq.s32.totalorder %s39, 0
      %p286 = por %p284, %p285
      %s287 = ssub.s32 %s33, %s40
      %p288 = scmp.eq.s32.totalorder %s287, 0
      %s290 = sadd.s32 %s289, 1
      %s291 = scalar_select %p288, %s289, %s290
      %p294 = pneg %p288
      %p295 = scmp.eq.s32.totalorder %s33, 1
      %p296 = por %p294, %p295
      %p297 = scmp.ne.s32.totalorder %s289, %s292
      %p298 = scmp.eq.s32.totalorder %s33, 0
      %p299 = por %p297, %p298
      %p300 = scmp.ne.s32.totalorder %s289, %s292
      %p301 = scmp.eq.s32.totalorder %s38, 1
      %p302 = por %p300, %p301
      %p303 = scmp.ne.s32.totalorder %s292, %s293
      %p304 = scmp.eq.s32.totalorder %s38, 0
      %p305 = por %p303, %p304
      %p306 = scmp.ne.s32.totalorder %s292, %s293
      %p307 = scmp.eq.s32.totalorder %s39, 1
      %p308 = por %p306, %p307
      %p310 = scmp.ne.s32.totalorder %s293, %s309
      %p311 = scmp.eq.s32.totalorder %s39, 0
      %p312 = por %p310, %p311
      %p313 = scmp.le.s32.totalorder 1, %s33
      %p314 = scmp.lt.s32.totalorder %s33, 3
      %p315 = pnand %p313, %p314
      %p316 = pneg %p315
      // Predicated region
      $region9: #{tpu_custom_call.1} parent=5 // pred_check
        _
      $region10: #{tpu_custom_call.1} parent=5 // pred_check_branch
        %318 = sbr.rel (%p315) target = $region12
      $region11: #{tpu_custom_call.1} parent=5 // pred_region
        %s319 = ssub.s32 %s33, 1
        // Predicated region
        $region13: #{tpu_custom_call.1} parent=11 // pred_check
          %p320 = pneg %p132
        $region14: #{tpu_custom_call.1} parent=11 // pred_check_branch
          %322 = sbr.rel (%p320) target = $region16
        $region15: #{tpu_custom_call.1} parent=11 // pred_region
          %s324 = ssub.s32 1024, 1024
          %325 = vsyncadd [#allocation11], %s324
          %s326 = sshll.u32 [#allocation10], 4
          %s327 = int_to_ptr.vmem [resolvable:$true] %s326
          %332 = dma.hbm_to_vmem [thread:$0]  %s4, 1024, %s327, [#allocation11], 128, 128, 8
        $region16: #{tpu_custom_call.1} parent=11 // pred_fallthru
          _
        // Predicated region
        $region17: #{tpu_custom_call.1} parent=11 // pred_check
          %p333 = pneg %p153
        $region18: #{tpu_custom_call.1} parent=11 // pred_check_branch
          %335 = sbr.rel (%p333) target = $region20
        $region19: #{tpu_custom_call.1} parent=11 // pred_region
          _
        $region20: #{tpu_custom_call.1} parent=11 // pred_fallthru
          _
        // Predicated region
        $region21: #{tpu_custom_call.1} parent=11 // pred_check
          %p336 = pneg %p174
        $region22: #{tpu_custom_call.1} parent=11 // pred_check_branch
          %338 = sbr.rel (%p336) target = $region24
        $region23: #{tpu_custom_call.1} parent=11 // pred_region
          %s340 = ssub.s32 1024, 1024
          %341 = vsyncadd [#allocation11], %s340
          %s342 = sshll.u32 [#allocation12], 4
          %s343 = int_to_ptr.vmem [resolvable:$true] %s342
          %348 = dma.hbm_to_vmem [thread:$0]  %s6, 1024, %s343, [#allocation11], 128, 128, 8
        $region24: #{tpu_custom_call.1} parent=11 // pred_fallthru
          _
        // Predicated region
        $region25: #{tpu_custom_call.1} parent=11 // pred_check
          %p349 = pneg %p195
        $region26: #{tpu_custom_call.1} parent=11 // pred_check_branch
          %351 = sbr.rel (%p349) target = $region28
        $region27: #{tpu_custom_call.1} parent=11 // pred_region
          _
        $region28: #{tpu_custom_call.1} parent=11 // pred_fallthru
          _
        // Predicated region
        $region29: #{tpu_custom_call.1} parent=11 // pred_check
          %p352 = pneg %p216
        $region30: #{tpu_custom_call.1} parent=11 // pred_check_branch
          %354 = sbr.rel (%p352) target = $region32
        $region31: #{tpu_custom_call.1} parent=11 // pred_region
          %s356 = ssub.s32 1024, 1024
          %357 = vsyncadd [#allocation14], %s356
          %s358 = sshll.u32 [#allocation13], 4
          %s359 = int_to_ptr.vmem [resolvable:$true] %s358
          %364 = dma.hbm_to_vmem [thread:$0]  %s8, 1024, %s359, [#allocation14], 128, 128, 8
        $region32: #{tpu_custom_call.1} parent=11 // pred_fallthru
          _
        // Predicated region
        $region33: #{tpu_custom_call.1} parent=11 // pred_check
          %p365 = pneg %p237
        $region34: #{tpu_custom_call.1} parent=11 // pred_check_branch
          %367 = sbr.rel (%p365) target = $region36
        $region35: #{tpu_custom_call.1} parent=11 // pred_region
          _
        $region36: #{tpu_custom_call.1} parent=11 // pred_fallthru
          _
        // Predicated region
        $region37: #{tpu_custom_call.1} parent=11 // pred_check
          %p368 = pneg %p258
        $region38: #{tpu_custom_call.1} parent=11 // pred_check_branch
          %370 = sbr.rel (%p368) target = $region40
        $region39: #{tpu_custom_call.1} parent=11 // pred_region
          %s372 = ssub.s32 1024, 1024
          %373 = vsyncadd [#allocation14], %s372
          %s374 = sshll.u32 [#allocation15], 4
          %s375 = int_to_ptr.vmem [resolvable:$true] %s374
          %380 = dma.hbm_to_vmem [thread:$0]  %s10, 1024, %s375, [#allocation14], 128, 128, 8
        $region40: #{tpu_custom_call.1} parent=11 // pred_fallthru
          _
        // Predicated region
        $region41: #{tpu_custom_call.1} parent=11 // pred_check
          %p381 = pneg %p279
        $region42: #{tpu_custom_call.1} parent=11 // pred_check_branch
          %383 = sbr.rel (%p381) target = $region44
        $region43: #{tpu_custom_call.1} parent=11 // pred_region
          _
        $region44: #{tpu_custom_call.1} parent=11 // pred_fallthru
          _
      $region12: #{tpu_custom_call.1} parent=5 // pred_fallthru
        _
      %p384 = scmp.lt.s32.totalorder %s33, 2
      // Predicated region
      $region45: #{tpu_custom_call.1} parent=5 // pred_check
        %p385 = pneg %p384
      $region46: #{tpu_custom_call.1} parent=5 // pred_check_branch
        %387 = sbr.rel (%p385) target = $region48
      $region47: #{tpu_custom_call.1} parent=5 // pred_region
        // Predicated region
        $region49: #{tpu_custom_call.1} parent=47 // pred_check
          %p388 = pneg %p53
        $region50: #{tpu_custom_call.1} parent=47 // pred_check_branch
          %390 = sbr.rel (%p388) target = $region52
        $region51: #{tpu_custom_call.1} parent=47 // pred_region
          %s391 = sand.u32 %s43, 1
          %s392 = scalar_lea.sflag [#allocation5], %s391
          %s393 = sand.u32 %s43, 1
          %s394 = smul.addr %s393, 32
          %s395 = scalar_lea.vmem [#allocation4], %s394
          %s396 = smul.u32 4, %s33
          %s398 = ssub.s32 512, 512
          %399 = vsyncadd %s392, %s398
          %s400 = smul.addr %s396, 128
          %s401 = scalar_lea.hbm %s1, %s400
          %s402 = sshll.u32 %s395, 4
          %s403 = int_to_ptr.vmem [resolvable:$true] %s402
          %408 = dma.hbm_to_vmem [thread:$0]  %s401, 512, %s403, %s392, 128, 128, 8
        $region52: #{tpu_custom_call.1} parent=47 // pred_fallthru
          _
        // Predicated region
        $region53: #{tpu_custom_call.1} parent=47 // pred_check
          %p409 = pneg %p79
        $region54: #{tpu_custom_call.1} parent=47 // pred_check_branch
          %411 = sbr.rel (%p409) target = $region56
        $region55: #{tpu_custom_call.1} parent=47 // pred_region
          %s412 = sand.u32 %s33, 1
          %s413 = scalar_lea.sflag [#allocation8], %s412
          %s414 = sand.u32 %s69, 1
          %s415 = smul.addr %s414, 32
          %s416 = scalar_lea.vmem [#allocation7], %s415
          %s417 = smul.u32 4, %s33
          %s419 = ssub.s32 512, 512
          %420 = vsyncadd %s413, %s419
          %s421 = smul.addr %s417, 128
          %s422 = scalar_lea.hbm %s2, %s421
          %s423 = sshll.u32 %s416, 4
          %s424 = int_to_ptr.vmem [resolvable:$true] %s423
          %429 = dma.hbm_to_vmem [thread:$0]  %s422, 512, %s424, %s413, 128, 128, 8
        $region56: #{tpu_custom_call.1} parent=47 // pred_fallthru
          _
        // Predicated region
        $region57: #{tpu_custom_call.1} parent=47 // pred_check
          %p430 = pneg %p105
        $region58: #{tpu_custom_call.1} parent=47 // pred_check_branch
          %432 = sbr.rel (%p430) target = $region60
        $region59: #{tpu_custom_call.1} parent=47 // pred_region
          %s433 = sand.u32 %s33, 1
          %s434 = scalar_lea.sflag [#allocation8], %s433
          %s435 = sand.u32 %s95, 1
          %s436 = smul.addr %s435, 32
          %s437 = scalar_lea.vmem [#allocation9], %s436
          %s438 = smul.u32 4, %s33
          %s440 = ssub.s32 512, 512
          %441 = vsyncadd %s434, %s440
          %s442 = smul.addr %s438, 128
          %s443 = scalar_lea.hbm %s3, %s442
          %s444 = sshll.u32 %s437, 4
          %s445 = int_to_ptr.vmem [resolvable:$true] %s444
          %450 = dma.hbm_to_vmem [thread:$0]  %s443, 512, %s445, %s434, 128, 128, 8
        $region60: #{tpu_custom_call.1} parent=47 // pred_fallthru
          _
      $region48: #{tpu_custom_call.1} parent=5 // pred_fallthru
        _
      %p451 = scmp.le.s32.totalorder 1, %s33
      %p452 = scmp.lt.s32.totalorder %s33, 3
      %p453 = pnand %p451, %p452
      %p454 = pneg %p453
      // Predicated region
      $region61: #{tpu_custom_call.1} parent=5 // pred_check
        _
      $region62: #{tpu_custom_call.1} parent=5 // pred_check_branch
        %456 = sbr.rel (%p453) target = $region64
      $region63: #{tpu_custom_call.1} parent=5 // pred_region
        %s457 = ssub.s32 %s33, 1
        %s458 = sand.u32 %s46, 1
        %s459 = scalar_lea.sflag [#allocation5], %s458
        %s460 = sand.u32 %s46, 1
        %s461 = smul.addr %s460, 32
        %s462 = scalar_lea.vmem [#allocation4], %s461
        // Predicated region
        $region65: #{tpu_custom_call.1} parent=63 // pred_check
          %p463 = pneg %p59
        $region66: #{tpu_custom_call.1} parent=63 // pred_check_branch
          %465 = sbr.rel (%p463) target = $region68
        $region67: #{tpu_custom_call.1} parent=63 // pred_region
          %466 = dma.done %s459, 512
        $region68: #{tpu_custom_call.1} parent=63 // pred_fallthru
          _
        %s467 = sand.u32 %s38, 1
        %s468 = scalar_lea.sflag [#allocation8], %s467
        %s469 = sand.u32 %s72, 1
        %s470 = smul.addr %s469, 32
        %s471 = scalar_lea.vmem [#allocation7], %s470
        // Predicated region
        $region69: #{tpu_custom_call.1} parent=63 // pred_check
          %p472 = pneg %p85
        $region70: #{tpu_custom_call.1} parent=63 // pred_check_branch
          %474 = sbr.rel (%p472) target = $region72
        $region71: #{tpu_custom_call.1} parent=63 // pred_region
          %475 = dma.done %s468, 512
        $region72: #{tpu_custom_call.1} parent=63 // pred_fallthru
          _
        %s476 = sand.u32 %s38, 1
        %s477 = scalar_lea.sflag [#allocation8], %s476
        %s478 = sand.u32 %s98, 1
        %s479 = smul.addr %s478, 32
        %s480 = scalar_lea.vmem [#allocation9], %s479
        // Predicated region
        $region73: #{tpu_custom_call.1} parent=63 // pred_check
          %p481 = pneg %p111
        $region74: #{tpu_custom_call.1} parent=63 // pred_check_branch
          %483 = sbr.rel (%p481) target = $region76
        $region75: #{tpu_custom_call.1} parent=63 // pred_region
          %484 = dma.done %s477, 512
        $region76: #{tpu_custom_call.1} parent=63 // pred_fallthru
          _
        // Predicated region
        $region77: #{tpu_custom_call.1} parent=63 // pred_check
          %p485 = pneg %p132
        $region78: #{tpu_custom_call.1} parent=63 // pred_check_branch
          %487 = sbr.rel (%p485) target = $region80
        $region79: #{tpu_custom_call.1} parent=63 // pred_region
          %488 = dma.done [#allocation11], 1024
        $region80: #{tpu_custom_call.1} parent=63 // pred_fallthru
          _
        // Predicated region
        $region81: #{tpu_custom_call.1} parent=63 // pred_check
          %p489 = pneg %p174
        $region82: #{tpu_custom_call.1} parent=63 // pred_check_branch
          %491 = sbr.rel (%p489) target = $region84
        $region83: #{tpu_custom_call.1} parent=63 // pred_region
          %492 = dma.done [#allocation11], 1024
        $region84: #{tpu_custom_call.1} parent=63 // pred_fallthru
          _
        // Predicated region
        $region85: #{tpu_custom_call.1} parent=63 // pred_check
          %p493 = pneg %p216
        $region86: #{tpu_custom_call.1} parent=63 // pred_check_branch
          %495 = sbr.rel (%p493) target = $region88
        $region87: #{tpu_custom_call.1} parent=63 // pred_region
          %496 = dma.done [#allocation14], 1024
        $region88: #{tpu_custom_call.1} parent=63 // pred_fallthru
          _
        // Predicated region
        $region89: #{tpu_custom_call.1} parent=63 // pred_check
          %p497 = pneg %p258
        $region90: #{tpu_custom_call.1} parent=63 // pred_check_branch
          %499 = sbr.rel (%p497) target = $region92
        $region91: #{tpu_custom_call.1} parent=63 // pred_region
          %500 = dma.done [#allocation14], 1024
        $region92: #{tpu_custom_call.1} parent=63 // pred_fallthru
          _
        %s501 = sand.u32 %s46, 1
        %s502 = scalar_lea.sflag [#allocation5], %s501
        %s503 = sand.u32 %s46, 1
        %s504 = smul.addr %s503, 32
        %s505 = scalar_lea.vmem [#allocation4], %s504
        %p506 = pneg %p59
        %p507 = pneg %p56
        %s508 = sand.u32 %s38, 1
        %s509 = scalar_lea.sflag [#allocation8], %s508
        %s510 = sand.u32 %s72, 1
        %s511 = smul.addr %s510, 32
        %s512 = scalar_lea.vmem [#allocation7], %s511
        %p513 = pneg %p85
        %p514 = pneg %p82
        %s515 = sand.u32 %s38, 1
        %s516 = scalar_lea.sflag [#allocation8], %s515
        %s517 = sand.u32 %s98, 1
        %s518 = smul.addr %s517, 32
        %s519 = scalar_lea.vmem [#allocation9], %s518
        %p520 = pneg %p111
        %p521 = pneg %p108
        %p522 = pneg %p132
        %p523 = pneg %p129
        %p524 = pneg %p153
        %p525 = pneg %p150
        %p526 = pneg %p174
        %p527 = pneg %p171
        %p528 = pneg %p195
        %p529 = pneg %p192
        %p530 = pneg %p216
        %p531 = pneg %p213
        %p532 = pneg %p237
        %p533 = pneg %p234
        %p534 = pneg %p258
        %p535 = pneg %p255
        %p536 = pneg %p279
        %p537 = pneg %p276
        %p538 = pneg %p305
        %p539 = pneg %p302
        %s540 = sand.u32 %s292, 1
        %s541 = scalar_lea.sflag [#allocation6], %s540
        %s542 = sand.u32 %s292, 1
        %s543 = smul.addr %s542, 32
        %s544 = scalar_lea.vmem [#allocation16], %s543
        %s545 = smul.u32 4, %s38
        %s546 = smul.u32 4, %s38
        %s547 = smul.u32 4, %s38
        %s548 = smul.u32 4, %s38
        %s549 = sld [smem:[#allocation3]]
        %s550 = sld [smem:[#allocation3 + $0x1]]
        %v551 = vld [vmem:[%s462] sm:$0xff]
        %v552 = vld [vmem:[%s462 + $0x8] sm:$0xff]
        %v553 = vld [vmem:[%s462 + $0x10] sm:$0xff]
        %v554 = vld [vmem:[%s462 + $0x18] sm:$0xff]
        %v555 = vld [vmem:[#allocation10] sm:$0xff]
        %v556 = vld [vmem:[#allocation10 + $0x8] sm:$0xff]
        %v557 = vld [vmem:[#allocation10 + $0x10] sm:$0xff]
        %v558 = vld [vmem:[#allocation10 + $0x18] sm:$0xff]
        %v559 = vld [vmem:[#allocation10 + $0x20] sm:$0xff]
        %v560 = vld [vmem:[#allocation10 + $0x28] sm:$0xff]
        %v561 = vld [vmem:[#allocation10 + $0x30] sm:$0xff]
        %v562 = vld [vmem:[#allocation10 + $0x38] sm:$0xff]
        %v563 = vld [vmem:[%s5] sm:$0x1]
        %v565 = vlaneseq
        %v566 = vshrl.u32 %v565, 7
        %v567 = vsub.s32 0, %v566
        %v568 = vrot.slane %v563, %v567
        %vm570 = vcmask 523264
        %v572 = vsel %vm570, %v551, 0
        %v575 = vsel %vm570, %v552, 0
        %v578 = vsel %vm570, %v553, 0
        %v581 = vsel %vm570, %v554, 0
        %583 = vmatprep.subr.mxu0 0.0
        %584 = vmatpush1.msra.mxu0 %v555
        %585 = vmatprep.subr.mxu0 0.0
        %586 = vmatpush1.msra.mxu0 %v556
        %587 = vmatprep.subr.mxu0 0.0
        %588 = vmatpush1.msra.mxu0 %v557
        %589 = vmatprep.subr.mxu0 0.0
        %590 = vmatpush1.msra.mxu0 %v558
        %591 = vmatprep.subr.mxu0 0.0
        %592 = vmatpush1.msra.mxu0 %v559
        %593 = vmatprep.subr.mxu0 0.0
        %594 = vmatpush1.msra.mxu0 %v560
        %595 = vmatprep.subr.mxu0 0.0
        %596 = vmatpush1.msra.mxu0 %v561
        %597 = vmatprep.subr.mxu0 0.0
        %598 = vmatpush1.msra.mxu0 %v562
        %599 = vmatprep.subr.mxu0 0.0
        %600 = vmatpush1.msra.mxu0 0.0
        %601 = vmatprep.subr.mxu0 0.0
        %602 = vmatpush1.msra.mxu0 0.0
        %603 = vmatprep.subr.mxu0 0.0
        %604 = vmatpush1.msra.mxu0 0.0
        %605 = vmatprep.subr.mxu0 0.0
        %606 = vmatpush1.msra.mxu0 0.0
        %607 = vmatprep.subr.mxu0 0.0
        %608 = vmatpush1.msra.mxu0 0.0
        %609 = vmatprep.subr.mxu0 0.0
        %610 = vmatpush1.msra.mxu0 0.0
        %611 = vmatprep.subr.mxu0 0.0
        %612 = vmatpush1.msra.mxu0 0.0
        %613 = vmatprep.subr.mxu0 0.0
        %614 = vmatpush1.msra.mxu0 0.0
        %615 = vmatprep.subr.mxu0 0.0
        %616 = vmatpush1.msra.mxu0 0.0
        %617 = vmatprep.subr.mxu0 0.0
        %618 = vmatpush1.msra.mxu0 0.0
        %619 = vmatprep.subr.mxu0 0.0
        %620 = vmatpush1.msra.mxu0 0.0
        %621 = vmatprep.subr.mxu0 0.0
        %622 = vmatpush1.msra.mxu0 0.0
        %623 = vmatprep.subr.mxu0 0.0
        %624 = vmatpush1.msra.mxu0 0.0
        %625 = vmatprep.subr.mxu0 0.0
        %626 = vmatpush1.msra.mxu0 0.0
        %627 = vmatprep.subr.mxu0 0.0
        %628 = vmatpush1.msra.mxu0 0.0
        %629 = vmatprep.subr.mxu0 0.0
        %630 = vmatpush1.msra.mxu0 0.0
        %631 = vmatprep.subr.mxu0 0.0
        %632 = vmatpush1.msra.mxu0 0.0
        %633 = vmatprep.subr.mxu0 0.0
        %634 = vmatpush1.msra.mxu0 0.0
        %635 = vmatprep.subr.mxu0 0.0
        %636 = vmatpush1.msra.mxu0 0.0
        %637 = vmatprep.subr.mxu0 0.0
        %638 = vmatpush1.msra.mxu0 0.0
        %639 = vmatprep.subr.mxu0 0.0
        %640 = vmatpush1.msra.mxu0 0.0
        %641 = vmatprep.subr.mxu0 0.0
        %642 = vmatpush1.msra.mxu0 0.0
        %643 = vmatprep.subr.mxu0 0.0
        %644 = vmatpush1.msra.mxu0 0.0
        %645 = vmatprep.subr.mxu0 0.0
        %646 = vmatpush1.msra.mxu0 0.0
        %647 = vmatprep.mubr.f32.mxu0 0.0
        %648 = vmatmul.mubr.f32.gmra.mrb[0].mxu0 %v572
        %v649 = vpop.f32.mrb[0].mxu0
        %v650 = vadd.f32 %v568, %v649
        %v651 = vpop.f32.mrb[0].mxu0
        %652 = vmatprep.mubr.f32.mxu0 0.0
        %653 = vmatmul.mubr.f32.gmra.mrb[0].mxu0 %v575
        %v654 = vpop.f32.mrb[0].mxu0
        %v655 = vadd.f32 %v568, %v654
        %v656 = vpop.f32.mrb[0].mxu0
        %657 = vmatprep.mubr.f32.mxu0 0.0
        %658 = vmatmul.mubr.f32.gmra.mrb[0].mxu0 %v578
        %v659 = vpop.f32.mrb[0].mxu0
        %v660 = vadd.f32 %v568, %v659
        %v661 = vpop.f32.mrb[0].mxu0
        %662 = vmatprep.mubr.f32.mxu0 0.0
        %663 = vmatmul.mubr.f32.gmra.mrb[0].mxu0 %v581
        %v664 = vpop.f32.mrb[0].mxu0
        %v665 = vadd.f32 %v568, %v664
        %v666 = vpop.f32.mrb[0].mxu0
        %667 = vdwg.mxu0
        %v668 = vld [vmem:[%s471] sm:$0xff]
        %v669 = vld [vmem:[%s471 + $0x8] sm:$0xff]
        %v670 = vld [vmem:[%s471 + $0x10] sm:$0xff]
        %v671 = vld [vmem:[%s471 + $0x18] sm:$0xff]
        %v672 = vld [vmem:[#allocation12] sm:$0xff]
        %v673 = vld [vmem:[#allocation12 + $0x8] sm:$0xff]
        %v674 = vld [vmem:[#allocation12 + $0x10] sm:$0xff]
        %v675 = vld [vmem:[#allocation12 + $0x18] sm:$0xff]
        %v676 = vld [vmem:[#allocation12 + $0x20] sm:$0xff]
        %v677 = vld [vmem:[#allocation12 + $0x28] sm:$0xff]
        %v678 = vld [vmem:[#allocation12 + $0x30] sm:$0xff]
        %v679 = vld [vmem:[#allocation12 + $0x38] sm:$0xff]
        %v680 = vld [vmem:[%s7] sm:$0x1]
        %v682 = vlaneseq
        %v683 = vshrl.u32 %v682, 7
        %v684 = vsub.s32 0, %v683
        %v685 = vrot.slane %v680, %v684
        %v688 = vsel %vm570, %v668, 0
        %v691 = vsel %vm570, %v669, 0
        %v694 = vsel %vm570, %v670, 0
        %v697 = vsel %vm570, %v671, 0
        %699 = vmatprep.subr.mxu0 0.0
        %700 = vmatpush1.msra.mxu0 %v672
        %701 = vmatprep.subr.mxu0 0.0
        %702 = vmatpush1.msra.mxu0 %v673
        %703 = vmatprep.subr.mxu0 0.0
        %704 = vmatpush1.msra.mxu0 %v674
        %705 = vmatprep.subr.mxu0 0.0
        %706 = vmatpush1.msra.mxu0 %v675
        %707 = vmatprep.subr.mxu0 0.0
        %708 = vmatpush1.msra.mxu0 %v676
        %709 = vmatprep.subr.mxu0 0.0
        %710 = vmatpush1.msra.mxu0 %v677
        %711 = vmatprep.subr.mxu0 0.0
        %712 = vmatpush1.msra.mxu0 %v678
        %713 = vmatprep.subr.mxu0 0.0
        %714 = vmatpush1.msra.mxu0 %v679
        %715 = vmatprep.subr.mxu0 0.0
        %716 = vmatpush1.msra.mxu0 0.0
        %717 = vmatprep.subr.mxu0 0.0
        %718 = vmatpush1.msra.mxu0 0.0
        %719 = vmatprep.subr.mxu0 0.0
        %720 = vmatpush1.msra.mxu0 0.0
        %721 = vmatprep.subr.mxu0 0.0
        %722 = vmatpush1.msra.mxu0 0.0
        %723 = vmatprep.subr.mxu0 0.0
        %724 = vmatpush1.msra.mxu0 0.0
        %725 = vmatprep.subr.mxu0 0.0
        %726 = vmatpush1.msra.mxu0 0.0
        %727 = vmatprep.subr.mxu0 0.0
        %728 = vmatpush1.msra.mxu0 0.0
        %729 = vmatprep.subr.mxu0 0.0
        %730 = vmatpush1.msra.mxu0 0.0
        %731 = vmatprep.subr.mxu0 0.0
        %732 = vmatpush1.msra.mxu0 0.0
        %733 = vmatprep.subr.mxu0 0.0
        %734 = vmatpush1.msra.mxu0 0.0
        %735 = vmatprep.subr.mxu0 0.0
        %736 = vmatpush1.msra.mxu0 0.0
        %737 = vmatprep.subr.mxu0 0.0
        %738 = vmatpush1.msra.mxu0 0.0
        %739 = vmatprep.subr.mxu0 0.0
        %740 = vmatpush1.msra.mxu0 0.0
        %741 = vmatprep.subr.mxu0 0.0
        %742 = vmatpush1.msra.mxu0 0.0
        %743 = vmatprep.subr.mxu0 0.0
        %744 = vmatpush1.msra.mxu0 0.0
        %745 = vmatprep.subr.mxu0 0.0
        %746 = vmatpush1.msra.mxu0 0.0
        %747 = vmatprep.subr.mxu0 0.0
        %748 = vmatpush1.msra.mxu0 0.0
        %749 = vmatprep.subr.mxu0 0.0
        %750 = vmatpush1.msra.mxu0 0.0
        %751 = vmatprep.subr.mxu0 0.0
        %752 = vmatpush1.msra.mxu0 0.0
        %753 = vmatprep.subr.mxu0 0.0
        %754 = vmatpush1.msra.mxu0 0.0
        %755 = vmatprep.subr.mxu0 0.0
        %756 = vmatpush1.msra.mxu0 0.0
        %757 = vmatprep.subr.mxu0 0.0
        %758 = vmatpush1.msra.mxu0 0.0
        %759 = vmatprep.subr.mxu0 0.0
        %760 = vmatpush1.msra.mxu0 0.0
        %761 = vmatprep.subr.mxu0 0.0
        %762 = vmatpush1.msra.mxu0 0.0
        %763 = vmatprep.mubr.f32.mxu0 0.0
        %764 = vmatmul.mubr.f32.gmra.mrb[0].mxu0 %v688
        %v765 = vpop.f32.mrb[0].mxu0
        %v766 = vadd.f32 %v685, %v765
        %v767 = vpop.f32.mrb[0].mxu0
        %768 = vmatprep.mubr.f32.mxu0 0.0
        %769 = vmatmul.mubr.f32.gmra.mrb[0].mxu0 %v691
        %v770 = vpop.f32.mrb[0].mxu0
        %v771 = vadd.f32 %v685, %v770
        %v772 = vpop.f32.mrb[0].mxu0
        %773 = vmatprep.mubr.f32.mxu0 0.0
        %774 = vmatmul.mubr.f32.gmra.mrb[0].mxu0 %v694
        %v775 = vpop.f32.mrb[0].mxu0
        %v776 = vadd.f32 %v685, %v775
        %v777 = vpop.f32.mrb[0].mxu0
        %778 = vmatprep.mubr.f32.mxu0 0.0
        %779 = vmatmul.mubr.f32.gmra.mrb[0].mxu0 %v697
        %v780 = vpop.f32.mrb[0].mxu0
        %v781 = vadd.f32 %v685, %v780
        %v782 = vpop.f32.mrb[0].mxu0
        %783 = vdwg.mxu0
        %v784 = vld [vmem:[%s480] sm:$0xff]
        %v785 = vld [vmem:[%s480 + $0x8] sm:$0xff]
        %v786 = vld [vmem:[%s480 + $0x10] sm:$0xff]
        %v787 = vld [vmem:[%s480 + $0x18] sm:$0xff]
        %v788 = vld [vmem:[#allocation13] sm:$0xff]
        %v789 = vld [vmem:[#allocation13 + $0x8] sm:$0xff]
        %v790 = vld [vmem:[#allocation13 + $0x10] sm:$0xff]
        %v791 = vld [vmem:[#allocation13 + $0x18] sm:$0xff]
        %v792 = vld [vmem:[#allocation13 + $0x20] sm:$0xff]
        %v793 = vld [vmem:[#allocation13 + $0x28] sm:$0xff]
        %v794 = vld [vmem:[#allocation13 + $0x30] sm:$0xff]
        %v795 = vld [vmem:[#allocation13 + $0x38] sm:$0xff]
        %v796 = vld [vmem:[%s9] sm:$0x1]
        %v798 = vlaneseq
        %v799 = vshrl.u32 %v798, 7
        %v800 = vsub.s32 0, %v799
        %v801 = vrot.slane %v796, %v800
        %v804 = vsel %vm570, %v784, 0
        %v807 = vsel %vm570, %v785, 0
        %v810 = vsel %vm570, %v786, 0
        %v813 = vsel %vm570, %v787, 0
        %815 = vmatprep.subr.mxu0 0.0
        %816 = vmatpush1.msra.mxu0 %v788
        %817 = vmatprep.subr.mxu0 0.0
        %818 = vmatpush1.msra.mxu0 %v789
        %819 = vmatprep.subr.mxu0 0.0
        %820 = vmatpush1.msra.mxu0 %v790
        %821 = vmatprep.subr.mxu0 0.0
        %822 = vmatpush1.msra.mxu0 %v791
        %823 = vmatprep.subr.mxu0 0.0
        %824 = vmatpush1.msra.mxu0 %v792
        %825 = vmatprep.subr.mxu0 0.0
        %826 = vmatpush1.msra.mxu0 %v793
        %827 = vmatprep.subr.mxu0 0.0
        %828 = vmatpush1.msra.mxu0 %v794
        %829 = vmatprep.subr.mxu0 0.0
        %830 = vmatpush1.msra.mxu0 %v795
        %831 = vmatprep.subr.mxu0 0.0
        %832 = vmatpush1.msra.mxu0 0.0
        %833 = vmatprep.subr.mxu0 0.0
        %834 = vmatpush1.msra.mxu0 0.0
        %835 = vmatprep.subr.mxu0 0.0
        %836 = vmatpush1.msra.mxu0 0.0
        %837 = vmatprep.subr.mxu0 0.0
        %838 = vmatpush1.msra.mxu0 0.0
        %839 = vmatprep.subr.mxu0 0.0
        %840 = vmatpush1.msra.mxu0 0.0
        %841 = vmatprep.subr.mxu0 0.0
        %842 = vmatpush1.msra.mxu0 0.0
        %843 = vmatprep.subr.mxu0 0.0
        %844 = vmatpush1.msra.mxu0 0.0
        %845 = vmatprep.subr.mxu0 0.0
        %846 = vmatpush1.msra.mxu0 0.0
        %847 = vmatprep.subr.mxu0 0.0
        %848 = vmatpush1.msra.mxu0 0.0
        %849 = vmatprep.subr.mxu0 0.0
        %850 = vmatpush1.msra.mxu0 0.0
        %851 = vmatprep.subr.mxu0 0.0
        %852 = vmatpush1.msra.mxu0 0.0
        %853 = vmatprep.subr.mxu0 0.0
        %854 = vmatpush1.msra.mxu0 0.0
        %855 = vmatprep.subr.mxu0 0.0
        %856 = vmatpush1.msra.mxu0 0.0
        %857 = vmatprep.subr.mxu0 0.0
        %858 = vmatpush1.msra.mxu0 0.0
        %859 = vmatprep.subr.mxu0 0.0
        %860 = vmatpush1.msra.mxu0 0.0
        %861 = vmatprep.subr.mxu0 0.0
        %862 = vmatpush1.msra.mxu0 0.0
        %863 = vmatprep.subr.mxu0 0.0
        %864 = vmatpush1.msra.mxu0 0.0
        %865 = vmatprep.subr.mxu0 0.0
        %866 = vmatpush1.msra.mxu0 0.0
        %867 = vmatprep.subr.mxu0 0.0
        %868 = vmatpush1.msra.mxu0 0.0
        %869 = vmatprep.subr.mxu0 0.0
        %870 = vmatpush1.msra.mxu0 0.0
        %871 = vmatprep.subr.mxu0 0.0
        %872 = vmatpush1.msra.mxu0 0.0
        %873 = vmatprep.subr.mxu0 0.0
        %874 = vmatpush1.msra.mxu0 0.0
        %875 = vmatprep.subr.mxu0 0.0
        %876 = vmatpush1.msra.mxu0 0.0
        %877 = vmatprep.subr.mxu0 0.0
        %878 = vmatpush1.msra.mxu0 0.0
        %879 = vmatprep.mubr.f32.mxu0 0.0
        %880 = vmatmul.mubr.f32.gmra.mrb[0].mxu0 %v804
        %v881 = vpop.f32.mrb[0].mxu0
        %v882 = vadd.f32 %v801, %v881
        %v883 = vpop.f32.mrb[0].mxu0
        %884 = vmatprep.mubr.f32.mxu0 0.0
        %885 = vmatmul.mubr.f32.gmra.mrb[0].mxu0 %v807
        %v886 = vpop.f32.mrb[0].mxu0
        %v887 = vadd.f32 %v801, %v886
        %v888 = vpop.f32.mrb[0].mxu0
        %889 = vmatprep.mubr.f32.mxu0 0.0
        %890 = vmatmul.mubr.f32.gmra.mrb[0].mxu0 %v810
        %v891 = vpop.f32.mrb[0].mxu0
        %v892 = vadd.f32 %v801, %v891
        %v893 = vpop.f32.mrb[0].mxu0
        %894 = vmatprep.mubr.f32.mxu0 0.0
        %895 = vmatmul.mubr.f32.gmra.mrb[0].mxu0 %v813
        %v896 = vpop.f32.mrb[0].mxu0
        %v897 = vadd.f32 %v801, %v896
        %v898 = vpop.f32.mrb[0].mxu0
        %899 = vdwg.mxu0
        %904 = vrot.lane.b32.xlu0 %v650, 112
        %v905 = vpop.permute.xlu0 %904
        %906 = vrot.lane.b32.xlu0 %v655, 112
        %v907 = vpop.permute.xlu0 %906
        %908 = vrot.lane.b32.xlu0 %v660, 112
        %v909 = vpop.permute.xlu0 %908
        %910 = vrot.lane.b32.xlu0 %v665, 112
        %v911 = vpop.permute.xlu0 %910
        %912 = vrot.lane.b32.xlu0 %v650, 96
        %v913 = vpop.permute.xlu0 %912
        %914 = vrot.lane.b32.xlu0 %v655, 96
        %v915 = vpop.permute.xlu0 %914
        %916 = vrot.lane.b32.xlu0 %v660, 96
        %v917 = vpop.permute.xlu0 %916
        %918 = vrot.lane.b32.xlu0 %v665, 96
        %v919 = vpop.permute.xlu0 %918
        %920 = vrot.lane.b32.xlu0 %v650, 80
        %v921 = vpop.permute.xlu0 %920
        %922 = vrot.lane.b32.xlu0 %v655, 80
        %v923 = vpop.permute.xlu0 %922
        %924 = vrot.lane.b32.xlu0 %v660, 80
        %v925 = vpop.permute.xlu0 %924
        %926 = vrot.lane.b32.xlu0 %v665, 80
        %v927 = vpop.permute.xlu0 %926
        %928 = vrot.lane.b32.xlu0 %v650, 120
        %v929 = vpop.permute.xlu0 %928
        %930 = vrot.lane.b32.xlu0 %v655, 120
        %v931 = vpop.permute.xlu0 %930
        %932 = vrot.lane.b32.xlu0 %v660, 120
        %v933 = vpop.permute.xlu0 %932
        %934 = vrot.lane.b32.xlu0 %v665, 120
        %v935 = vpop.permute.xlu0 %934
        %936 = vrot.lane.b32.xlu0 %v650, 104
        %v937 = vpop.permute.xlu0 %936
        %938 = vrot.lane.b32.xlu0 %v655, 104
        %v939 = vpop.permute.xlu0 %938
        %940 = vrot.lane.b32.xlu0 %v660, 104
        %v941 = vpop.permute.xlu0 %940
        %942 = vrot.lane.b32.xlu0 %v665, 104
        %v943 = vpop.permute.xlu0 %942
        %944 = vrot.lane.b32.xlu0 %v650, 88
        %v945 = vpop.permute.xlu0 %944
        %946 = vrot.lane.b32.xlu0 %v655, 88
        %v947 = vpop.permute.xlu0 %946
        %948 = vrot.lane.b32.xlu0 %v660, 88
        %v949 = vpop.permute.xlu0 %948
        %950 = vrot.lane.b32.xlu0 %v665, 88
        %v951 = vpop.permute.xlu0 %950
        %952 = vrot.lane.b32.xlu0 %v650, 72
        %v953 = vpop.permute.xlu0 %952
        %954 = vrot.lane.b32.xlu0 %v655, 72
        %v955 = vpop.permute.xlu0 %954
        %956 = vrot.lane.b32.xlu0 %v660, 72
        %v957 = vpop.permute.xlu0 %956
        %958 = vrot.lane.b32.xlu0 %v665, 72
        %v959 = vpop.permute.xlu0 %958
        %964 = vrot.lane.b32.xlu0 %v766, 112
        %v965 = vpop.permute.xlu0 %964
        %966 = vrot.lane.b32.xlu0 %v771, 112
        %v967 = vpop.permute.xlu0 %966
        %968 = vrot.lane.b32.xlu0 %v776, 112
        %v969 = vpop.permute.xlu0 %968
        %970 = vrot.lane.b32.xlu0 %v781, 112
        %v971 = vpop.permute.xlu0 %970
        %972 = vrot.lane.b32.xlu0 %v766, 96
        %v973 = vpop.permute.xlu0 %972
        %974 = vrot.lane.b32.xlu0 %v771, 96
        %v975 = vpop.permute.xlu0 %974
        %976 = vrot.lane.b32.xlu0 %v776, 96
        %v977 = vpop.permute.xlu0 %976
        %978 = vrot.lane.b32.xlu0 %v781, 96
        %v979 = vpop.permute.xlu0 %978
        %980 = vrot.lane.b32.xlu0 %v766, 80
        %v981 = vpop.permute.xlu0 %980
        %982 = vrot.lane.b32.xlu0 %v771, 80
        %v983 = vpop.permute.xlu0 %982
        %984 = vrot.lane.b32.xlu0 %v776, 80
        %v985 = vpop.permute.xlu0 %984
        %986 = vrot.lane.b32.xlu0 %v781, 80
        %v987 = vpop.permute.xlu0 %986
        %988 = vrot.lane.b32.xlu0 %v766, 120
        %v989 = vpop.permute.xlu0 %988
        %990 = vrot.lane.b32.xlu0 %v771, 120
        %v991 = vpop.permute.xlu0 %990
        %992 = vrot.lane.b32.xlu0 %v776, 120
        %v993 = vpop.permute.xlu0 %992
        %994 = vrot.lane.b32.xlu0 %v781, 120
        %v995 = vpop.permute.xlu0 %994
        %996 = vrot.lane.b32.xlu0 %v766, 104
        %v997 = vpop.permute.xlu0 %996
        %998 = vrot.lane.b32.xlu0 %v771, 104
        %v999 = vpop.permute.xlu0 %998
        %1000 = vrot.lane.b32.xlu0 %v776, 104
        %v1001 = vpop.permute.xlu0 %1000
        %1002 = vrot.lane.b32.xlu0 %v781, 104
        %v1003 = vpop.permute.xlu0 %1002
        %1004 = vrot.lane.b32.xlu0 %v766, 88
        %v1005 = vpop.permute.xlu0 %1004
        %1006 = vrot.lane.b32.xlu0 %v771, 88
        %v1007 = vpop.permute.xlu0 %1006
        %1008 = vrot.lane.b32.xlu0 %v776, 88
        %v1009 = vpop.permute.xlu0 %1008
        %1010 = vrot.lane.b32.xlu0 %v781, 88
        %v1011 = vpop.permute.xlu0 %1010
        %1012 = vrot.lane.b32.xlu0 %v766, 72
        %v1013 = vpop.permute.xlu0 %1012
        %1014 = vrot.lane.b32.xlu0 %v771, 72
        %v1015 = vpop.permute.xlu0 %1014
        %1016 = vrot.lane.b32.xlu0 %v776, 72
        %v1017 = vpop.permute.xlu0 %1016
        %1018 = vrot.lane.b32.xlu0 %v781, 72
        %v1019 = vpop.permute.xlu0 %1018
        %1024 = vrot.lane.b32.xlu0 %v882, 112
        %v1025 = vpop.permute.xlu0 %1024
        %1026 = vrot.lane.b32.xlu0 %v887, 112
        %v1027 = vpop.permute.xlu0 %1026
        %1028 = vrot.lane.b32.xlu0 %v892, 112
        %v1029 = vpop.permute.xlu0 %1028
        %1030 = vrot.lane.b32.xlu0 %v897, 112
        %v1031 = vpop.permute.xlu0 %1030
        %1036 = vrot.lane.b32.xlu0 %v882, 96
        %v1037 = vpop.permute.xlu0 %1036
        %1038 = vrot.lane.b32.xlu0 %v887, 96
        %v1039 = vpop.permute.xlu0 %1038
        %1040 = vrot.lane.b32.xlu0 %v892, 96
        %v1041 = vpop.permute.xlu0 %1040
        %1042 = vrot.lane.b32.xlu0 %v897, 96
        %v1043 = vpop.permute.xlu0 %1042
        %1048 = vrot.lane.b32.xlu0 %v882, 80
        %v1049 = vpop.permute.xlu0 %1048
        %1050 = vrot.lane.b32.xlu0 %v887, 80
        %v1051 = vpop.permute.xlu0 %1050
        %1052 = vrot.lane.b32.xlu0 %v892, 80
        %v1053 = vpop.permute.xlu0 %1052
        %1054 = vrot.lane.b32.xlu0 %v897, 80
        %v1055 = vpop.permute.xlu0 %1054
        %vm1060 = vcmask 64512
        %v1061 = vsel %vm1060, %v650, 0
        %v1063 = vsel %vm1060, %v766, 0
        %1065 = vmatprep.subr.mxu0 0.0
        %1066 = vmatpush1.xpose.msra.mxu0 %v1063
        %1067 = vmatprep.subr.mxu0 0.0
        %1068 = vmatpush1.xpose.msra.mxu0 0.0
        %1069 = vmatprep.subr.mxu0 0.0
        %1070 = vmatpush1.xpose.msra.mxu0 0.0
        %1071 = vmatprep.subr.mxu0 0.0
        %1072 = vmatpush1.xpose.msra.mxu0 0.0
        %1073 = vmatprep.subr.mxu0 0.0
        %1074 = vmatpush1.xpose.msra.mxu0 0.0
        %1075 = vmatprep.subr.mxu0 0.0
        %1076 = vmatpush1.xpose.msra.mxu0 0.0
        %1077 = vmatprep.subr.mxu0 0.0
        %1078 = vmatpush1.xpose.msra.mxu0 0.0
        %1079 = vmatprep.subr.mxu0 0.0
        %1080 = vmatpush1.xpose.msra.mxu0 0.0
        %1081 = vmatprep.subr.mxu0 0.0
        %1082 = vmatpush1.xpose.msra.mxu0 0.0
        %1083 = vmatprep.subr.mxu0 0.0
        %1084 = vmatpush1.xpose.msra.mxu0 0.0
        %1085 = vmatprep.subr.mxu0 0.0
        %1086 = vmatpush1.xpose.msra.mxu0 0.0
        %1087 = vmatprep.subr.mxu0 0.0
        %1088 = vmatpush1.xpose.msra.mxu0 0.0
        %1089 = vmatprep.subr.mxu0 0.0
        %1090 = vmatpush1.xpose.msra.mxu0 0.0
        %1091 = vmatprep.subr.mxu0 0.0
        %1092 = vmatpush1.xpose.msra.mxu0 0.0
        %1093 = vmatprep.subr.mxu0 0.0
        %1094 = vmatpush1.xpose.msra.mxu0 0.0
        %1095 = vmatprep.subr.mxu0 0.0
        %1096 = vmatpush1.xpose.msra.mxu0 0.0
        %1097 = vmatprep.subr.mxu0 0.0
        %1098 = vmatpush1.xpose.msra.mxu0 0.0
        %1099 = vmatprep.subr.mxu0 0.0
        %1100 = vmatpush1.xpose.msra.mxu0 0.0
        %1101 = vmatprep.subr.mxu0 0.0
        %1102 = vmatpush1.xpose.msra.mxu0 0.0
        %1103 = vmatprep.subr.mxu0 0.0
        %1104 = vmatpush1.xpose.msra.mxu0 0.0
        %1105 = vmatprep.subr.mxu0 0.0
        %1106 = vmatpush1.xpose.msra.mxu0 0.0
        %1107 = vmatprep.subr.mxu0 0.0
        %1108 = vmatpush1.xpose.msra.mxu0 0.0
        %1109 = vmatprep.subr.mxu0 0.0
        %1110 = vmatpush1.xpose.msra.mxu0 0.0
        %1111 = vmatprep.subr.mxu0 0.0
        %1112 = vmatpush1.xpose.msra.mxu0 0.0
        %1113 = vmatprep.subr.mxu0 0.0
        %1114 = vmatpush1.xpose.msra.mxu0 0.0
        %1115 = vmatprep.subr.mxu0 0.0
        %1116 = vmatpush1.xpose.msra.mxu0 0.0
        %1117 = vmatprep.subr.mxu0 0.0
        %1118 = vmatpush1.xpose.msra.mxu0 0.0
        %1119 = vmatprep.subr.mxu0 0.0
        %1120 = vmatpush1.xpose.msra.mxu0 0.0
        %1121 = vmatprep.subr.mxu0 0.0
        %1122 = vmatpush1.xpose.msra.mxu0 0.0
        %1123 = vmatprep.subr.mxu0 0.0
        %1124 = vmatpush1.xpose.msra.mxu0 0.0
        %1125 = vmatprep.subr.mxu0 0.0
        %1126 = vmatpush1.xpose.msra.mxu0 0.0
        %1127 = vmatprep.subr.mxu0 0.0
        %1128 = vmatpush1.xpose.msra.mxu0 0.0
        %1129 = vmatprep.mubr.f32.mxu0 0.0
        %1130 = vmatmul.mubr.f32.gmra.mrb[0].mxu0 %v1061
        %v1131 = vpop.f32.mrb[0].mxu0
        %v1132 = vadd.f32 0.0, %v1131
        %v1133 = vpop.f32.mrb[0].mxu0
        %1134 = vdwg.mxu0
        %v1135 = vsel %vm1060, %v655, 0
        %v1137 = vsel %vm1060, %v771, 0
        %1139 = vmatprep.subr.mxu0 0.0
        %1140 = vmatpush1.xpose.msra.mxu0 %v1137
        %1141 = vmatprep.subr.mxu0 0.0
        %1142 = vmatpush1.xpose.msra.mxu0 0.0
        %1143 = vmatprep.subr.mxu0 0.0
        %1144 = vmatpush1.xpose.msra.mxu0 0.0
        %1145 = vmatprep.subr.mxu0 0.0
        %1146 = vmatpush1.xpose.msra.mxu0 0.0
        %1147 = vmatprep.subr.mxu0 0.0
        %1148 = vmatpush1.xpose.msra.mxu0 0.0
        %1149 = vmatprep.subr.mxu0 0.0
        %1150 = vmatpush1.xpose.msra.mxu0 0.0
        %1151 = vmatprep.subr.mxu0 0.0
        %1152 = vmatpush1.xpose.msra.mxu0 0.0
        %1153 = vmatprep.subr.mxu0 0.0
        %1154 = vmatpush1.xpose.msra.mxu0 0.0
        %1155 = vmatprep.subr.mxu0 0.0
        %1156 = vmatpush1.xpose.msra.mxu0 0.0
        %1157 = vmatprep.subr.mxu0 0.0
        %1158 = vmatpush1.xpose.msra.mxu0 0.0
        %1159 = vmatprep.subr.mxu0 0.0
        %1160 = vmatpush1.xpose.msra.mxu0 0.0
        %1161 = vmatprep.subr.mxu0 0.0
        %1162 = vmatpush1.xpose.msra.mxu0 0.0
        %1163 = vmatprep.subr.mxu0 0.0
        %1164 = vmatpush1.xpose.msra.mxu0 0.0
        %1165 = vmatprep.subr.mxu0 0.0
        %1166 = vmatpush1.xpose.msra.mxu0 0.0
        %1167 = vmatprep.subr.mxu0 0.0
        %1168 = vmatpush1.xpose.msra.mxu0 0.0
        %1169 = vmatprep.subr.mxu0 0.0
        %1170 = vmatpush1.xpose.msra.mxu0 0.0
        %1171 = vmatprep.subr.mxu0 0.0
        %1172 = vmatpush1.xpose.msra.mxu0 0.0
        %1173 = vmatprep.subr.mxu0 0.0
        %1174 = vmatpush1.xpose.msra.mxu0 0.0
        %1175 = vmatprep.subr.mxu0 0.0
        %1176 = vmatpush1.xpose.msra.mxu0 0.0
        %1177 = vmatprep.subr.mxu0 0.0
        %1178 = vmatpush1.xpose.msra.mxu0 0.0
        %1179 = vmatprep.subr.mxu0 0.0
        %1180 = vmatpush1.xpose.msra.mxu0 0.0
        %1181 = vmatprep.subr.mxu0 0.0
        %1182 = vmatpush1.xpose.msra.mxu0 0.0
        %1183 = vmatprep.subr.mxu0 0.0
        %1184 = vmatpush1.xpose.msra.mxu0 0.0
        %1185 = vmatprep.subr.mxu0 0.0
        %1186 = vmatpush1.xpose.msra.mxu0 0.0
        %1187 = vmatprep.subr.mxu0 0.0
        %1188 = vmatpush1.xpose.msra.mxu0 0.0
        %1189 = vmatprep.subr.mxu0 0.0
        %1190 = vmatpush1.xpose.msra.mxu0 0.0
        %1191 = vmatprep.subr.mxu0 0.0
        %1192 = vmatpush1.xpose.msra.mxu0 0.0
        %1193 = vmatprep.subr.mxu0 0.0
        %1194 = vmatpush1.xpose.msra.mxu0 0.0
        %1195 = vmatprep.subr.mxu0 0.0
        %1196 = vmatpush1.xpose.msra.mxu0 0.0
        %1197 = vmatprep.subr.mxu0 0.0
        %1198 = vmatpush1.xpose.msra.mxu0 0.0
        %1199 = vmatprep.subr.mxu0 0.0
        %1200 = vmatpush1.xpose.msra.mxu0 0.0
        %1201 = vmatprep.subr.mxu0 0.0
        %1202 = vmatpush1.xpose.msra.mxu0 0.0
        %1203 = vmatprep.mubr.f32.mxu0 0.0
        %1204 = vmatmul.mubr.f32.gmra.mrb[0].mxu0 %v1135
        %v1205 = vpop.f32.mrb[0].mxu0
        %v1206 = vadd.f32 0.0, %v1205
        %v1207 = vpop.f32.mrb[0].mxu0
        %1208 = vdwg.mxu0
        %v1209 = vsel %vm1060, %v660, 0
        %v1211 = vsel %vm1060, %v776, 0
        %1213 = vmatprep.subr.mxu0 0.0
        %1214 = vmatpush1.xpose.msra.mxu0 %v1211
        %1215 = vmatprep.subr.mxu0 0.0
        %1216 = vmatpush1.xpose.msra.mxu0 0.0
        %1217 = vmatprep.subr.mxu0 0.0
        %1218 = vmatpush1.xpose.msra.mxu0 0.0
        %1219 = vmatprep.subr.mxu0 0.0
        %1220 = vmatpush1.xpose.msra.mxu0 0.0
        %1221 = vmatprep.subr.mxu0 0.0
        %1222 = vmatpush1.xpose.msra.mxu0 0.0
        %1223 = vmatprep.subr.mxu0 0.0
        %1224 = vmatpush1.xpose.msra.mxu0 0.0
        %1225 = vmatprep.subr.mxu0 0.0
        %1226 = vmatpush1.xpose.msra.mxu0 0.0
        %1227 = vmatprep.subr.mxu0 0.0
        %1228 = vmatpush1.xpose.msra.mxu0 0.0
        %1229 = vmatprep.subr.mxu0 0.0
        %1230 = vmatpush1.xpose.msra.mxu0 0.0
        %1231 = vmatprep.subr.mxu0 0.0
        %1232 = vmatpush1.xpose.msra.mxu0 0.0
        %1233 = vmatprep.subr.mxu0 0.0
        %1234 = vmatpush1.xpose.msra.mxu0 0.0
        %1235 = vmatprep.subr.mxu0 0.0
        %1236 = vmatpush1.xpose.msra.mxu0 0.0
        %1237 = vmatprep.subr.mxu0 0.0
        %1238 = vmatpush1.xpose.msra.mxu0 0.0
        %1239 = vmatprep.subr.mxu0 0.0
        %1240 = vmatpush1.xpose.msra.mxu0 0.0
        %1241 = vmatprep.subr.mxu0 0.0
        %1242 = vmatpush1.xpose.msra.mxu0 0.0
        %1243 = vmatprep.subr.mxu0 0.0
        %1244 = vmatpush1.xpose.msra.mxu0 0.0
        %1245 = vmatprep.subr.mxu0 0.0
        %1246 = vmatpush1.xpose.msra.mxu0 0.0
        %1247 = vmatprep.subr.mxu0 0.0
        %1248 = vmatpush1.xpose.msra.mxu0 0.0
        %1249 = vmatprep.subr.mxu0 0.0
        %1250 = vmatpush1.xpose.msra.mxu0 0.0
        %1251 = vmatprep.subr.mxu0 0.0
        %1252 = vmatpush1.xpose.msra.mxu0 0.0
        %1253 = vmatprep.subr.mxu0 0.0
        %1254 = vmatpush1.xpose.msra.mxu0 0.0
        %1255 = vmatprep.subr.mxu0 0.0
        %1256 = vmatpush1.xpose.msra.mxu0 0.0
        %1257 = vmatprep.subr.mxu0 0.0
        %1258 = vmatpush1.xpose.msra.mxu0 0.0
        %1259 = vmatprep.subr.mxu0 0.0
        %1260 = vmatpush1.xpose.msra.mxu0 0.0
        %1261 = vmatprep.subr.mxu0 0.0
        %1262 = vmatpush1.xpose.msra.mxu0 0.0
        %1263 = vmatprep.subr.mxu0 0.0
        %1264 = vmatpush1.xpose.msra.mxu0 0.0
        %1265 = vmatprep.subr.mxu0 0.0
        %1266 = vmatpush1.xpose.msra.mxu0 0.0
        %1267 = vmatprep.subr.mxu0 0.0
        %1268 = vmatpush1.xpose.msra.mxu0 0.0
        %1269 = vmatprep.subr.mxu0 0.0
        %1270 = vmatpush1.xpose.msra.mxu0 0.0
        %1271 = vmatprep.subr.mxu0 0.0
        %1272 = vmatpush1.xpose.msra.mxu0 0.0
        %1273 = vmatprep.subr.mxu0 0.0
        %1274 = vmatpush1.xpose.msra.mxu0 0.0
        %1275 = vmatprep.subr.mxu0 0.0
        %1276 = vmatpush1.xpose.msra.mxu0 0.0
        %1277 = vmatprep.mubr.f32.mxu0 0.0
        %1278 = vmatmul.mubr.f32.gmra.mrb[0].mxu0 %v1209
        %v1279 = vpop.f32.mrb[0].mxu0
        %v1280 = vadd.f32 0.0, %v1279
        %v1281 = vpop.f32.mrb[0].mxu0
        %1282 = vdwg.mxu0
        %v1283 = vsel %vm1060, %v665, 0
        %v1285 = vsel %vm1060, %v781, 0
        %1287 = vmatprep.subr.mxu0 0.0
        %1288 = vmatpush1.xpose.msra.mxu0 %v1285
        %1289 = vmatprep.subr.mxu0 0.0
        %1290 = vmatpush1.xpose.msra.mxu0 0.0
        %1291 = vmatprep.subr.mxu0 0.0
        %1292 = vmatpush1.xpose.msra.mxu0 0.0
        %1293 = vmatprep.subr.mxu0 0.0
        %1294 = vmatpush1.xpose.msra.mxu0 0.0
        %1295 = vmatprep.subr.mxu0 0.0
        %1296 = vmatpush1.xpose.msra.mxu0 0.0
        %1297 = vmatprep.subr.mxu0 0.0
        %1298 = vmatpush1.xpose.msra.mxu0 0.0
        %1299 = vmatprep.subr.mxu0 0.0
        %1300 = vmatpush1.xpose.msra.mxu0 0.0
        %1301 = vmatprep.subr.mxu0 0.0
        %1302 = vmatpush1.xpose.msra.mxu0 0.0
        %1303 = vmatprep.subr.mxu0 0.0
        %1304 = vmatpush1.xpose.msra.mxu0 0.0
        %1305 = vmatprep.subr.mxu0 0.0
        %1306 = vmatpush1.xpose.msra.mxu0 0.0
        %1307 = vmatprep.subr.mxu0 0.0
        %1308 = vmatpush1.xpose.msra.mxu0 0.0
        %1309 = vmatprep.subr.mxu0 0.0
        %1310 = vmatpush1.xpose.msra.mxu0 0.0
        %1311 = vmatprep.subr.mxu0 0.0
        %1312 = vmatpush1.xpose.msra.mxu0 0.0
        %1313 = vmatprep.subr.mxu0 0.0
        %1314 = vmatpush1.xpose.msra.mxu0 0.0
        %1315 = vmatprep.subr.mxu0 0.0
        %1316 = vmatpush1.xpose.msra.mxu0 0.0
        %1317 = vmatprep.subr.mxu0 0.0
        %1318 = vmatpush1.xpose.msra.mxu0 0.0
        %1319 = vmatprep.subr.mxu0 0.0
        %1320 = vmatpush1.xpose.msra.mxu0 0.0
        %1321 = vmatprep.subr.mxu0 0.0
        %1322 = vmatpush1.xpose.msra.mxu0 0.0
        %1323 = vmatprep.subr.mxu0 0.0
        %1324 = vmatpush1.xpose.msra.mxu0 0.0
        %1325 = vmatprep.subr.mxu0 0.0
        %1326 = vmatpush1.xpose.msra.mxu0 0.0
        %1327 = vmatprep.subr.mxu0 0.0
        %1328 = vmatpush1.xpose.msra.mxu0 0.0
        %1329 = vmatprep.subr.mxu0 0.0
        %1330 = vmatpush1.xpose.msra.mxu0 0.0
        %1331 = vmatprep.subr.mxu0 0.0
        %1332 = vmatpush1.xpose.msra.mxu0 0.0
        %1333 = vmatprep.subr.mxu0 0.0
        %1334 = vmatpush1.xpose.msra.mxu0 0.0
        %1335 = vmatprep.subr.mxu0 0.0
        %1336 = vmatpush1.xpose.msra.mxu0 0.0
        %1337 = vmatprep.subr.mxu0 0.0
        %1338 = vmatpush1.xpose.msra.mxu0 0.0
        %1339 = vmatprep.subr.mxu0 0.0
        %1340 = vmatpush1.xpose.msra.mxu0 0.0
        %1341 = vmatprep.subr.mxu0 0.0
        %1342 = vmatpush1.xpose.msra.mxu0 0.0
        %1343 = vmatprep.subr.mxu0 0.0
        %1344 = vmatpush1.xpose.msra.mxu0 0.0
        %1345 = vmatprep.subr.mxu0 0.0
        %1346 = vmatpush1.xpose.msra.mxu0 0.0
        %1347 = vmatprep.subr.mxu0 0.0
        %1348 = vmatpush1.xpose.msra.mxu0 0.0
        %1349 = vmatprep.subr.mxu0 0.0
        %1350 = vmatpush1.xpose.msra.mxu0 0.0
        %1351 = vmatprep.mubr.f32.mxu0 0.0
        %1352 = vmatmul.mubr.f32.gmra.mrb[0].mxu0 %v1283
        %v1353 = vpop.f32.mrb[0].mxu0
        %v1354 = vadd.f32 0.0, %v1353
        %v1355 = vpop.f32.mrb[0].mxu0
        %1356 = vdwg.mxu0
        %v1357 = vsel %vm1060, %v905, 0
        %v1359 = vsel %vm1060, %v965, 0
        %1361 = vmatprep.subr.mxu0 0.0
        %1362 = vmatpush1.xpose.msra.mxu0 %v1359
        %1363 = vmatprep.subr.mxu0 0.0
        %1364 = vmatpush1.xpose.msra.mxu0 0.0
        %1365 = vmatprep.subr.mxu0 0.0
        %1366 = vmatpush1.xpose.msra.mxu0 0.0
        %1367 = vmatprep.subr.mxu0 0.0
        %1368 = vmatpush1.xpose.msra.mxu0 0.0
        %1369 = vmatprep.subr.mxu0 0.0
        %1370 = vmatpush1.xpose.msra.mxu0 0.0
        %1371 = vmatprep.subr.mxu0 0.0
        %1372 = vmatpush1.xpose.msra.mxu0 0.0
        %1373 = vmatprep.subr.mxu0 0.0
        %1374 = vmatpush1.xpose.msra.mxu0 0.0
        %1375 = vmatprep.subr.mxu0 0.0
        %1376 = vmatpush1.xpose.msra.mxu0 0.0
        %1377 = vmatprep.subr.mxu0 0.0
        %1378 = vmatpush1.xpose.msra.mxu0 0.0
        %1379 = vmatprep.subr.mxu0 0.0
        %1380 = vmatpush1.xpose.msra.mxu0 0.0
        %1381 = vmatprep.subr.mxu0 0.0
        %1382 = vmatpush1.xpose.msra.mxu0 0.0
        %1383 = vmatprep.subr.mxu0 0.0
        %1384 = vmatpush1.xpose.msra.mxu0 0.0
        %1385 = vmatprep.subr.mxu0 0.0
        %1386 = vmatpush1.xpose.msra.mxu0 0.0
        %1387 = vmatprep.subr.mxu0 0.0
        %1388 = vmatpush1.xpose.msra.mxu0 0.0
        %1389 = vmatprep.subr.mxu0 0.0
        %1390 = vmatpush1.xpose.msra.mxu0 0.0
        %1391 = vmatprep.subr.mxu0 0.0
        %1392 = vmatpush1.xpose.msra.mxu0 0.0
        %1393 = vmatprep.subr.mxu0 0.0
        %1394 = vmatpush1.xpose.msra.mxu0 0.0
        %1395 = vmatprep.subr.mxu0 0.0
        %1396 = vmatpush1.xpose.msra.mxu0 0.0
        %1397 = vmatprep.subr.mxu0 0.0
        %1398 = vmatpush1.xpose.msra.mxu0 0.0
        %1399 = vmatprep.subr.mxu0 0.0
        %1400 = vmatpush1.xpose.msra.mxu0 0.0
        %1401 = vmatprep.subr.mxu0 0.0
        %1402 = vmatpush1.xpose.msra.mxu0 0.0
        %1403 = vmatprep.subr.mxu0 0.0
        %1404 = vmatpush1.xpose.msra.mxu0 0.0
        %1405 = vmatprep.subr.mxu0 0.0
        %1406 = vmatpush1.xpose.msra.mxu0 0.0
        %1407 = vmatprep.subr.mxu0 0.0
        %1408 = vmatpush1.xpose.msra.mxu0 0.0
        %1409 = vmatprep.subr.mxu0 0.0
        %1410 = vmatpush1.xpose.msra.mxu0 0.0
        %1411 = vmatprep.subr.mxu0 0.0
        %1412 = vmatpush1.xpose.msra.mxu0 0.0
        %1413 = vmatprep.subr.mxu0 0.0
        %1414 = vmatpush1.xpose.msra.mxu0 0.0
        %1415 = vmatprep.subr.mxu0 0.0
        %1416 = vmatpush1.xpose.msra.mxu0 0.0
        %1417 = vmatprep.subr.mxu0 0.0
        %1418 = vmatpush1.xpose.msra.mxu0 0.0
        %1419 = vmatprep.subr.mxu0 0.0
        %1420 = vmatpush1.xpose.msra.mxu0 0.0
        %1421 = vmatprep.subr.mxu0 0.0
        %1422 = vmatpush1.xpose.msra.mxu0 0.0
        %1423 = vmatprep.subr.mxu0 0.0
        %1424 = vmatpush1.xpose.msra.mxu0 0.0
        %1425 = vmatprep.mubr.f32.mxu0 0.0
        %1426 = vmatmul.mubr.f32.gmra.mrb[0].mxu0 %v1357
        %v1427 = vpop.f32.mrb[0].mxu0
        %v1428 = vadd.f32 0.0, %v1427
        %v1429 = vpop.f32.mrb[0].mxu0
        %1430 = vdwg.mxu0
        %v1431 = vsel %vm1060, %v907, 0
        %v1433 = vsel %vm1060, %v967, 0
        %1435 = vmatprep.subr.mxu0 0.0
        %1436 = vmatpush1.xpose.msra.mxu0 %v1433
        %1437 = vmatprep.subr.mxu0 0.0
        %1438 = vmatpush1.xpose.msra.mxu0 0.0
        %1439 = vmatprep.subr.mxu0 0.0
        %1440 = vmatpush1.xpose.msra.mxu0 0.0
        %1441 = vmatprep.subr.mxu0 0.0
        %1442 = vmatpush1.xpose.msra.mxu0 0.0
        %1443 = vmatprep.subr.mxu0 0.0
        %1444 = vmatpush1.xpose.msra.mxu0 0.0
        %1445 = vmatprep.subr.mxu0 0.0
        %1446 = vmatpush1.xpose.msra.mxu0 0.0
        %1447 = vmatprep.subr.mxu0 0.0
        %1448 = vmatpush1.xpose.msra.mxu0 0.0
        %1449 = vmatprep.subr.mxu0 0.0
        %1450 = vmatpush1.xpose.msra.mxu0 0.0
        %1451 = vmatprep.subr.mxu0 0.0
        %1452 = vmatpush1.xpose.msra.mxu0 0.0
        %1453 = vmatprep.subr.mxu0 0.0
        %1454 = vmatpush1.xpose.msra.mxu0 0.0
        %1455 = vmatprep.subr.mxu0 0.0
        %1456 = vmatpush1.xpose.msra.mxu0 0.0
        %1457 = vmatprep.subr.mxu0 0.0
        %1458 = vmatpush1.xpose.msra.mxu0 0.0
        %1459 = vmatprep.subr.mxu0 0.0
        %1460 = vmatpush1.xpose.msra.mxu0 0.0
        %1461 = vmatprep.subr.mxu0 0.0
        %1462 = vmatpush1.xpose.msra.mxu0 0.0
        %1463 = vmatprep.subr.mxu0 0.0
        %1464 = vmatpush1.xpose.msra.mxu0 0.0
        %1465 = vmatprep.subr.mxu0 0.0
        %1466 = vmatpush1.xpose.msra.mxu0 0.0
        %1467 = vmatprep.subr.mxu0 0.0
        %1468 = vmatpush1.xpose.msra.mxu0 0.0
        %1469 = vmatprep.subr.mxu0 0.0
        %1470 = vmatpush1.xpose.msra.mxu0 0.0
        %1471 = vmatprep.subr.mxu0 0.0
        %1472 = vmatpush1.xpose.msra.mxu0 0.0
        %1473 = vmatprep.subr.mxu0 0.0
        %1474 = vmatpush1.xpose.msra.mxu0 0.0
        %1475 = vmatprep.subr.mxu0 0.0
        %1476 = vmatpush1.xpose.msra.mxu0 0.0
        %1477 = vmatprep.subr.mxu0 0.0
        %1478 = vmatpush1.xpose.msra.mxu0 0.0
        %1479 = vmatprep.subr.mxu0 0.0
        %1480 = vmatpush1.xpose.msra.mxu0 0.0
        %1481 = vmatprep.subr.mxu0 0.0
        %1482 = vmatpush1.xpose.msra.mxu0 0.0
        %1483 = vmatprep.subr.mxu0 0.0
        %1484 = vmatpush1.xpose.msra.mxu0 0.0
        %1485 = vmatprep.subr.mxu0 0.0
        %1486 = vmatpush1.xpose.msra.mxu0 0.0
        %1487 = vmatprep.subr.mxu0 0.0
        %1488 = vmatpush1.xpose.msra.mxu0 0.0
        %1489 = vmatprep.subr.mxu0 0.0
        %1490 = vmatpush1.xpose.msra.mxu0 0.0
        %1491 = vmatprep.subr.mxu0 0.0
        %1492 = vmatpush1.xpose.msra.mxu0 0.0
        %1493 = vmatprep.subr.mxu0 0.0
        %1494 = vmatpush1.xpose.msra.mxu0 0.0
        %1495 = vmatprep.subr.mxu0 0.0
        %1496 = vmatpush1.xpose.msra.mxu0 0.0
        %1497 = vmatprep.subr.mxu0 0.0
        %1498 = vmatpush1.xpose.msra.mxu0 0.0
        %1499 = vmatprep.mubr.f32.mxu0 0.0
        %1500 = vmatmul.mubr.f32.gmra.mrb[0].mxu0 %v1431
        %v1501 = vpop.f32.mrb[0].mxu0
        %v1502 = vadd.f32 0.0, %v1501
        %v1503 = vpop.f32.mrb[0].mxu0
        %1504 = vdwg.mxu0
        %v1505 = vsel %vm1060, %v909, 0
        %v1507 = vsel %vm1060, %v969, 0
        %1509 = vmatprep.subr.mxu0 0.0
        %1510 = vmatpush1.xpose.msra.mxu0 %v1507
        %1511 = vmatprep.subr.mxu0 0.0
        %1512 = vmatpush1.xpose.msra.mxu0 0.0
        %1513 = vmatprep.subr.mxu0 0.0
        %1514 = vmatpush1.xpose.msra.mxu0 0.0
        %1515 = vmatprep.subr.mxu0 0.0
        %1516 = vmatpush1.xpose.msra.mxu0 0.0
        %1517 = vmatprep.subr.mxu0 0.0
        %1518 = vmatpush1.xpose.msra.mxu0 0.0
        %1519 = vmatprep.subr.mxu0 0.0
        %1520 = vmatpush1.xpose.msra.mxu0 0.0
        %1521 = vmatprep.subr.mxu0 0.0
        %1522 = vmatpush1.xpose.msra.mxu0 0.0
        %1523 = vmatprep.subr.mxu0 0.0
        %1524 = vmatpush1.xpose.msra.mxu0 0.0
        %1525 = vmatprep.subr.mxu0 0.0
        %1526 = vmatpush1.xpose.msra.mxu0 0.0
        %1527 = vmatprep.subr.mxu0 0.0
        %1528 = vmatpush1.xpose.msra.mxu0 0.0
        %1529 = vmatprep.subr.mxu0 0.0
        %1530 = vmatpush1.xpose.msra.mxu0 0.0
        %1531 = vmatprep.subr.mxu0 0.0
        %1532 = vmatpush1.xpose.msra.mxu0 0.0
        %1533 = vmatprep.subr.mxu0 0.0
        %1534 = vmatpush1.xpose.msra.mxu0 0.0
        %1535 = vmatprep.subr.mxu0 0.0
        %1536 = vmatpush1.xpose.msra.mxu0 0.0
        %1537 = vmatprep.subr.mxu0 0.0
        %1538 = vmatpush1.xpose.msra.mxu0 0.0
        %1539 = vmatprep.subr.mxu0 0.0
        %1540 = vmatpush1.xpose.msra.mxu0 0.0
        %1541 = vmatprep.subr.mxu0 0.0
        %1542 = vmatpush1.xpose.msra.mxu0 0.0
        %1543 = vmatprep.subr.mxu0 0.0
        %1544 = vmatpush1.xpose.msra.mxu0 0.0
        %1545 = vmatprep.subr.mxu0 0.0
        %1546 = vmatpush1.xpose.msra.mxu0 0.0
        %1547 = vmatprep.subr.mxu0 0.0
        %1548 = vmatpush1.xpose.msra.mxu0 0.0
        %1549 = vmatprep.subr.mxu0 0.0
        %1550 = vmatpush1.xpose.msra.mxu0 0.0
        %1551 = vmatprep.subr.mxu0 0.0
        %1552 = vmatpush1.xpose.msra.mxu0 0.0
        %1553 = vmatprep.subr.mxu0 0.0
        %1554 = vmatpush1.xpose.msra.mxu0 0.0
        %1555 = vmatprep.subr.mxu0 0.0
        %1556 = vmatpush1.xpose.msra.mxu0 0.0
        %1557 = vmatprep.subr.mxu0 0.0
        %1558 = vmatpush1.xpose.msra.mxu0 0.0
        %1559 = vmatprep.subr.mxu0 0.0
        %1560 = vmatpush1.xpose.msra.mxu0 0.0
        %1561 = vmatprep.subr.mxu0 0.0
        %1562 = vmatpush1.xpose.msra.mxu0 0.0
        %1563 = vmatprep.subr.mxu0 0.0
        %1564 = vmatpush1.xpose.msra.mxu0 0.0
        %1565 = vmatprep.subr.mxu0 0.0
        %1566 = vmatpush1.xpose.msra.mxu0 0.0
        %1567 = vmatprep.subr.mxu0 0.0
        %1568 = vmatpush1.xpose.msra.mxu0 0.0
        %1569 = vmatprep.subr.mxu0 0.0
        %1570 = vmatpush1.xpose.msra.mxu0 0.0
        %1571 = vmatprep.subr.mxu0 0.0
        %1572 = vmatpush1.xpose.msra.mxu0 0.0
        %1573 = vmatprep.mubr.f32.mxu0 0.0
        %1574 = vmatmul.mubr.f32.gmra.mrb[0].mxu0 %v1505
        %v1575 = vpop.f32.mrb[0].mxu0
        %v1576 = vadd.f32 0.0, %v1575
        %v1577 = vpop.f32.mrb[0].mxu0
        %1578 = vdwg.mxu0
        %v1579 = vsel %vm1060, %v911, 0
        %v1581 = vsel %vm1060, %v971, 0
        %1583 = vmatprep.subr.mxu0 0.0
        %1584 = vmatpush1.xpose.msra.mxu0 %v1581
        %1585 = vmatprep.subr.mxu0 0.0
        %1586 = vmatpush1.xpose.msra.mxu0 0.0
        %1587 = vmatprep.subr.mxu0 0.0
        %1588 = vmatpush1.xpose.msra.mxu0 0.0
        %1589 = vmatprep.subr.mxu0 0.0
        %1590 = vmatpush1.xpose.msra.mxu0 0.0
        %1591 = vmatprep.subr.mxu0 0.0
        %1592 = vmatpush1.xpose.msra.mxu0 0.0
        %1593 = vmatprep.subr.mxu0 0.0
        %1594 = vmatpush1.xpose.msra.mxu0 0.0
        %1595 = vmatprep.subr.mxu0 0.0
        %1596 = vmatpush1.xpose.msra.mxu0 0.0
        %1597 = vmatprep.subr.mxu0 0.0
        %1598 = vmatpush1.xpose.msra.mxu0 0.0
        %1599 = vmatprep.subr.mxu0 0.0
        %1600 = vmatpush1.xpose.msra.mxu0 0.0
        %1601 = vmatprep.subr.mxu0 0.0
        %1602 = vmatpush1.xpose.msra.mxu0 0.0
        %1603 = vmatprep.subr.mxu0 0.0
        %1604 = vmatpush1.xpose.msra.mxu0 0.0
        %1605 = vmatprep.subr.mxu0 0.0
        %1606 = vmatpush1.xpose.msra.mxu0 0.0
        %1607 = vmatprep.subr.mxu0 0.0
        %1608 = vmatpush1.xpose.msra.mxu0 0.0
        %1609 = vmatprep.subr.mxu0 0.0
        %1610 = vmatpush1.xpose.msra.mxu0 0.0
        %1611 = vmatprep.subr.mxu0 0.0
        %1612 = vmatpush1.xpose.msra.mxu0 0.0
        %1613 = vmatprep.subr.mxu0 0.0
        %1614 = vmatpush1.xpose.msra.mxu0 0.0
        %1615 = vmatprep.subr.mxu0 0.0
        %1616 = vmatpush1.xpose.msra.mxu0 0.0
        %1617 = vmatprep.subr.mxu0 0.0
        %1618 = vmatpush1.xpose.msra.mxu0 0.0
        %1619 = vmatprep.subr.mxu0 0.0
        %1620 = vmatpush1.xpose.msra.mxu0 0.0
        %1621 = vmatprep.subr.mxu0 0.0
        %1622 = vmatpush1.xpose.msra.mxu0 0.0
        %1623 = vmatprep.subr.mxu0 0.0
        %1624 = vmatpush1.xpose.msra.mxu0 0.0
        %1625 = vmatprep.subr.mxu0 0.0
        %1626 = vmatpush1.xpose.msra.mxu0 0.0
        %1627 = vmatprep.subr.mxu0 0.0
        %1628 = vmatpush1.xpose.msra.mxu0 0.0
        %1629 = vmatprep.subr.mxu0 0.0
        %1630 = vmatpush1.xpose.msra.mxu0 0.0
        %1631 = vmatprep.subr.mxu0 0.0
        %1632 = vmatpush1.xpose.msra.mxu0 0.0
        %1633 = vmatprep.subr.mxu0 0.0
        %1634 = vmatpush1.xpose.msra.mxu0 0.0
        %1635 = vmatprep.subr.mxu0 0.0
        %1636 = vmatpush1.xpose.msra.mxu0 0.0
        %1637 = vmatprep.subr.mxu0 0.0
        %1638 = vmatpush1.xpose.msra.mxu0 0.0
        %1639 = vmatprep.subr.mxu0 0.0
        %1640 = vmatpush1.xpose.msra.mxu0 0.0
        %1641 = vmatprep.subr.mxu0 0.0
        %1642 = vmatpush1.xpose.msra.mxu0 0.0
        %1643 = vmatprep.subr.mxu0 0.0
        %1644 = vmatpush1.xpose.msra.mxu0 0.0
        %1645 = vmatprep.subr.mxu0 0.0
        %1646 = vmatpush1.xpose.msra.mxu0 0.0
        %1647 = vmatprep.mubr.f32.mxu0 0.0
        %1648 = vmatmul.mubr.f32.gmra.mrb[0].mxu0 %v1579
        %v1649 = vpop.f32.mrb[0].mxu0
        %v1650 = vadd.f32 0.0, %v1649
        %v1651 = vpop.f32.mrb[0].mxu0
        %1652 = vdwg.mxu0
        %v1653 = vsel %vm1060, %v913, 0
        %v1655 = vsel %vm1060, %v973, 0
        %1657 = vmatprep.subr.mxu0 0.0
        %1658 = vmatpush1.xpose.msra.mxu0 %v1655
        %1659 = vmatprep.subr.mxu0 0.0
        %1660 = vmatpush1.xpose.msra.mxu0 0.0
        %1661 = vmatprep.subr.mxu0 0.0
        %1662 = vmatpush1.xpose.msra.mxu0 0.0
        %1663 = vmatprep.subr.mxu0 0.0
        %1664 = vmatpush1.xpose.msra.mxu0 0.0
        %1665 = vmatprep.subr.mxu0 0.0
        %1666 = vmatpush1.xpose.msra.mxu0 0.0
        %1667 = vmatprep.subr.mxu0 0.0
        %1668 = vmatpush1.xpose.msra.mxu0 0.0
        %1669 = vmatprep.subr.mxu0 0.0
        %1670 = vmatpush1.xpose.msra.mxu0 0.0
        %1671 = vmatprep.subr.mxu0 0.0
        %1672 = vmatpush1.xpose.msra.mxu0 0.0
        %1673 = vmatprep.subr.mxu0 0.0
        %1674 = vmatpush1.xpose.msra.mxu0 0.0
        %1675 = vmatprep.subr.mxu0 0.0
        %1676 = vmatpush1.xpose.msra.mxu0 0.0
        %1677 = vmatprep.subr.mxu0 0.0
        %1678 = vmatpush1.xpose.msra.mxu0 0.0
        %1679 = vmatprep.subr.mxu0 0.0
        %1680 = vmatpush1.xpose.msra.mxu0 0.0
        %1681 = vmatprep.subr.mxu0 0.0
        %1682 = vmatpush1.xpose.msra.mxu0 0.0
        %1683 = vmatprep.subr.mxu0 0.0
        %1684 = vmatpush1.xpose.msra.mxu0 0.0
        %1685 = vmatprep.subr.mxu0 0.0
        %1686 = vmatpush1.xpose.msra.mxu0 0.0
        %1687 = vmatprep.subr.mxu0 0.0
        %1688 = vmatpush1.xpose.msra.mxu0 0.0
        %1689 = vmatprep.subr.mxu0 0.0
        %1690 = vmatpush1.xpose.msra.mxu0 0.0
        %1691 = vmatprep.subr.mxu0 0.0
        %1692 = vmatpush1.xpose.msra.mxu0 0.0
        %1693 = vmatprep.subr.mxu0 0.0
        %1694 = vmatpush1.xpose.msra.mxu0 0.0
        %1695 = vmatprep.subr.mxu0 0.0
        %1696 = vmatpush1.xpose.msra.mxu0 0.0
        %1697 = vmatprep.subr.mxu0 0.0
        %1698 = vmatpush1.xpose.msra.mxu0 0.0
        %1699 = vmatprep.subr.mxu0 0.0
        %1700 = vmatpush1.xpose.msra.mxu0 0.0
        %1701 = vmatprep.subr.mxu0 0.0
        %1702 = vmatpush1.xpose.msra.mxu0 0.0
        %1703 = vmatprep.subr.mxu0 0.0
        %1704 = vmatpush1.xpose.msra.mxu0 0.0
        %1705 = vmatprep.subr.mxu0 0.0
        %1706 = vmatpush1.xpose.msra.mxu0 0.0
        %1707 = vmatprep.subr.mxu0 0.0
        %1708 = vmatpush1.xpose.msra.mxu0 0.0
        %1709 = vmatprep.subr.mxu0 0.0
        %1710 = vmatpush1.xpose.msra.mxu0 0.0
        %1711 = vmatprep.subr.mxu0 0.0
        %1712 = vmatpush1.xpose.msra.mxu0 0.0
        %1713 = vmatprep.subr.mxu0 0.0
        %1714 = vmatpush1.xpose.msra.mxu0 0.0
        %1715 = vmatprep.subr.mxu0 0.0
        %1716 = vmatpush1.xpose.msra.mxu0 0.0
        %1717 = vmatprep.subr.mxu0 0.0
        %1718 = vmatpush1.xpose.msra.mxu0 0.0
        %1719 = vmatprep.subr.mxu0 0.0
        %1720 = vmatpush1.xpose.msra.mxu0 0.0
        %1721 = vmatprep.mubr.f32.mxu0 0.0
        %1722 = vmatmul.mubr.f32.gmra.mrb[0].mxu0 %v1653
        %v1723 = vpop.f32.mrb[0].mxu0
        %v1724 = vadd.f32 0.0, %v1723
        %v1725 = vpop.f32.mrb[0].mxu0
        %1726 = vdwg.mxu0
        %v1727 = vsel %vm1060, %v915, 0
        %v1729 = vsel %vm1060, %v975, 0
        %1731 = vmatprep.subr.mxu0 0.0
        %1732 = vmatpush1.xpose.msra.mxu0 %v1729
        %1733 = vmatprep.subr.mxu0 0.0
        %1734 = vmatpush1.xpose.msra.mxu0 0.0
        %1735 = vmatprep.subr.mxu0 0.0
        %1736 = vmatpush1.xpose.msra.mxu0 0.0
        %1737 = vmatprep.subr.mxu0 0.0
        %1738 = vmatpush1.xpose.msra.mxu0 0.0
        %1739 = vmatprep.subr.mxu0 0.0
        %1740 = vmatpush1.xpose.msra.mxu0 0.0
        %1741 = vmatprep.subr.mxu0 0.0
        %1742 = vmatpush1.xpose.msra.mxu0 0.0
        %1743 = vmatprep.subr.mxu0 0.0
        %1744 = vmatpush1.xpose.msra.mxu0 0.0
        %1745 = vmatprep.subr.mxu0 0.0
        %1746 = vmatpush1.xpose.msra.mxu0 0.0
        %1747 = vmatprep.subr.mxu0 0.0
        %1748 = vmatpush1.xpose.msra.mxu0 0.0
        %1749 = vmatprep.subr.mxu0 0.0
        %1750 = vmatpush1.xpose.msra.mxu0 0.0
        %1751 = vmatprep.subr.mxu0 0.0
        %1752 = vmatpush1.xpose.msra.mxu0 0.0
        %1753 = vmatprep.subr.mxu0 0.0
        %1754 = vmatpush1.xpose.msra.mxu0 0.0
        %1755 = vmatprep.subr.mxu0 0.0
        %1756 = vmatpush1.xpose.msra.mxu0 0.0
        %1757 = vmatprep.subr.mxu0 0.0
        %1758 = vmatpush1.xpose.msra.mxu0 0.0
        %1759 = vmatprep.subr.mxu0 0.0
        %1760 = vmatpush1.xpose.msra.mxu0 0.0
        %1761 = vmatprep.subr.mxu0 0.0
        %1762 = vmatpush1.xpose.msra.mxu0 0.0
        %1763 = vmatprep.subr.mxu0 0.0
        %1764 = vmatpush1.xpose.msra.mxu0 0.0
        %1765 = vmatprep.subr.mxu0 0.0
        %1766 = vmatpush1.xpose.msra.mxu0 0.0
        %1767 = vmatprep.subr.mxu0 0.0
        %1768 = vmatpush1.xpose.msra.mxu0 0.0
        %1769 = vmatprep.subr.mxu0 0.0
        %1770 = vmatpush1.xpose.msra.mxu0 0.0
        %1771 = vmatprep.subr.mxu0 0.0
        %1772 = vmatpush1.xpose.msra.mxu0 0.0
        %1773 = vmatprep.subr.mxu0 0.0
        %1774 = vmatpush1.xpose.msra.mxu0 0.0
        %1775 = vmatprep.subr.mxu0 0.0
        %1776 = vmatpush1.xpose.msra.mxu0 0.0
        %1777 = vmatprep.subr.mxu0 0.0
        %1778 = vmatpush1.xpose.msra.mxu0 0.0
        %1779 = vmatprep.subr.mxu0 0.0
        %1780 = vmatpush1.xpose.msra.mxu0 0.0
        %1781 = vmatprep.subr.mxu0 0.0
        %1782 = vmatpush1.xpose.msra.mxu0 0.0
        %1783 = vmatprep.subr.mxu0 0.0
        %1784 = vmatpush1.xpose.msra.mxu0 0.0
        %1785 = vmatprep.subr.mxu0 0.0
        %1786 = vmatpush1.xpose.msra.mxu0 0.0
        %1787 = vmatprep.subr.mxu0 0.0
        %1788 = vmatpush1.xpose.msra.mxu0 0.0
        %1789 = vmatprep.subr.mxu0 0.0
        %1790 = vmatpush1.xpose.msra.mxu0 0.0
        %1791 = vmatprep.subr.mxu0 0.0
        %1792 = vmatpush1.xpose.msra.mxu0 0.0
        %1793 = vmatprep.subr.mxu0 0.0
        %1794 = vmatpush1.xpose.msra.mxu0 0.0
        %1795 = vmatprep.mubr.f32.mxu0 0.0
        %1796 = vmatmul.mubr.f32.gmra.mrb[0].mxu0 %v1727
        %v1797 = vpop.f32.mrb[0].mxu0
        %v1798 = vadd.f32 0.0, %v1797
        %v1799 = vpop.f32.mrb[0].mxu0
        %1800 = vdwg.mxu0
        %v1801 = vsel %vm1060, %v917, 0
        %v1803 = vsel %vm1060, %v977, 0
        %1805 = vmatprep.subr.mxu0 0.0
        %1806 = vmatpush1.xpose.msra.mxu0 %v1803
        %1807 = vmatprep.subr.mxu0 0.0
        %1808 = vmatpush1.xpose.msra.mxu0 0.0
        %1809 = vmatprep.subr.mxu0 0.0
        %1810 = vmatpush1.xpose.msra.mxu0 0.0
        %1811 = vmatprep.subr.mxu0 0.0
        %1812 = vmatpush1.xpose.msra.mxu0 0.0
        %1813 = vmatprep.subr.mxu0 0.0
        %1814 = vmatpush1.xpose.msra.mxu0 0.0
        %1815 = vmatprep.subr.mxu0 0.0
        %1816 = vmatpush1.xpose.msra.mxu0 0.0
        %1817 = vmatprep.subr.mxu0 0.0
        %1818 = vmatpush1.xpose.msra.mxu0 0.0
        %1819 = vmatprep.subr.mxu0 0.0
        %1820 = vmatpush1.xpose.msra.mxu0 0.0
        %1821 = vmatprep.subr.mxu0 0.0
        %1822 = vmatpush1.xpose.msra.mxu0 0.0
        %1823 = vmatprep.subr.mxu0 0.0
        %1824 = vmatpush1.xpose.msra.mxu0 0.0
        %1825 = vmatprep.subr.mxu0 0.0
        %1826 = vmatpush1.xpose.msra.mxu0 0.0
        %1827 = vmatprep.subr.mxu0 0.0
        %1828 = vmatpush1.xpose.msra.mxu0 0.0
        %1829 = vmatprep.subr.mxu0 0.0
        %1830 = vmatpush1.xpose.msra.mxu0 0.0
        %1831 = vmatprep.subr.mxu0 0.0
        %1832 = vmatpush1.xpose.msra.mxu0 0.0
        %1833 = vmatprep.subr.mxu0 0.0
        %1834 = vmatpush1.xpose.msra.mxu0 0.0
        %1835 = vmatprep.subr.mxu0 0.0
        %1836 = vmatpush1.xpose.msra.mxu0 0.0
        %1837 = vmatprep.subr.mxu0 0.0
        %1838 = vmatpush1.xpose.msra.mxu0 0.0
        %1839 = vmatprep.subr.mxu0 0.0
        %1840 = vmatpush1.xpose.msra.mxu0 0.0
        %1841 = vmatprep.subr.mxu0 0.0
        %1842 = vmatpush1.xpose.msra.mxu0 0.0
        %1843 = vmatprep.subr.mxu0 0.0
        %1844 = vmatpush1.xpose.msra.mxu0 0.0
        %1845 = vmatprep.subr.mxu0 0.0
        %1846 = vmatpush1.xpose.msra.mxu0 0.0
        %1847 = vmatprep.subr.mxu0 0.0
        %1848 = vmatpush1.xpose.msra.mxu0 0.0
        %1849 = vmatprep.subr.mxu0 0.0
        %1850 = vmatpush1.xpose.msra.mxu0 0.0
        %1851 = vmatprep.subr.mxu0 0.0
        %1852 = vmatpush1.xpose.msra.mxu0 0.0
        %1853 = vmatprep.subr.mxu0 0.0
        %1854 = vmatpush1.xpose.msra.mxu0 0.0
        %1855 = vmatprep.subr.mxu0 0.0
        %1856 = vmatpush1.xpose.msra.mxu0 0.0
        %1857 = vmatprep.subr.mxu0 0.0
        %1858 = vmatpush1.xpose.msra.mxu0 0.0
        %1859 = vmatprep.subr.mxu0 0.0
        %1860 = vmatpush1.xpose.msra.mxu0 0.0
        %1861 = vmatprep.subr.mxu0 0.0
        %1862 = vmatpush1.xpose.msra.mxu0 0.0
        %1863 = vmatprep.subr.mxu0 0.0
        %1864 = vmatpush1.xpose.msra.mxu0 0.0
        %1865 = vmatprep.subr.mxu0 0.0
        %1866 = vmatpush1.xpose.msra.mxu0 0.0
        %1867 = vmatprep.subr.mxu0 0.0
        %1868 = vmatpush1.xpose.msra.mxu0 0.0
        %1869 = vmatprep.mubr.f32.mxu0 0.0
        %1870 = vmatmul.mubr.f32.gmra.mrb[0].mxu0 %v1801
        %v1871 = vpop.f32.mrb[0].mxu0
        %v1872 = vadd.f32 0.0, %v1871
        %v1873 = vpop.f32.mrb[0].mxu0
        %1874 = vdwg.mxu0
        %v1875 = vsel %vm1060, %v919, 0
        %v1877 = vsel %vm1060, %v979, 0
        %1879 = vmatprep.subr.mxu0 0.0
        %1880 = vmatpush1.xpose.msra.mxu0 %v1877
        %1881 = vmatprep.subr.mxu0 0.0
        %1882 = vmatpush1.xpose.msra.mxu0 0.0
        %1883 = vmatprep.subr.mxu0 0.0
        %1884 = vmatpush1.xpose.msra.mxu0 0.0
        %1885 = vmatprep.subr.mxu0 0.0
        %1886 = vmatpush1.xpose.msra.mxu0 0.0
        %1887 = vmatprep.subr.mxu0 0.0
        %1888 = vmatpush1.xpose.msra.mxu0 0.0
        %1889 = vmatprep.subr.mxu0 0.0
        %1890 = vmatpush1.xpose.msra.mxu0 0.0
        %1891 = vmatprep.subr.mxu0 0.0
        %1892 = vmatpush1.xpose.msra.mxu0 0.0
        %1893 = vmatprep.subr.mxu0 0.0
        %1894 = vmatpush1.xpose.msra.mxu0 0.0
        %1895 = vmatprep.subr.mxu0 0.0
        %1896 = vmatpush1.xpose.msra.mxu0 0.0
        %1897 = vmatprep.subr.mxu0 0.0
        %1898 = vmatpush1.xpose.msra.mxu0 0.0
        %1899 = vmatprep.subr.mxu0 0.0
        %1900 = vmatpush1.xpose.msra.mxu0 0.0
        %1901 = vmatprep.subr.mxu0 0.0
        %1902 = vmatpush1.xpose.msra.mxu0 0.0
        %1903 = vmatprep.subr.mxu0 0.0
        %1904 = vmatpush1.xpose.msra.mxu0 0.0
        %1905 = vmatprep.subr.mxu0 0.0
        %1906 = vmatpush1.xpose.msra.mxu0 0.0
        %1907 = vmatprep.subr.mxu0 0.0
        %1908 = vmatpush1.xpose.msra.mxu0 0.0
        %1909 = vmatprep.subr.mxu0 0.0
        %1910 = vmatpush1.xpose.msra.mxu0 0.0
        %1911 = vmatprep.subr.mxu0 0.0
        %1912 = vmatpush1.xpose.msra.mxu0 0.0
        %1913 = vmatprep.subr.mxu0 0.0
        %1914 = vmatpush1.xpose.msra.mxu0 0.0
        %1915 = vmatprep.subr.mxu0 0.0
        %1916 = vmatpush1.xpose.msra.mxu0 0.0
        %1917 = vmatprep.subr.mxu0 0.0
        %1918 = vmatpush1.xpose.msra.mxu0 0.0
        %1919 = vmatprep.subr.mxu0 0.0
        %1920 = vmatpush1.xpose.msra.mxu0 0.0
        %1921 = vmatprep.subr.mxu0 0.0
        %1922 = vmatpush1.xpose.msra.mxu0 0.0
        %1923 = vmatprep.subr.mxu0 0.0
        %1924 = vmatpush1.xpose.msra.mxu0 0.0
        %1925 = vmatprep.subr.mxu0 0.0
        %1926 = vmatpush1.xpose.msra.mxu0 0.0
        %1927 = vmatprep.subr.mxu0 0.0
        %1928 = vmatpush1.xpose.msra.mxu0 0.0
        %1929 = vmatprep.subr.mxu0 0.0
        %1930 = vmatpush1.xpose.msra.mxu0 0.0
        %1931 = vmatprep.subr.mxu0 0.0
        %1932 = vmatpush1.xpose.msra.mxu0 0.0
        %1933 = vmatprep.subr.mxu0 0.0
        %1934 = vmatpush1.xpose.msra.mxu0 0.0
        %1935 = vmatprep.subr.mxu0 0.0
        %1936 = vmatpush1.xpose.msra.mxu0 0.0
        %1937 = vmatprep.subr.mxu0 0.0
        %1938 = vmatpush1.xpose.msra.mxu0 0.0
        %1939 = vmatprep.subr.mxu0 0.0
        %1940 = vmatpush1.xpose.msra.mxu0 0.0
        %1941 = vmatprep.subr.mxu0 0.0
        %1942 = vmatpush1.xpose.msra.mxu0 0.0
        %1943 = vmatprep.mubr.f32.mxu0 0.0
        %1944 = vmatmul.mubr.f32.gmra.mrb[0].mxu0 %v1875
        %v1945 = vpop.f32.mrb[0].mxu0
        %v1946 = vadd.f32 0.0, %v1945
        %v1947 = vpop.f32.mrb[0].mxu0
        %1948 = vdwg.mxu0
        %v1949 = vsel %vm1060, %v921, 0
        %v1951 = vsel %vm1060, %v981, 0
        %1953 = vmatprep.subr.mxu0 0.0
        %1954 = vmatpush1.xpose.msra.mxu0 %v1951
        %1955 = vmatprep.subr.mxu0 0.0
        %1956 = vmatpush1.xpose.msra.mxu0 0.0
        %1957 = vmatprep.subr.mxu0 0.0
        %1958 = vmatpush1.xpose.msra.mxu0 0.0
        %1959 = vmatprep.subr.mxu0 0.0
        %1960 = vmatpush1.xpose.msra.mxu0 0.0
        %1961 = vmatprep.subr.mxu0 0.0
        %1962 = vmatpush1.xpose.msra.mxu0 0.0
        %1963 = vmatprep.subr.mxu0 0.0
        %1964 = vmatpush1.xpose.msra.mxu0 0.0
        %1965 = vmatprep.subr.mxu0 0.0
        %1966 = vmatpush1.xpose.msra.mxu0 0.0
        %1967 = vmatprep.subr.mxu0 0.0
        %1968 = vmatpush1.xpose.msra.mxu0 0.0
        %1969 = vmatprep.subr.mxu0 0.0
        %1970 = vmatpush1.xpose.msra.mxu0 0.0
        %1971 = vmatprep.subr.mxu0 0.0
        %1972 = vmatpush1.xpose.msra.mxu0 0.0
        %1973 = vmatprep.subr.mxu0 0.0
        %1974 = vmatpush1.xpose.msra.mxu0 0.0
        %1975 = vmatprep.subr.mxu0 0.0
        %1976 = vmatpush1.xpose.msra.mxu0 0.0
        %1977 = vmatprep.subr.mxu0 0.0
        %1978 = vmatpush1.xpose.msra.mxu0 0.0
        %1979 = vmatprep.subr.mxu0 0.0
        %1980 = vmatpush1.xpose.msra.mxu0 0.0
        %1981 = vmatprep.subr.mxu0 0.0
        %1982 = vmatpush1.xpose.msra.mxu0 0.0
        %1983 = vmatprep.subr.mxu0 0.0
        %1984 = vmatpush1.xpose.msra.mxu0 0.0
        %1985 = vmatprep.subr.mxu0 0.0
        %1986 = vmatpush1.xpose.msra.mxu0 0.0
        %1987 = vmatprep.subr.mxu0 0.0
        %1988 = vmatpush1.xpose.msra.mxu0 0.0
        %1989 = vmatprep.subr.mxu0 0.0
        %1990 = vmatpush1.xpose.msra.mxu0 0.0
        %1991 = vmatprep.subr.mxu0 0.0
        %1992 = vmatpush1.xpose.msra.mxu0 0.0
        %1993 = vmatprep.subr.mxu0 0.0
        %1994 = vmatpush1.xpose.msra.mxu0 0.0
        %1995 = vmatprep.subr.mxu0 0.0
        %1996 = vmatpush1.xpose.msra.mxu0 0.0
        %1997 = vmatprep.subr.mxu0 0.0
        %1998 = vmatpush1.xpose.msra.mxu0 0.0
        %1999 = vmatprep.subr.mxu0 0.0
        %2000 = vmatpush1.xpose.msra.mxu0 0.0
        %2001 = vmatprep.subr.mxu0 0.0
        %2002 = vmatpush1.xpose.msra.mxu0 0.0
        %2003 = vmatprep.subr.mxu0 0.0
        %2004 = vmatpush1.xpose.msra.mxu0 0.0
        %2005 = vmatprep.subr.mxu0 0.0
        %2006 = vmatpush1.xpose.msra.mxu0 0.0
        %2007 = vmatprep.subr.mxu0 0.0
        %2008 = vmatpush1.xpose.msra.mxu0 0.0
        %2009 = vmatprep.subr.mxu0 0.0
        %2010 = vmatpush1.xpose.msra.mxu0 0.0
        %2011 = vmatprep.subr.mxu0 0.0
        %2012 = vmatpush1.xpose.msra.mxu0 0.0
        %2013 = vmatprep.subr.mxu0 0.0
        %2014 = vmatpush1.xpose.msra.mxu0 0.0
        %2015 = vmatprep.subr.mxu0 0.0
        %2016 = vmatpush1.xpose.msra.mxu0 0.0
        %2017 = vmatprep.mubr.f32.mxu0 0.0
        %2018 = vmatmul.mubr.f32.gmra.mrb[0].mxu0 %v1949
        %v2019 = vpop.f32.mrb[0].mxu0
        %v2020 = vadd.f32 0.0, %v2019
        %v2021 = vpop.f32.mrb[0].mxu0
        %2022 = vdwg.mxu0
        %v2023 = vsel %vm1060, %v923, 0
        %v2025 = vsel %vm1060, %v983, 0
        %2027 = vmatprep.subr.mxu0 0.0
        %2028 = vmatpush1.xpose.msra.mxu0 %v2025
        %2029 = vmatprep.subr.mxu0 0.0
        %2030 = vmatpush1.xpose.msra.mxu0 0.0
        %2031 = vmatprep.subr.mxu0 0.0
        %2032 = vmatpush1.xpose.msra.mxu0 0.0
        %2033 = vmatprep.subr.mxu0 0.0
        %2034 = vmatpush1.xpose.msra.mxu0 0.0
        %2035 = vmatprep.subr.mxu0 0.0
        %2036 = vmatpush1.xpose.msra.mxu0 0.0
        %2037 = vmatprep.subr.mxu0 0.0
        %2038 = vmatpush1.xpose.msra.mxu0 0.0
        %2039 = vmatprep.subr.mxu0 0.0
        %2040 = vmatpush1.xpose.msra.mxu0 0.0
        %2041 = vmatprep.subr.mxu0 0.0
        %2042 = vmatpush1.xpose.msra.mxu0 0.0
        %2043 = vmatprep.subr.mxu0 0.0
        %2044 = vmatpush1.xpose.msra.mxu0 0.0
        %2045 = vmatprep.subr.mxu0 0.0
        %2046 = vmatpush1.xpose.msra.mxu0 0.0
        %2047 = vmatprep.subr.mxu0 0.0
        %2048 = vmatpush1.xpose.msra.mxu0 0.0
        %2049 = vmatprep.subr.mxu0 0.0
        %2050 = vmatpush1.xpose.msra.mxu0 0.0
        %2051 = vmatprep.subr.mxu0 0.0
        %2052 = vmatpush1.xpose.msra.mxu0 0.0
        %2053 = vmatprep.subr.mxu0 0.0
        %2054 = vmatpush1.xpose.msra.mxu0 0.0
        %2055 = vmatprep.subr.mxu0 0.0
        %2056 = vmatpush1.xpose.msra.mxu0 0.0
        %2057 = vmatprep.subr.mxu0 0.0
        %2058 = vmatpush1.xpose.msra.mxu0 0.0
        %2059 = vmatprep.subr.mxu0 0.0
        %2060 = vmatpush1.xpose.msra.mxu0 0.0
        %2061 = vmatprep.subr.mxu0 0.0
        %2062 = vmatpush1.xpose.msra.mxu0 0.0
        %2063 = vmatprep.subr.mxu0 0.0
        %2064 = vmatpush1.xpose.msra.mxu0 0.0
        %2065 = vmatprep.subr.mxu0 0.0
        %2066 = vmatpush1.xpose.msra.mxu0 0.0
        %2067 = vmatprep.subr.mxu0 0.0
        %2068 = vmatpush1.xpose.msra.mxu0 0.0
        %2069 = vmatprep.subr.mxu0 0.0
        %2070 = vmatpush1.xpose.msra.mxu0 0.0
        %2071 = vmatprep.subr.mxu0 0.0
        %2072 = vmatpush1.xpose.msra.mxu0 0.0
        %2073 = vmatprep.subr.mxu0 0.0
        %2074 = vmatpush1.xpose.msra.mxu0 0.0
        %2075 = vmatprep.subr.mxu0 0.0
        %2076 = vmatpush1.xpose.msra.mxu0 0.0
        %2077 = vmatprep.subr.mxu0 0.0
        %2078 = vmatpush1.xpose.msra.mxu0 0.0
        %2079 = vmatprep.subr.mxu0 0.0
        %2080 = vmatpush1.xpose.msra.mxu0 0.0
        %2081 = vmatprep.subr.mxu0 0.0
        %2082 = vmatpush1.xpose.msra.mxu0 0.0
        %2083 = vmatprep.subr.mxu0 0.0
        %2084 = vmatpush1.xpose.msra.mxu0 0.0
        %2085 = vmatprep.subr.mxu0 0.0
        %2086 = vmatpush1.xpose.msra.mxu0 0.0
        %2087 = vmatprep.subr.mxu0 0.0
        %2088 = vmatpush1.xpose.msra.mxu0 0.0
        %2089 = vmatprep.subr.mxu0 0.0
        %2090 = vmatpush1.xpose.msra.mxu0 0.0
        %2091 = vmatprep.mubr.f32.mxu0 0.0
        %2092 = vmatmul.mubr.f32.gmra.mrb[0].mxu0 %v2023
        %v2093 = vpop.f32.mrb[0].mxu0
        %v2094 = vadd.f32 0.0, %v2093
        %v2095 = vpop.f32.mrb[0].mxu0
        %2096 = vdwg.mxu0
        %v2097 = vsel %vm1060, %v925, 0
        %v2099 = vsel %vm1060, %v985, 0
        %2101 = vmatprep.subr.mxu0 0.0
        %2102 = vmatpush1.xpose.msra.mxu0 %v2099
        %2103 = vmatprep.subr.mxu0 0.0
        %2104 = vmatpush1.xpose.msra.mxu0 0.0
        %2105 = vmatprep.subr.mxu0 0.0
        %2106 = vmatpush1.xpose.msra.mxu0 0.0
        %2107 = vmatprep.subr.mxu0 0.0
        %2108 = vmatpush1.xpose.msra.mxu0 0.0
        %2109 = vmatprep.subr.mxu0 0.0
        %2110 = vmatpush1.xpose.msra.mxu0 0.0
        %2111 = vmatprep.subr.mxu0 0.0
        %2112 = vmatpush1.xpose.msra.mxu0 0.0
        %2113 = vmatprep.subr.mxu0 0.0
        %2114 = vmatpush1.xpose.msra.mxu0 0.0
        %2115 = vmatprep.subr.mxu0 0.0
        %2116 = vmatpush1.xpose.msra.mxu0 0.0
        %2117 = vmatprep.subr.mxu0 0.0
        %2118 = vmatpush1.xpose.msra.mxu0 0.0
        %2119 = vmatprep.subr.mxu0 0.0
        %2120 = vmatpush1.xpose.msra.mxu0 0.0
        %2121 = vmatprep.subr.mxu0 0.0
        %2122 = vmatpush1.xpose.msra.mxu0 0.0
        %2123 = vmatprep.subr.mxu0 0.0
        %2124 = vmatpush1.xpose.msra.mxu0 0.0
        %2125 = vmatprep.subr.mxu0 0.0
        %2126 = vmatpush1.xpose.msra.mxu0 0.0
        %2127 = vmatprep.subr.mxu0 0.0
        %2128 = vmatpush1.xpose.msra.mxu0 0.0
        %2129 = vmatprep.subr.mxu0 0.0
        %2130 = vmatpush1.xpose.msra.mxu0 0.0
        %2131 = vmatprep.subr.mxu0 0.0
        %2132 = vmatpush1.xpose.msra.mxu0 0.0
        %2133 = vmatprep.subr.mxu0 0.0
        %2134 = vmatpush1.xpose.msra.mxu0 0.0
        %2135 = vmatprep.subr.mxu0 0.0
        %2136 = vmatpush1.xpose.msra.mxu0 0.0
        %2137 = vmatprep.subr.mxu0 0.0
        %2138 = vmatpush1.xpose.msra.mxu0 0.0
        %2139 = vmatprep.subr.mxu0 0.0
        %2140 = vmatpush1.xpose.msra.mxu0 0.0
        %2141 = vmatprep.subr.mxu0 0.0
        %2142 = vmatpush1.xpose.msra.mxu0 0.0
        %2143 = vmatprep.subr.mxu0 0.0
        %2144 = vmatpush1.xpose.msra.mxu0 0.0
        %2145 = vmatprep.subr.mxu0 0.0
        %2146 = vmatpush1.xpose.msra.mxu0 0.0
        %2147 = vmatprep.subr.mxu0 0.0
        %2148 = vmatpush1.xpose.msra.mxu0 0.0
        %2149 = vmatprep.subr.mxu0 0.0
        %2150 = vmatpush1.xpose.msra.mxu0 0.0
        %2151 = vmatprep.subr.mxu0 0.0
        %2152 = vmatpush1.xpose.msra.mxu0 0.0
        %2153 = vmatprep.subr.mxu0 0.0
        %2154 = vmatpush1.xpose.msra.mxu0 0.0
        %2155 = vmatprep.subr.mxu0 0.0
        %2156 = vmatpush1.xpose.msra.mxu0 0.0
        %2157 = vmatprep.subr.mxu0 0.0
        %2158 = vmatpush1.xpose.msra.mxu0 0.0
        %2159 = vmatprep.subr.mxu0 0.0
        %2160 = vmatpush1.xpose.msra.mxu0 0.0
        %2161 = vmatprep.subr.mxu0 0.0
        %2162 = vmatpush1.xpose.msra.mxu0 0.0
        %2163 = vmatprep.subr.mxu0 0.0
        %2164 = vmatpush1.xpose.msra.mxu0 0.0
        %2165 = vmatprep.mubr.f32.mxu0 0.0
        %2166 = vmatmul.mubr.f32.gmra.mrb[0].mxu0 %v2097
        %v2167 = vpop.f32.mrb[0].mxu0
        %v2168 = vadd.f32 0.0, %v2167
        %v2169 = vpop.f32.mrb[0].mxu0
        %2170 = vdwg.mxu0
        %v2171 = vsel %vm1060, %v927, 0
        %v2173 = vsel %vm1060, %v987, 0
        %2175 = vmatprep.subr.mxu0 0.0
        %2176 = vmatpush1.xpose.msra.mxu0 %v2173
        %2177 = vmatprep.subr.mxu0 0.0
        %2178 = vmatpush1.xpose.msra.mxu0 0.0
        %2179 = vmatprep.subr.mxu0 0.0
        %2180 = vmatpush1.xpose.msra.mxu0 0.0
        %2181 = vmatprep.subr.mxu0 0.0
        %2182 = vmatpush1.xpose.msra.mxu0 0.0
        %2183 = vmatprep.subr.mxu0 0.0
        %2184 = vmatpush1.xpose.msra.mxu0 0.0
        %2185 = vmatprep.subr.mxu0 0.0
        %2186 = vmatpush1.xpose.msra.mxu0 0.0
        %2187 = vmatprep.subr.mxu0 0.0
        %2188 = vmatpush1.xpose.msra.mxu0 0.0
        %2189 = vmatprep.subr.mxu0 0.0
        %2190 = vmatpush1.xpose.msra.mxu0 0.0
        %2191 = vmatprep.subr.mxu0 0.0
        %2192 = vmatpush1.xpose.msra.mxu0 0.0
        %2193 = vmatprep.subr.mxu0 0.0
        %2194 = vmatpush1.xpose.msra.mxu0 0.0
        %2195 = vmatprep.subr.mxu0 0.0
        %2196 = vmatpush1.xpose.msra.mxu0 0.0
        %2197 = vmatprep.subr.mxu0 0.0
        %2198 = vmatpush1.xpose.msra.mxu0 0.0
        %2199 = vmatprep.subr.mxu0 0.0
        %2200 = vmatpush1.xpose.msra.mxu0 0.0
        %2201 = vmatprep.subr.mxu0 0.0
        %2202 = vmatpush1.xpose.msra.mxu0 0.0
        %2203 = vmatprep.subr.mxu0 0.0
        %2204 = vmatpush1.xpose.msra.mxu0 0.0
        %2205 = vmatprep.subr.mxu0 0.0
        %2206 = vmatpush1.xpose.msra.mxu0 0.0
        %2207 = vmatprep.subr.mxu0 0.0
        %2208 = vmatpush1.xpose.msra.mxu0 0.0
        %2209 = vmatprep.subr.mxu0 0.0
        %2210 = vmatpush1.xpose.msra.mxu0 0.0
        %2211 = vmatprep.subr.mxu0 0.0
        %2212 = vmatpush1.xpose.msra.mxu0 0.0
        %2213 = vmatprep.subr.mxu0 0.0
        %2214 = vmatpush1.xpose.msra.mxu0 0.0
        %2215 = vmatprep.subr.mxu0 0.0
        %2216 = vmatpush1.xpose.msra.mxu0 0.0
        %2217 = vmatprep.subr.mxu0 0.0
        %2218 = vmatpush1.xpose.msra.mxu0 0.0
        %2219 = vmatprep.subr.mxu0 0.0
        %2220 = vmatpush1.xpose.msra.mxu0 0.0
        %2221 = vmatprep.subr.mxu0 0.0
        %2222 = vmatpush1.xpose.msra.mxu0 0.0
        %2223 = vmatprep.subr.mxu0 0.0
        %2224 = vmatpush1.xpose.msra.mxu0 0.0
        %2225 = vmatprep.subr.mxu0 0.0
        %2226 = vmatpush1.xpose.msra.mxu0 0.0
        %2227 = vmatprep.subr.mxu0 0.0
        %2228 = vmatpush1.xpose.msra.mxu0 0.0
        %2229 = vmatprep.subr.mxu0 0.0
        %2230 = vmatpush1.xpose.msra.mxu0 0.0
        %2231 = vmatprep.subr.mxu0 0.0
        %2232 = vmatpush1.xpose.msra.mxu0 0.0
        %2233 = vmatprep.subr.mxu0 0.0
        %2234 = vmatpush1.xpose.msra.mxu0 0.0
        %2235 = vmatprep.subr.mxu0 0.0
        %2236 = vmatpush1.xpose.msra.mxu0 0.0
        %2237 = vmatprep.subr.mxu0 0.0
        %2238 = vmatpush1.xpose.msra.mxu0 0.0
        %2239 = vmatprep.mubr.f32.mxu0 0.0
        %2240 = vmatmul.mubr.f32.gmra.mrb[0].mxu0 %v2171
        %v2241 = vpop.f32.mrb[0].mxu0
        %v2242 = vadd.f32 0.0, %v2241
        %v2243 = vpop.f32.mrb[0].mxu0
        %2244 = vdwg.mxu0
        %v2245 = vsel %vm1060, %v929, 0
        %v2247 = vsel %vm1060, %v989, 0
        %2249 = vmatprep.subr.mxu0 0.0
        %2250 = vmatpush1.xpose.msra.mxu0 %v2247
        %2251 = vmatprep.subr.mxu0 0.0
        %2252 = vmatpush1.xpose.msra.mxu0 0.0
        %2253 = vmatprep.subr.mxu0 0.0
        %2254 = vmatpush1.xpose.msra.mxu0 0.0
        %2255 = vmatprep.subr.mxu0 0.0
        %2256 = vmatpush1.xpose.msra.mxu0 0.0
        %2257 = vmatprep.subr.mxu0 0.0
        %2258 = vmatpush1.xpose.msra.mxu0 0.0
        %2259 = vmatprep.subr.mxu0 0.0
        %2260 = vmatpush1.xpose.msra.mxu0 0.0
        %2261 = vmatprep.subr.mxu0 0.0
        %2262 = vmatpush1.xpose.msra.mxu0 0.0
        %2263 = vmatprep.subr.mxu0 0.0
        %2264 = vmatpush1.xpose.msra.mxu0 0.0
        %2265 = vmatprep.subr.mxu0 0.0
        %2266 = vmatpush1.xpose.msra.mxu0 0.0
        %2267 = vmatprep.subr.mxu0 0.0
        %2268 = vmatpush1.xpose.msra.mxu0 0.0
        %2269 = vmatprep.subr.mxu0 0.0
        %2270 = vmatpush1.xpose.msra.mxu0 0.0
        %2271 = vmatprep.subr.mxu0 0.0
        %2272 = vmatpush1.xpose.msra.mxu0 0.0
        %2273 = vmatprep.subr.mxu0 0.0
        %2274 = vmatpush1.xpose.msra.mxu0 0.0
        %2275 = vmatprep.subr.mxu0 0.0
        %2276 = vmatpush1.xpose.msra.mxu0 0.0
        %2277 = vmatprep.subr.mxu0 0.0
        %2278 = vmatpush1.xpose.msra.mxu0 0.0
        %2279 = vmatprep.subr.mxu0 0.0
        %2280 = vmatpush1.xpose.msra.mxu0 0.0
        %2281 = vmatprep.subr.mxu0 0.0
        %2282 = vmatpush1.xpose.msra.mxu0 0.0
        %2283 = vmatprep.subr.mxu0 0.0
        %2284 = vmatpush1.xpose.msra.mxu0 0.0
        %2285 = vmatprep.subr.mxu0 0.0
        %2286 = vmatpush1.xpose.msra.mxu0 0.0
        %2287 = vmatprep.subr.mxu0 0.0
        %2288 = vmatpush1.xpose.msra.mxu0 0.0
        %2289 = vmatprep.subr.mxu0 0.0
        %2290 = vmatpush1.xpose.msra.mxu0 0.0
        %2291 = vmatprep.subr.mxu0 0.0
        %2292 = vmatpush1.xpose.msra.mxu0 0.0
        %2293 = vmatprep.subr.mxu0 0.0
        %2294 = vmatpush1.xpose.msra.mxu0 0.0
        %2295 = vmatprep.subr.mxu0 0.0
        %2296 = vmatpush1.xpose.msra.mxu0 0.0
        %2297 = vmatprep.subr.mxu0 0.0
        %2298 = vmatpush1.xpose.msra.mxu0 0.0
        %2299 = vmatprep.subr.mxu0 0.0
        %2300 = vmatpush1.xpose.msra.mxu0 0.0
        %2301 = vmatprep.subr.mxu0 0.0
        %2302 = vmatpush1.xpose.msra.mxu0 0.0
        %2303 = vmatprep.subr.mxu0 0.0
        %2304 = vmatpush1.xpose.msra.mxu0 0.0
        %2305 = vmatprep.subr.mxu0 0.0
        %2306 = vmatpush1.xpose.msra.mxu0 0.0
        %2307 = vmatprep.subr.mxu0 0.0
        %2308 = vmatpush1.xpose.msra.mxu0 0.0
        %2309 = vmatprep.subr.mxu0 0.0
        %2310 = vmatpush1.xpose.msra.mxu0 0.0
        %2311 = vmatprep.subr.mxu0 0.0
        %2312 = vmatpush1.xpose.msra.mxu0 0.0
        %2313 = vmatprep.mubr.f32.mxu0 0.0
        %2314 = vmatmul.mubr.f32.gmra.mrb[0].mxu0 %v2245
        %v2315 = vpop.f32.mrb[0].mxu0
        %v2316 = vadd.f32 0.0, %v2315
        %v2317 = vpop.f32.mrb[0].mxu0
        %2318 = vdwg.mxu0
        %v2319 = vsel %vm1060, %v931, 0
        %v2321 = vsel %vm1060, %v991, 0
        %2323 = vmatprep.subr.mxu0 0.0
        %2324 = vmatpush1.xpose.msra.mxu0 %v2321
        %2325 = vmatprep.subr.mxu0 0.0
        %2326 = vmatpush1.xpose.msra.mxu0 0.0
        %2327 = vmatprep.subr.mxu0 0.0
        %2328 = vmatpush1.xpose.msra.mxu0 0.0
        %2329 = vmatprep.subr.mxu0 0.0
        %2330 = vmatpush1.xpose.msra.mxu0 0.0
        %2331 = vmatprep.subr.mxu0 0.0
        %2332 = vmatpush1.xpose.msra.mxu0 0.0
        %2333 = vmatprep.subr.mxu0 0.0
        %2334 = vmatpush1.xpose.msra.mxu0 0.0
        %2335 = vmatprep.subr.mxu0 0.0
        %2336 = vmatpush1.xpose.msra.mxu0 0.0
        %2337 = vmatprep.subr.mxu0 0.0
        %2338 = vmatpush1.xpose.msra.mxu0 0.0
        %2339 = vmatprep.subr.mxu0 0.0
        %2340 = vmatpush1.xpose.msra.mxu0 0.0
        %2341 = vmatprep.subr.mxu0 0.0
        %2342 = vmatpush1.xpose.msra.mxu0 0.0
        %2343 = vmatprep.subr.mxu0 0.0
        %2344 = vmatpush1.xpose.msra.mxu0 0.0
        %2345 = vmatprep.subr.mxu0 0.0
        %2346 = vmatpush1.xpose.msra.mxu0 0.0
        %2347 = vmatprep.subr.mxu0 0.0
        %2348 = vmatpush1.xpose.msra.mxu0 0.0
        %2349 = vmatprep.subr.mxu0 0.0
        %2350 = vmatpush1.xpose.msra.mxu0 0.0
        %2351 = vmatprep.subr.mxu0 0.0
        %2352 = vmatpush1.xpose.msra.mxu0 0.0
        %2353 = vmatprep.subr.mxu0 0.0
        %2354 = vmatpush1.xpose.msra.mxu0 0.0
        %2355 = vmatprep.subr.mxu0 0.0
        %2356 = vmatpush1.xpose.msra.mxu0 0.0
        %2357 = vmatprep.subr.mxu0 0.0
        %2358 = vmatpush1.xpose.msra.mxu0 0.0
        %2359 = vmatprep.subr.mxu0 0.0
        %2360 = vmatpush1.xpose.msra.mxu0 0.0
        %2361 = vmatprep.subr.mxu0 0.0
        %2362 = vmatpush1.xpose.msra.mxu0 0.0
        %2363 = vmatprep.subr.mxu0 0.0
        %2364 = vmatpush1.xpose.msra.mxu0 0.0
        %2365 = vmatprep.subr.mxu0 0.0
        %2366 = vmatpush1.xpose.msra.mxu0 0.0
        %2367 = vmatprep.subr.mxu0 0.0
        %2368 = vmatpush1.xpose.msra.mxu0 0.0
        %2369 = vmatprep.subr.mxu0 0.0
        %2370 = vmatpush1.xpose.msra.mxu0 0.0
        %2371 = vmatprep.subr.mxu0 0.0
        %2372 = vmatpush1.xpose.msra.mxu0 0.0
        %2373 = vmatprep.subr.mxu0 0.0
        %2374 = vmatpush1.xpose.msra.mxu0 0.0
        %2375 = vmatprep.subr.mxu0 0.0
        %2376 = vmatpush1.xpose.msra.mxu0 0.0
        %2377 = vmatprep.subr.mxu0 0.0
        %2378 = vmatpush1.xpose.msra.mxu0 0.0
        %2379 = vmatprep.subr.mxu0 0.0
        %2380 = vmatpush1.xpose.msra.mxu0 0.0
        %2381 = vmatprep.subr.mxu0 0.0
        %2382 = vmatpush1.xpose.msra.mxu0 0.0
        %2383 = vmatprep.subr.mxu0 0.0
        %2384 = vmatpush1.xpose.msra.mxu0 0.0
        %2385 = vmatprep.subr.mxu0 0.0
        %2386 = vmatpush1.xpose.msra.mxu0 0.0
        %2387 = vmatprep.mubr.f32.mxu0 0.0
        %2388 = vmatmul.mubr.f32.gmra.mrb[0].mxu0 %v2319
        %v2389 = vpop.f32.mrb[0].mxu0
        %v2390 = vadd.f32 0.0, %v2389
        %v2391 = vpop.f32.mrb[0].mxu0
        %2392 = vdwg.mxu0
        %v2393 = vsel %vm1060, %v933, 0
        %v2395 = vsel %vm1060, %v993, 0
        %2397 = vmatprep.subr.mxu0 0.0
        %2398 = vmatpush1.xpose.msra.mxu0 %v2395
        %2399 = vmatprep.subr.mxu0 0.0
        %2400 = vmatpush1.xpose.msra.mxu0 0.0
        %2401 = vmatprep.subr.mxu0 0.0
        %2402 = vmatpush1.xpose.msra.mxu0 0.0
        %2403 = vmatprep.subr.mxu0 0.0
        %2404 = vmatpush1.xpose.msra.mxu0 0.0
        %2405 = vmatprep.subr.mxu0 0.0
        %2406 = vmatpush1.xpose.msra.mxu0 0.0
        %2407 = vmatprep.subr.mxu0 0.0
        %2408 = vmatpush1.xpose.msra.mxu0 0.0
        %2409 = vmatprep.subr.mxu0 0.0
        %2410 = vmatpush1.xpose.msra.mxu0 0.0
        %2411 = vmatprep.subr.mxu0 0.0
        %2412 = vmatpush1.xpose.msra.mxu0 0.0
        %2413 = vmatprep.subr.mxu0 0.0
        %2414 = vmatpush1.xpose.msra.mxu0 0.0
        %2415 = vmatprep.subr.mxu0 0.0
        %2416 = vmatpush1.xpose.msra.mxu0 0.0
        %2417 = vmatprep.subr.mxu0 0.0
        %2418 = vmatpush1.xpose.msra.mxu0 0.0
        %2419 = vmatprep.subr.mxu0 0.0
        %2420 = vmatpush1.xpose.msra.mxu0 0.0
        %2421 = vmatprep.subr.mxu0 0.0
        %2422 = vmatpush1.xpose.msra.mxu0 0.0
        %2423 = vmatprep.subr.mxu0 0.0
        %2424 = vmatpush1.xpose.msra.mxu0 0.0
        %2425 = vmatprep.subr.mxu0 0.0
        %2426 = vmatpush1.xpose.msra.mxu0 0.0
        %2427 = vmatprep.subr.mxu0 0.0
        %2428 = vmatpush1.xpose.msra.mxu0 0.0
        %2429 = vmatprep.subr.mxu0 0.0
        %2430 = vmatpush1.xpose.msra.mxu0 0.0
        %2431 = vmatprep.subr.mxu0 0.0
        %2432 = vmatpush1.xpose.msra.mxu0 0.0
        %2433 = vmatprep.subr.mxu0 0.0
        %2434 = vmatpush1.xpose.msra.mxu0 0.0
        %2435 = vmatprep.subr.mxu0 0.0
        %2436 = vmatpush1.xpose.msra.mxu0 0.0
        %2437 = vmatprep.subr.mxu0 0.0
        %2438 = vmatpush1.xpose.msra.mxu0 0.0
        %2439 = vmatprep.subr.mxu0 0.0
        %2440 = vmatpush1.xpose.msra.mxu0 0.0
        %2441 = vmatprep.subr.mxu0 0.0
        %2442 = vmatpush1.xpose.msra.mxu0 0.0
        %2443 = vmatprep.subr.mxu0 0.0
        %2444 = vmatpush1.xpose.msra.mxu0 0.0
        %2445 = vmatprep.subr.mxu0 0.0
        %2446 = vmatpush1.xpose.msra.mxu0 0.0
        %2447 = vmatprep.subr.mxu0 0.0
        %2448 = vmatpush1.xpose.msra.mxu0 0.0
        %2449 = vmatprep.subr.mxu0 0.0
        %2450 = vmatpush1.xpose.msra.mxu0 0.0
        %2451 = vmatprep.subr.mxu0 0.0
        %2452 = vmatpush1.xpose.msra.mxu0 0.0
        %2453 = vmatprep.subr.mxu0 0.0
        %2454 = vmatpush1.xpose.msra.mxu0 0.0
        %2455 = vmatprep.subr.mxu0 0.0
        %2456 = vmatpush1.xpose.msra.mxu0 0.0
        %2457 = vmatprep.subr.mxu0 0.0
        %2458 = vmatpush1.xpose.msra.mxu0 0.0
        %2459 = vmatprep.subr.mxu0 0.0
        %2460 = vmatpush1.xpose.msra.mxu0 0.0
        %2461 = vmatprep.mubr.f32.mxu0 0.0
        %2462 = vmatmul.mubr.f32.gmra.mrb[0].mxu0 %v2393
        %v2463 = vpop.f32.mrb[0].mxu0
        %v2464 = vadd.f32 0.0, %v2463
        %v2465 = vpop.f32.mrb[0].mxu0
        %2466 = vdwg.mxu0
        %v2467 = vsel %vm1060, %v935, 0
        %v2469 = vsel %vm1060, %v995, 0
        %2471 = vmatprep.subr.mxu0 0.0
        %2472 = vmatpush1.xpose.msra.mxu0 %v2469
        %2473 = vmatprep.subr.mxu0 0.0
        %2474 = vmatpush1.xpose.msra.mxu0 0.0
        %2475 = vmatprep.subr.mxu0 0.0
        %2476 = vmatpush1.xpose.msra.mxu0 0.0
        %2477 = vmatprep.subr.mxu0 0.0
        %2478 = vmatpush1.xpose.msra.mxu0 0.0
        %2479 = vmatprep.subr.mxu0 0.0
        %2480 = vmatpush1.xpose.msra.mxu0 0.0
        %2481 = vmatprep.subr.mxu0 0.0
        %2482 = vmatpush1.xpose.msra.mxu0 0.0
        %2483 = vmatprep.subr.mxu0 0.0
        %2484 = vmatpush1.xpose.msra.mxu0 0.0
        %2485 = vmatprep.subr.mxu0 0.0
        %2486 = vmatpush1.xpose.msra.mxu0 0.0
        %2487 = vmatprep.subr.mxu0 0.0
        %2488 = vmatpush1.xpose.msra.mxu0 0.0
        %2489 = vmatprep.subr.mxu0 0.0
        %2490 = vmatpush1.xpose.msra.mxu0 0.0
        %2491 = vmatprep.subr.mxu0 0.0
        %2492 = vmatpush1.xpose.msra.mxu0 0.0
        %2493 = vmatprep.subr.mxu0 0.0
        %2494 = vmatpush1.xpose.msra.mxu0 0.0
        %2495 = vmatprep.subr.mxu0 0.0
        %2496 = vmatpush1.xpose.msra.mxu0 0.0
        %2497 = vmatprep.subr.mxu0 0.0
        %2498 = vmatpush1.xpose.msra.mxu0 0.0
        %2499 = vmatprep.subr.mxu0 0.0
        %2500 = vmatpush1.xpose.msra.mxu0 0.0
        %2501 = vmatprep.subr.mxu0 0.0
        %2502 = vmatpush1.xpose.msra.mxu0 0.0
        %2503 = vmatprep.subr.mxu0 0.0
        %2504 = vmatpush1.xpose.msra.mxu0 0.0
        %2505 = vmatprep.subr.mxu0 0.0
        %2506 = vmatpush1.xpose.msra.mxu0 0.0
        %2507 = vmatprep.subr.mxu0 0.0
        %2508 = vmatpush1.xpose.msra.mxu0 0.0
        %2509 = vmatprep.subr.mxu0 0.0
        %2510 = vmatpush1.xpose.msra.mxu0 0.0
        %2511 = vmatprep.subr.mxu0 0.0
        %2512 = vmatpush1.xpose.msra.mxu0 0.0
        %2513 = vmatprep.subr.mxu0 0.0
        %2514 = vmatpush1.xpose.msra.mxu0 0.0
        %2515 = vmatprep.subr.mxu0 0.0
        %2516 = vmatpush1.xpose.msra.mxu0 0.0
        %2517 = vmatprep.subr.mxu0 0.0
        %2518 = vmatpush1.xpose.msra.mxu0 0.0
        %2519 = vmatprep.subr.mxu0 0.0
        %2520 = vmatpush1.xpose.msra.mxu0 0.0
        %2521 = vmatprep.subr.mxu0 0.0
        %2522 = vmatpush1.xpose.msra.mxu0 0.0
        %2523 = vmatprep.subr.mxu0 0.0
        %2524 = vmatpush1.xpose.msra.mxu0 0.0
        %2525 = vmatprep.subr.mxu0 0.0
        %2526 = vmatpush1.xpose.msra.mxu0 0.0
        %2527 = vmatprep.subr.mxu0 0.0
        %2528 = vmatpush1.xpose.msra.mxu0 0.0
        %2529 = vmatprep.subr.mxu0 0.0
        %2530 = vmatpush1.xpose.msra.mxu0 0.0
        %2531 = vmatprep.subr.mxu0 0.0
        %2532 = vmatpush1.xpose.msra.mxu0 0.0
        %2533 = vmatprep.subr.mxu0 0.0
        %2534 = vmatpush1.xpose.msra.mxu0 0.0
        %2535 = vmatprep.mubr.f32.mxu0 0.0
        %2536 = vmatmul.mubr.f32.gmra.mrb[0].mxu0 %v2467
        %v2537 = vpop.f32.mrb[0].mxu0
        %v2538 = vadd.f32 0.0, %v2537
        %v2539 = vpop.f32.mrb[0].mxu0
        %2540 = vdwg.mxu0
        %v2541 = vsel %vm1060, %v937, 0
        %v2543 = vsel %vm1060, %v997, 0
        %2545 = vmatprep.subr.mxu0 0.0
        %2546 = vmatpush1.xpose.msra.mxu0 %v2543
        %2547 = vmatprep.subr.mxu0 0.0
        %2548 = vmatpush1.xpose.msra.mxu0 0.0
        %2549 = vmatprep.subr.mxu0 0.0
        %2550 = vmatpush1.xpose.msra.mxu0 0.0
        %2551 = vmatprep.subr.mxu0 0.0
        %2552 = vmatpush1.xpose.msra.mxu0 0.0
        %2553 = vmatprep.subr.mxu0 0.0
        %2554 = vmatpush1.xpose.msra.mxu0 0.0
        %2555 = vmatprep.subr.mxu0 0.0
        %2556 = vmatpush1.xpose.msra.mxu0 0.0
        %2557 = vmatprep.subr.mxu0 0.0
        %2558 = vmatpush1.xpose.msra.mxu0 0.0
        %2559 = vmatprep.subr.mxu0 0.0
        %2560 = vmatpush1.xpose.msra.mxu0 0.0
        %2561 = vmatprep.subr.mxu0 0.0
        %2562 = vmatpush1.xpose.msra.mxu0 0.0
        %2563 = vmatprep.subr.mxu0 0.0
        %2564 = vmatpush1.xpose.msra.mxu0 0.0
        %2565 = vmatprep.subr.mxu0 0.0
        %2566 = vmatpush1.xpose.msra.mxu0 0.0
        %2567 = vmatprep.subr.mxu0 0.0
        %2568 = vmatpush1.xpose.msra.mxu0 0.0
        %2569 = vmatprep.subr.mxu0 0.0
        %2570 = vmatpush1.xpose.msra.mxu0 0.0
        %2571 = vmatprep.subr.mxu0 0.0
        %2572 = vmatpush1.xpose.msra.mxu0 0.0
        %2573 = vmatprep.subr.mxu0 0.0
        %2574 = vmatpush1.xpose.msra.mxu0 0.0
        %2575 = vmatprep.subr.mxu0 0.0
        %2576 = vmatpush1.xpose.msra.mxu0 0.0
        %2577 = vmatprep.subr.mxu0 0.0
        %2578 = vmatpush1.xpose.msra.mxu0 0.0
        %2579 = vmatprep.subr.mxu0 0.0
        %2580 = vmatpush1.xpose.msra.mxu0 0.0
        %2581 = vmatprep.subr.mxu0 0.0
        %2582 = vmatpush1.xpose.msra.mxu0 0.0
        %2583 = vmatprep.subr.mxu0 0.0
        %2584 = vmatpush1.xpose.msra.mxu0 0.0
        %2585 = vmatprep.subr.mxu0 0.0
        %2586 = vmatpush1.xpose.msra.mxu0 0.0
        %2587 = vmatprep.subr.mxu0 0.0
        %2588 = vmatpush1.xpose.msra.mxu0 0.0
        %2589 = vmatprep.subr.mxu0 0.0
        %2590 = vmatpush1.xpose.msra.mxu0 0.0
        %2591 = vmatprep.subr.mxu0 0.0
        %2592 = vmatpush1.xpose.msra.mxu0 0.0
        %2593 = vmatprep.subr.mxu0 0.0
        %2594 = vmatpush1.xpose.msra.mxu0 0.0
        %2595 = vmatprep.subr.mxu0 0.0
        %2596 = vmatpush1.xpose.msra.mxu0 0.0
        %2597 = vmatprep.subr.mxu0 0.0
        %2598 = vmatpush1.xpose.msra.mxu0 0.0
        %2599 = vmatprep.subr.mxu0 0.0
        %2600 = vmatpush1.xpose.msra.mxu0 0.0
        %2601 = vmatprep.subr.mxu0 0.0
        %2602 = vmatpush1.xpose.msra.mxu0 0.0
        %2603 = vmatprep.subr.mxu0 0.0
        %2604 = vmatpush1.xpose.msra.mxu0 0.0
        %2605 = vmatprep.subr.mxu0 0.0
        %2606 = vmatpush1.xpose.msra.mxu0 0.0
        %2607 = vmatprep.subr.mxu0 0.0
        %2608 = vmatpush1.xpose.msra.mxu0 0.0
        %2609 = vmatprep.mubr.f32.mxu0 0.0
        %2610 = vmatmul.mubr.f32.gmra.mrb[0].mxu0 %v2541
        %v2611 = vpop.f32.mrb[0].mxu0
        %v2612 = vadd.f32 0.0, %v2611
        %v2613 = vpop.f32.mrb[0].mxu0
        %2614 = vdwg.mxu0
        %v2615 = vsel %vm1060, %v939, 0
        %v2617 = vsel %vm1060, %v999, 0
        %2619 = vmatprep.subr.mxu0 0.0
        %2620 = vmatpush1.xpose.msra.mxu0 %v2617
        %2621 = vmatprep.subr.mxu0 0.0
        %2622 = vmatpush1.xpose.msra.mxu0 0.0
        %2623 = vmatprep.subr.mxu0 0.0
        %2624 = vmatpush1.xpose.msra.mxu0 0.0
        %2625 = vmatprep.subr.mxu0 0.0
        %2626 = vmatpush1.xpose.msra.mxu0 0.0
        %2627 = vmatprep.subr.mxu0 0.0
        %2628 = vmatpush1.xpose.msra.mxu0 0.0
        %2629 = vmatprep.subr.mxu0 0.0
        %2630 = vmatpush1.xpose.msra.mxu0 0.0
        %2631 = vmatprep.subr.mxu0 0.0
        %2632 = vmatpush1.xpose.msra.mxu0 0.0
        %2633 = vmatprep.subr.mxu0 0.0
        %2634 = vmatpush1.xpose.msra.mxu0 0.0
        %2635 = vmatprep.subr.mxu0 0.0
        %2636 = vmatpush1.xpose.msra.mxu0 0.0
        %2637 = vmatprep.subr.mxu0 0.0
        %2638 = vmatpush1.xpose.msra.mxu0 0.0
        %2639 = vmatprep.subr.mxu0 0.0
        %2640 = vmatpush1.xpose.msra.mxu0 0.0
        %2641 = vmatprep.subr.mxu0 0.0
        %2642 = vmatpush1.xpose.msra.mxu0 0.0
        %2643 = vmatprep.subr.mxu0 0.0
        %2644 = vmatpush1.xpose.msra.mxu0 0.0
        %2645 = vmatprep.subr.mxu0 0.0
        %2646 = vmatpush1.xpose.msra.mxu0 0.0
        %2647 = vmatprep.subr.mxu0 0.0
        %2648 = vmatpush1.xpose.msra.mxu0 0.0
        %2649 = vmatprep.subr.mxu0 0.0
        %2650 = vmatpush1.xpose.msra.mxu0 0.0
        %2651 = vmatprep.subr.mxu0 0.0
        %2652 = vmatpush1.xpose.msra.mxu0 0.0
        %2653 = vmatprep.subr.mxu0 0.0
        %2654 = vmatpush1.xpose.msra.mxu0 0.0
        %2655 = vmatprep.subr.mxu0 0.0
        %2656 = vmatpush1.xpose.msra.mxu0 0.0
        %2657 = vmatprep.subr.mxu0 0.0
        %2658 = vmatpush1.xpose.msra.mxu0 0.0
        %2659 = vmatprep.subr.mxu0 0.0
        %2660 = vmatpush1.xpose.msra.mxu0 0.0
        %2661 = vmatprep.subr.mxu0 0.0
        %2662 = vmatpush1.xpose.msra.mxu0 0.0
        %2663 = vmatprep.subr.mxu0 0.0
        %2664 = vmatpush1.xpose.msra.mxu0 0.0
        %2665 = vmatprep.subr.mxu0 0.0
        %2666 = vmatpush1.xpose.msra.mxu0 0.0
        %2667 = vmatprep.subr.mxu0 0.0
        %2668 = vmatpush1.xpose.msra.mxu0 0.0
        %2669 = vmatprep.subr.mxu0 0.0
        %2670 = vmatpush1.xpose.msra.mxu0 0.0
        %2671 = vmatprep.subr.mxu0 0.0
        %2672 = vmatpush1.xpose.msra.mxu0 0.0
        %2673 = vmatprep.subr.mxu0 0.0
        %2674 = vmatpush1.xpose.msra.mxu0 0.0
        %2675 = vmatprep.subr.mxu0 0.0
        %2676 = vmatpush1.xpose.msra.mxu0 0.0
        %2677 = vmatprep.subr.mxu0 0.0
        %2678 = vmatpush1.xpose.msra.mxu0 0.0
        %2679 = vmatprep.subr.mxu0 0.0
        %2680 = vmatpush1.xpose.msra.mxu0 0.0
        %2681 = vmatprep.subr.mxu0 0.0
        %2682 = vmatpush1.xpose.msra.mxu0 0.0
        %2683 = vmatprep.mubr.f32.mxu0 0.0
        %2684 = vmatmul.mubr.f32.gmra.mrb[0].mxu0 %v2615
        %v2685 = vpop.f32.mrb[0].mxu0
        %v2686 = vadd.f32 0.0, %v2685
        %v2687 = vpop.f32.mrb[0].mxu0
        %2688 = vdwg.mxu0
        %v2689 = vsel %vm1060, %v941, 0
        %v2691 = vsel %vm1060, %v1001, 0
        %2693 = vmatprep.subr.mxu0 0.0
        %2694 = vmatpush1.xpose.msra.mxu0 %v2691
        %2695 = vmatprep.subr.mxu0 0.0
        %2696 = vmatpush1.xpose.msra.mxu0 0.0
        %2697 = vmatprep.subr.mxu0 0.0
        %2698 = vmatpush1.xpose.msra.mxu0 0.0
        %2699 = vmatprep.subr.mxu0 0.0
        %2700 = vmatpush1.xpose.msra.mxu0 0.0
        %2701 = vmatprep.subr.mxu0 0.0
        %2702 = vmatpush1.xpose.msra.mxu0 0.0
        %2703 = vmatprep.subr.mxu0 0.0
        %2704 = vmatpush1.xpose.msra.mxu0 0.0
        %2705 = vmatprep.subr.mxu0 0.0
        %2706 = vmatpush1.xpose.msra.mxu0 0.0
        %2707 = vmatprep.subr.mxu0 0.0
        %2708 = vmatpush1.xpose.msra.mxu0 0.0
        %2709 = vmatprep.subr.mxu0 0.0
        %2710 = vmatpush1.xpose.msra.mxu0 0.0
        %2711 = vmatprep.subr.mxu0 0.0
        %2712 = vmatpush1.xpose.msra.mxu0 0.0
        %2713 = vmatprep.subr.mxu0 0.0
        %2714 = vmatpush1.xpose.msra.mxu0 0.0
        %2715 = vmatprep.subr.mxu0 0.0
        %2716 = vmatpush1.xpose.msra.mxu0 0.0
        %2717 = vmatprep.subr.mxu0 0.0
        %2718 = vmatpush1.xpose.msra.mxu0 0.0
        %2719 = vmatprep.subr.mxu0 0.0
        %2720 = vmatpush1.xpose.msra.mxu0 0.0
        %2721 = vmatprep.subr.mxu0 0.0
        %2722 = vmatpush1.xpose.msra.mxu0 0.0
        %2723 = vmatprep.subr.mxu0 0.0
        %2724 = vmatpush1.xpose.msra.mxu0 0.0
        %2725 = vmatprep.subr.mxu0 0.0
        %2726 = vmatpush1.xpose.msra.mxu0 0.0
        %2727 = vmatprep.subr.mxu0 0.0
        %2728 = vmatpush1.xpose.msra.mxu0 0.0
        %2729 = vmatprep.subr.mxu0 0.0
        %2730 = vmatpush1.xpose.msra.mxu0 0.0
        %2731 = vmatprep.subr.mxu0 0.0
        %2732 = vmatpush1.xpose.msra.mxu0 0.0
        %2733 = vmatprep.subr.mxu0 0.0
        %2734 = vmatpush1.xpose.msra.mxu0 0.0
        %2735 = vmatprep.subr.mxu0 0.0
        %2736 = vmatpush1.xpose.msra.mxu0 0.0
        %2737 = vmatprep.subr.mxu0 0.0
        %2738 = vmatpush1.xpose.msra.mxu0 0.0
        %2739 = vmatprep.subr.mxu0 0.0
        %2740 = vmatpush1.xpose.msra.mxu0 0.0
        %2741 = vmatprep.subr.mxu0 0.0
        %2742 = vmatpush1.xpose.msra.mxu0 0.0
        %2743 = vmatprep.subr.mxu0 0.0
        %2744 = vmatpush1.xpose.msra.mxu0 0.0
        %2745 = vmatprep.subr.mxu0 0.0
        %2746 = vmatpush1.xpose.msra.mxu0 0.0
        %2747 = vmatprep.subr.mxu0 0.0
        %2748 = vmatpush1.xpose.msra.mxu0 0.0
        %2749 = vmatprep.subr.mxu0 0.0
        %2750 = vmatpush1.xpose.msra.mxu0 0.0
        %2751 = vmatprep.subr.mxu0 0.0
        %2752 = vmatpush1.xpose.msra.mxu0 0.0
        %2753 = vmatprep.subr.mxu0 0.0
        %2754 = vmatpush1.xpose.msra.mxu0 0.0
        %2755 = vmatprep.subr.mxu0 0.0
        %2756 = vmatpush1.xpose.msra.mxu0 0.0
        %2757 = vmatprep.mubr.f32.mxu0 0.0
        %2758 = vmatmul.mubr.f32.gmra.mrb[0].mxu0 %v2689
        %v2759 = vpop.f32.mrb[0].mxu0
        %v2760 = vadd.f32 0.0, %v2759
        %v2761 = vpop.f32.mrb[0].mxu0
        %2762 = vdwg.mxu0
        %v2763 = vsel %vm1060, %v943, 0
        %v2765 = vsel %vm1060, %v1003, 0
        %2767 = vmatprep.subr.mxu0 0.0
        %2768 = vmatpush1.xpose.msra.mxu0 %v2765
        %2769 = vmatprep.subr.mxu0 0.0
        %2770 = vmatpush1.xpose.msra.mxu0 0.0
        %2771 = vmatprep.subr.mxu0 0.0
        %2772 = vmatpush1.xpose.msra.mxu0 0.0
        %2773 = vmatprep.subr.mxu0 0.0
        %2774 = vmatpush1.xpose.msra.mxu0 0.0
        %2775 = vmatprep.subr.mxu0 0.0
        %2776 = vmatpush1.xpose.msra.mxu0 0.0
        %2777 = vmatprep.subr.mxu0 0.0
        %2778 = vmatpush1.xpose.msra.mxu0 0.0
        %2779 = vmatprep.subr.mxu0 0.0
        %2780 = vmatpush1.xpose.msra.mxu0 0.0
        %2781 = vmatprep.subr.mxu0 0.0
        %2782 = vmatpush1.xpose.msra.mxu0 0.0
        %2783 = vmatprep.subr.mxu0 0.0
        %2784 = vmatpush1.xpose.msra.mxu0 0.0
        %2785 = vmatprep.subr.mxu0 0.0
        %2786 = vmatpush1.xpose.msra.mxu0 0.0
        %2787 = vmatprep.subr.mxu0 0.0
        %2788 = vmatpush1.xpose.msra.mxu0 0.0
        %2789 = vmatprep.subr.mxu0 0.0
        %2790 = vmatpush1.xpose.msra.mxu0 0.0
        %2791 = vmatprep.subr.mxu0 0.0
        %2792 = vmatpush1.xpose.msra.mxu0 0.0
        %2793 = vmatprep.subr.mxu0 0.0
        %2794 = vmatpush1.xpose.msra.mxu0 0.0
        %2795 = vmatprep.subr.mxu0 0.0
        %2796 = vmatpush1.xpose.msra.mxu0 0.0
        %2797 = vmatprep.subr.mxu0 0.0
        %2798 = vmatpush1.xpose.msra.mxu0 0.0
        %2799 = vmatprep.subr.mxu0 0.0
        %2800 = vmatpush1.xpose.msra.mxu0 0.0
        %2801 = vmatprep.subr.mxu0 0.0
        %2802 = vmatpush1.xpose.msra.mxu0 0.0
        %2803 = vmatprep.subr.mxu0 0.0
        %2804 = vmatpush1.xpose.msra.mxu0 0.0
        %2805 = vmatprep.subr.mxu0 0.0
        %2806 = vmatpush1.xpose.msra.mxu0 0.0
        %2807 = vmatprep.subr.mxu0 0.0
        %2808 = vmatpush1.xpose.msra.mxu0 0.0
        %2809 = vmatprep.subr.mxu0 0.0
        %2810 = vmatpush1.xpose.msra.mxu0 0.0
        %2811 = vmatprep.subr.mxu0 0.0
        %2812 = vmatpush1.xpose.msra.mxu0 0.0
        %2813 = vmatprep.subr.mxu0 0.0
        %2814 = vmatpush1.xpose.msra.mxu0 0.0
        %2815 = vmatprep.subr.mxu0 0.0
        %2816 = vmatpush1.xpose.msra.mxu0 0.0
        %2817 = vmatprep.subr.mxu0 0.0
        %2818 = vmatpush1.xpose.msra.mxu0 0.0
        %2819 = vmatprep.subr.mxu0 0.0
        %2820 = vmatpush1.xpose.msra.mxu0 0.0
        %2821 = vmatprep.subr.mxu0 0.0
        %2822 = vmatpush1.xpose.msra.mxu0 0.0
        %2823 = vmatprep.subr.mxu0 0.0
        %2824 = vmatpush1.xpose.msra.mxu0 0.0
        %2825 = vmatprep.subr.mxu0 0.0
        %2826 = vmatpush1.xpose.msra.mxu0 0.0
        %2827 = vmatprep.subr.mxu0 0.0
        %2828 = vmatpush1.xpose.msra.mxu0 0.0
        %2829 = vmatprep.subr.mxu0 0.0
        %2830 = vmatpush1.xpose.msra.mxu0 0.0
        %2831 = vmatprep.mubr.f32.mxu0 0.0
        %2832 = vmatmul.mubr.f32.gmra.mrb[0].mxu0 %v2763
        %v2833 = vpop.f32.mrb[0].mxu0
        %v2834 = vadd.f32 0.0, %v2833
        %v2835 = vpop.f32.mrb[0].mxu0
        %2836 = vdwg.mxu0
        %v2837 = vsel %vm1060, %v945, 0
        %v2839 = vsel %vm1060, %v1005, 0
        %2841 = vmatprep.subr.mxu0 0.0
        %2842 = vmatpush1.xpose.msra.mxu0 %v2839
        %2843 = vmatprep.subr.mxu0 0.0
        %2844 = vmatpush1.xpose.msra.mxu0 0.0
        %2845 = vmatprep.subr.mxu0 0.0
        %2846 = vmatpush1.xpose.msra.mxu0 0.0
        %2847 = vmatprep.subr.mxu0 0.0
        %2848 = vmatpush1.xpose.msra.mxu0 0.0
        %2849 = vmatprep.subr.mxu0 0.0
        %2850 = vmatpush1.xpose.msra.mxu0 0.0
        %2851 = vmatprep.subr.mxu0 0.0
        %2852 = vmatpush1.xpose.msra.mxu0 0.0
        %2853 = vmatprep.subr.mxu0 0.0
        %2854 = vmatpush1.xpose.msra.mxu0 0.0
        %2855 = vmatprep.subr.mxu0 0.0
        %2856 = vmatpush1.xpose.msra.mxu0 0.0
        %2857 = vmatprep.subr.mxu0 0.0
        %2858 = vmatpush1.xpose.msra.mxu0 0.0
        %2859 = vmatprep.subr.mxu0 0.0
        %2860 = vmatpush1.xpose.msra.mxu0 0.0
        %2861 = vmatprep.subr.mxu0 0.0
        %2862 = vmatpush1.xpose.msra.mxu0 0.0
        %2863 = vmatprep.subr.mxu0 0.0
        %2864 = vmatpush1.xpose.msra.mxu0 0.0
        %2865 = vmatprep.subr.mxu0 0.0
        %2866 = vmatpush1.xpose.msra.mxu0 0.0
        %2867 = vmatprep.subr.mxu0 0.0
        %2868 = vmatpush1.xpose.msra.mxu0 0.0
        %2869 = vmatprep.subr.mxu0 0.0
        %2870 = vmatpush1.xpose.msra.mxu0 0.0
        %2871 = vmatprep.subr.mxu0 0.0
        %2872 = vmatpush1.xpose.msra.mxu0 0.0
        %2873 = vmatprep.subr.mxu0 0.0
        %2874 = vmatpush1.xpose.msra.mxu0 0.0
        %2875 = vmatprep.subr.mxu0 0.0
        %2876 = vmatpush1.xpose.msra.mxu0 0.0
        %2877 = vmatprep.subr.mxu0 0.0
        %2878 = vmatpush1.xpose.msra.mxu0 0.0
        %2879 = vmatprep.subr.mxu0 0.0
        %2880 = vmatpush1.xpose.msra.mxu0 0.0
        %2881 = vmatprep.subr.mxu0 0.0
        %2882 = vmatpush1.xpose.msra.mxu0 0.0
        %2883 = vmatprep.subr.mxu0 0.0
        %2884 = vmatpush1.xpose.msra.mxu0 0.0
        %2885 = vmatprep.subr.mxu0 0.0
        %2886 = vmatpush1.xpose.msra.mxu0 0.0
        %2887 = vmatprep.subr.mxu0 0.0
        %2888 = vmatpush1.xpose.msra.mxu0 0.0
        %2889 = vmatprep.subr.mxu0 0.0
        %2890 = vmatpush1.xpose.msra.mxu0 0.0
        %2891 = vmatprep.subr.mxu0 0.0
        %2892 = vmatpush1.xpose.msra.mxu0 0.0
        %2893 = vmatprep.subr.mxu0 0.0
        %2894 = vmatpush1.xpose.msra.mxu0 0.0
        %2895 = vmatprep.subr.mxu0 0.0
        %2896 = vmatpush1.xpose.msra.mxu0 0.0
        %2897 = vmatprep.subr.mxu0 0.0
        %2898 = vmatpush1.xpose.msra.mxu0 0.0
        %2899 = vmatprep.subr.mxu0 0.0
        %2900 = vmatpush1.xpose.msra.mxu0 0.0
        %2901 = vmatprep.subr.mxu0 0.0
        %2902 = vmatpush1.xpose.msra.mxu0 0.0
        %2903 = vmatprep.subr.mxu0 0.0
        %2904 = vmatpush1.xpose.msra.mxu0 0.0
        %2905 = vmatprep.mubr.f32.mxu0 0.0
        %2906 = vmatmul.mubr.f32.gmra.mrb[0].mxu0 %v2837
        %v2907 = vpop.f32.mrb[0].mxu0
        %v2908 = vadd.f32 0.0, %v2907
        %v2909 = vpop.f32.mrb[0].mxu0
        %2910 = vdwg.mxu0
        %v2911 = vsel %vm1060, %v947, 0
        %v2913 = vsel %vm1060, %v1007, 0
        %2915 = vmatprep.subr.mxu0 0.0
        %2916 = vmatpush1.xpose.msra.mxu0 %v2913
        %2917 = vmatprep.subr.mxu0 0.0
        %2918 = vmatpush1.xpose.msra.mxu0 0.0
        %2919 = vmatprep.subr.mxu0 0.0
        %2920 = vmatpush1.xpose.msra.mxu0 0.0
        %2921 = vmatprep.subr.mxu0 0.0
        %2922 = vmatpush1.xpose.msra.mxu0 0.0
        %2923 = vmatprep.subr.mxu0 0.0
        %2924 = vmatpush1.xpose.msra.mxu0 0.0
        %2925 = vmatprep.subr.mxu0 0.0
        %2926 = vmatpush1.xpose.msra.mxu0 0.0
        %2927 = vmatprep.subr.mxu0 0.0
        %2928 = vmatpush1.xpose.msra.mxu0 0.0
        %2929 = vmatprep.subr.mxu0 0.0
        %2930 = vmatpush1.xpose.msra.mxu0 0.0
        %2931 = vmatprep.subr.mxu0 0.0
        %2932 = vmatpush1.xpose.msra.mxu0 0.0
        %2933 = vmatprep.subr.mxu0 0.0
        %2934 = vmatpush1.xpose.msra.mxu0 0.0
        %2935 = vmatprep.subr.mxu0 0.0
        %2936 = vmatpush1.xpose.msra.mxu0 0.0
        %2937 = vmatprep.subr.mxu0 0.0
        %2938 = vmatpush1.xpose.msra.mxu0 0.0
        %2939 = vmatprep.subr.mxu0 0.0
        %2940 = vmatpush1.xpose.msra.mxu0 0.0
        %2941 = vmatprep.subr.mxu0 0.0
        %2942 = vmatpush1.xpose.msra.mxu0 0.0
        %2943 = vmatprep.subr.mxu0 0.0
        %2944 = vmatpush1.xpose.msra.mxu0 0.0
        %2945 = vmatprep.subr.mxu0 0.0
        %2946 = vmatpush1.xpose.msra.mxu0 0.0
        %2947 = vmatprep.subr.mxu0 0.0
        %2948 = vmatpush1.xpose.msra.mxu0 0.0
        %2949 = vmatprep.subr.mxu0 0.0
        %2950 = vmatpush1.xpose.msra.mxu0 0.0
        %2951 = vmatprep.subr.mxu0 0.0
        %2952 = vmatpush1.xpose.msra.mxu0 0.0
        %2953 = vmatprep.subr.mxu0 0.0
        %2954 = vmatpush1.xpose.msra.mxu0 0.0
        %2955 = vmatprep.subr.mxu0 0.0
        %2956 = vmatpush1.xpose.msra.mxu0 0.0
        %2957 = vmatprep.subr.mxu0 0.0
        %2958 = vmatpush1.xpose.msra.mxu0 0.0
        %2959 = vmatprep.subr.mxu0 0.0
        %2960 = vmatpush1.xpose.msra.mxu0 0.0
        %2961 = vmatprep.subr.mxu0 0.0
        %2962 = vmatpush1.xpose.msra.mxu0 0.0
        %2963 = vmatprep.subr.mxu0 0.0
        %2964 = vmatpush1.xpose.msra.mxu0 0.0
        %2965 = vmatprep.subr.mxu0 0.0
        %2966 = vmatpush1.xpose.msra.mxu0 0.0
        %2967 = vmatprep.subr.mxu0 0.0
        %2968 = vmatpush1.xpose.msra.mxu0 0.0
        %2969 = vmatprep.subr.mxu0 0.0
        %2970 = vmatpush1.xpose.msra.mxu0 0.0
        %2971 = vmatprep.subr.mxu0 0.0
        %2972 = vmatpush1.xpose.msra.mxu0 0.0
        %2973 = vmatprep.subr.mxu0 0.0
        %2974 = vmatpush1.xpose.msra.mxu0 0.0
        %2975 = vmatprep.subr.mxu0 0.0
        %2976 = vmatpush1.xpose.msra.mxu0 0.0
        %2977 = vmatprep.subr.mxu0 0.0
        %2978 = vmatpush1.xpose.msra.mxu0 0.0
        %2979 = vmatprep.mubr.f32.mxu0 0.0
        %2980 = vmatmul.mubr.f32.gmra.mrb[0].mxu0 %v2911
        %v2981 = vpop.f32.mrb[0].mxu0
        %v2982 = vadd.f32 0.0, %v2981
        %v2983 = vpop.f32.mrb[0].mxu0
        %2984 = vdwg.mxu0
        %v2985 = vsel %vm1060, %v949, 0
        %v2987 = vsel %vm1060, %v1009, 0
        %2989 = vmatprep.subr.mxu0 0.0
        %2990 = vmatpush1.xpose.msra.mxu0 %v2987
        %2991 = vmatprep.subr.mxu0 0.0
        %2992 = vmatpush1.xpose.msra.mxu0 0.0
        %2993 = vmatprep.subr.mxu0 0.0
        %2994 = vmatpush1.xpose.msra.mxu0 0.0
        %2995 = vmatprep.subr.mxu0 0.0
        %2996 = vmatpush1.xpose.msra.mxu0 0.0
        %2997 = vmatprep.subr.mxu0 0.0
        %2998 = vmatpush1.xpose.msra.mxu0 0.0
        %2999 = vmatprep.subr.mxu0 0.0
        %3000 = vmatpush1.xpose.msra.mxu0 0.0
        %3001 = vmatprep.subr.mxu0 0.0
        %3002 = vmatpush1.xpose.msra.mxu0 0.0
        %3003 = vmatprep.subr.mxu0 0.0
        %3004 = vmatpush1.xpose.msra.mxu0 0.0
        %3005 = vmatprep.subr.mxu0 0.0
        %3006 = vmatpush1.xpose.msra.mxu0 0.0
        %3007 = vmatprep.subr.mxu0 0.0
        %3008 = vmatpush1.xpose.msra.mxu0 0.0
        %3009 = vmatprep.subr.mxu0 0.0
        %3010 = vmatpush1.xpose.msra.mxu0 0.0
        %3011 = vmatprep.subr.mxu0 0.0
        %3012 = vmatpush1.xpose.msra.mxu0 0.0
        %3013 = vmatprep.subr.mxu0 0.0
        %3014 = vmatpush1.xpose.msra.mxu0 0.0
        %3015 = vmatprep.subr.mxu0 0.0
        %3016 = vmatpush1.xpose.msra.mxu0 0.0
        %3017 = vmatprep.subr.mxu0 0.0
        %3018 = vmatpush1.xpose.msra.mxu0 0.0
        %3019 = vmatprep.subr.mxu0 0.0
        %3020 = vmatpush1.xpose.msra.mxu0 0.0
        %3021 = vmatprep.subr.mxu0 0.0
        %3022 = vmatpush1.xpose.msra.mxu0 0.0
        %3023 = vmatprep.subr.mxu0 0.0
        %3024 = vmatpush1.xpose.msra.mxu0 0.0
        %3025 = vmatprep.subr.mxu0 0.0
        %3026 = vmatpush1.xpose.msra.mxu0 0.0
        %3027 = vmatprep.subr.mxu0 0.0
        %3028 = vmatpush1.xpose.msra.mxu0 0.0
        %3029 = vmatprep.subr.mxu0 0.0
        %3030 = vmatpush1.xpose.msra.mxu0 0.0
        %3031 = vmatprep.subr.mxu0 0.0
        %3032 = vmatpush1.xpose.msra.mxu0 0.0
        %3033 = vmatprep.subr.mxu0 0.0
        %3034 = vmatpush1.xpose.msra.mxu0 0.0
        %3035 = vmatprep.subr.mxu0 0.0
        %3036 = vmatpush1.xpose.msra.mxu0 0.0
        %3037 = vmatprep.subr.mxu0 0.0
        %3038 = vmatpush1.xpose.msra.mxu0 0.0
        %3039 = vmatprep.subr.mxu0 0.0
        %3040 = vmatpush1.xpose.msra.mxu0 0.0
        %3041 = vmatprep.subr.mxu0 0.0
        %3042 = vmatpush1.xpose.msra.mxu0 0.0
        %3043 = vmatprep.subr.mxu0 0.0
        %3044 = vmatpush1.xpose.msra.mxu0 0.0
        %3045 = vmatprep.subr.mxu0 0.0
        %3046 = vmatpush1.xpose.msra.mxu0 0.0
        %3047 = vmatprep.subr.mxu0 0.0
        %3048 = vmatpush1.xpose.msra.mxu0 0.0
        %3049 = vmatprep.subr.mxu0 0.0
        %3050 = vmatpush1.xpose.msra.mxu0 0.0
        %3051 = vmatprep.subr.mxu0 0.0
        %3052 = vmatpush1.xpose.msra.mxu0 0.0
        %3053 = vmatprep.mubr.f32.mxu0 0.0
        %3054 = vmatmul.mubr.f32.gmra.mrb[0].mxu0 %v2985
        %v3055 = vpop.f32.mrb[0].mxu0
        %v3056 = vadd.f32 0.0, %v3055
        %v3057 = vpop.f32.mrb[0].mxu0
        %3058 = vdwg.mxu0
        %v3059 = vsel %vm1060, %v951, 0
        %v3061 = vsel %vm1060, %v1011, 0
        %3063 = vmatprep.subr.mxu0 0.0
        %3064 = vmatpush1.xpose.msra.mxu0 %v3061
        %3065 = vmatprep.subr.mxu0 0.0
        %3066 = vmatpush1.xpose.msra.mxu0 0.0
        %3067 = vmatprep.subr.mxu0 0.0
        %3068 = vmatpush1.xpose.msra.mxu0 0.0
        %3069 = vmatprep.subr.mxu0 0.0
        %3070 = vmatpush1.xpose.msra.mxu0 0.0
        %3071 = vmatprep.subr.mxu0 0.0
        %3072 = vmatpush1.xpose.msra.mxu0 0.0
        %3073 = vmatprep.subr.mxu0 0.0
        %3074 = vmatpush1.xpose.msra.mxu0 0.0
        %3075 = vmatprep.subr.mxu0 0.0
        %3076 = vmatpush1.xpose.msra.mxu0 0.0
        %3077 = vmatprep.subr.mxu0 0.0
        %3078 = vmatpush1.xpose.msra.mxu0 0.0
        %3079 = vmatprep.subr.mxu0 0.0
        %3080 = vmatpush1.xpose.msra.mxu0 0.0
        %3081 = vmatprep.subr.mxu0 0.0
        %3082 = vmatpush1.xpose.msra.mxu0 0.0
        %3083 = vmatprep.subr.mxu0 0.0
        %3084 = vmatpush1.xpose.msra.mxu0 0.0
        %3085 = vmatprep.subr.mxu0 0.0
        %3086 = vmatpush1.xpose.msra.mxu0 0.0
        %3087 = vmatprep.subr.mxu0 0.0
        %3088 = vmatpush1.xpose.msra.mxu0 0.0
        %3089 = vmatprep.subr.mxu0 0.0
        %3090 = vmatpush1.xpose.msra.mxu0 0.0
        %3091 = vmatprep.subr.mxu0 0.0
        %3092 = vmatpush1.xpose.msra.mxu0 0.0
        %3093 = vmatprep.subr.mxu0 0.0
        %3094 = vmatpush1.xpose.msra.mxu0 0.0
        %3095 = vmatprep.subr.mxu0 0.0
        %3096 = vmatpush1.xpose.msra.mxu0 0.0
        %3097 = vmatprep.subr.mxu0 0.0
        %3098 = vmatpush1.xpose.msra.mxu0 0.0
        %3099 = vmatprep.subr.mxu0 0.0
        %3100 = vmatpush1.xpose.msra.mxu0 0.0
        %3101 = vmatprep.subr.mxu0 0.0
        %3102 = vmatpush1.xpose.msra.mxu0 0.0
        %3103 = vmatprep.subr.mxu0 0.0
        %3104 = vmatpush1.xpose.msra.mxu0 0.0
        %3105 = vmatprep.subr.mxu0 0.0
        %3106 = vmatpush1.xpose.msra.mxu0 0.0
        %3107 = vmatprep.subr.mxu0 0.0
        %3108 = vmatpush1.xpose.msra.mxu0 0.0
        %3109 = vmatprep.subr.mxu0 0.0
        %3110 = vmatpush1.xpose.msra.mxu0 0.0
        %3111 = vmatprep.subr.mxu0 0.0
        %3112 = vmatpush1.xpose.msra.mxu0 0.0
        %3113 = vmatprep.subr.mxu0 0.0
        %3114 = vmatpush1.xpose.msra.mxu0 0.0
        %3115 = vmatprep.subr.mxu0 0.0
        %3116 = vmatpush1.xpose.msra.mxu0 0.0
        %3117 = vmatprep.subr.mxu0 0.0
        %3118 = vmatpush1.xpose.msra.mxu0 0.0
        %3119 = vmatprep.subr.mxu0 0.0
        %3120 = vmatpush1.xpose.msra.mxu0 0.0
        %3121 = vmatprep.subr.mxu0 0.0
        %3122 = vmatpush1.xpose.msra.mxu0 0.0
        %3123 = vmatprep.subr.mxu0 0.0
        %3124 = vmatpush1.xpose.msra.mxu0 0.0
        %3125 = vmatprep.subr.mxu0 0.0
        %3126 = vmatpush1.xpose.msra.mxu0 0.0
        %3127 = vmatprep.mubr.f32.mxu0 0.0
        %3128 = vmatmul.mubr.f32.gmra.mrb[0].mxu0 %v3059
        %v3129 = vpop.f32.mrb[0].mxu0
        %v3130 = vadd.f32 0.0, %v3129
        %v3131 = vpop.f32.mrb[0].mxu0
        %3132 = vdwg.mxu0
        %v3133 = vsel %vm1060, %v953, 0
        %v3135 = vsel %vm1060, %v1013, 0
        %3137 = vmatprep.subr.mxu0 0.0
        %3138 = vmatpush1.xpose.msra.mxu0 %v3135
        %3139 = vmatprep.subr.mxu0 0.0
        %3140 = vmatpush1.xpose.msra.mxu0 0.0
        %3141 = vmatprep.subr.mxu0 0.0
        %3142 = vmatpush1.xpose.msra.mxu0 0.0
        %3143 = vmatprep.subr.mxu0 0.0
        %3144 = vmatpush1.xpose.msra.mxu0 0.0
        %3145 = vmatprep.subr.mxu0 0.0
        %3146 = vmatpush1.xpose.msra.mxu0 0.0
        %3147 = vmatprep.subr.mxu0 0.0
        %3148 = vmatpush1.xpose.msra.mxu0 0.0
        %3149 = vmatprep.subr.mxu0 0.0
        %3150 = vmatpush1.xpose.msra.mxu0 0.0
        %3151 = vmatprep.subr.mxu0 0.0
        %3152 = vmatpush1.xpose.msra.mxu0 0.0
        %3153 = vmatprep.subr.mxu0 0.0
        %3154 = vmatpush1.xpose.msra.mxu0 0.0
        %3155 = vmatprep.subr.mxu0 0.0
        %3156 = vmatpush1.xpose.msra.mxu0 0.0
        %3157 = vmatprep.subr.mxu0 0.0
        %3158 = vmatpush1.xpose.msra.mxu0 0.0
        %3159 = vmatprep.subr.mxu0 0.0
        %3160 = vmatpush1.xpose.msra.mxu0 0.0
        %3161 = vmatprep.subr.mxu0 0.0
        %3162 = vmatpush1.xpose.msra.mxu0 0.0
        %3163 = vmatprep.subr.mxu0 0.0
        %3164 = vmatpush1.xpose.msra.mxu0 0.0
        %3165 = vmatprep.subr.mxu0 0.0
        %3166 = vmatpush1.xpose.msra.mxu0 0.0
        %3167 = vmatprep.subr.mxu0 0.0
        %3168 = vmatpush1.xpose.msra.mxu0 0.0
        %3169 = vmatprep.subr.mxu0 0.0
        %3170 = vmatpush1.xpose.msra.mxu0 0.0
        %3171 = vmatprep.subr.mxu0 0.0
        %3172 = vmatpush1.xpose.msra.mxu0 0.0
        %3173 = vmatprep.subr.mxu0 0.0
        %3174 = vmatpush1.xpose.msra.mxu0 0.0
        %3175 = vmatprep.subr.mxu0 0.0
        %3176 = vmatpush1.xpose.msra.mxu0 0.0
        %3177 = vmatprep.subr.mxu0 0.0
        %3178 = vmatpush1.xpose.msra.mxu0 0.0
        %3179 = vmatprep.subr.mxu0 0.0
        %3180 = vmatpush1.xpose.msra.mxu0 0.0
        %3181 = vmatprep.subr.mxu0 0.0
        %3182 = vmatpush1.xpose.msra.mxu0 0.0
        %3183 = vmatprep.subr.mxu0 0.0
        %3184 = vmatpush1.xpose.msra.mxu0 0.0
        %3185 = vmatprep.subr.mxu0 0.0
        %3186 = vmatpush1.xpose.msra.mxu0 0.0
        %3187 = vmatprep.subr.mxu0 0.0
        %3188 = vmatpush1.xpose.msra.mxu0 0.0
        %3189 = vmatprep.subr.mxu0 0.0
        %3190 = vmatpush1.xpose.msra.mxu0 0.0
        %3191 = vmatprep.subr.mxu0 0.0
        %3192 = vmatpush1.xpose.msra.mxu0 0.0
        %3193 = vmatprep.subr.mxu0 0.0
        %3194 = vmatpush1.xpose.msra.mxu0 0.0
        %3195 = vmatprep.subr.mxu0 0.0
        %3196 = vmatpush1.xpose.msra.mxu0 0.0
        %3197 = vmatprep.subr.mxu0 0.0
        %3198 = vmatpush1.xpose.msra.mxu0 0.0
        %3199 = vmatprep.subr.mxu0 0.0
        %3200 = vmatpush1.xpose.msra.mxu0 0.0
        %3201 = vmatprep.mubr.f32.mxu0 0.0
        %3202 = vmatmul.mubr.f32.gmra.mrb[0].mxu0 %v3133
        %v3203 = vpop.f32.mrb[0].mxu0
        %v3204 = vadd.f32 0.0, %v3203
        %v3205 = vpop.f32.mrb[0].mxu0
        %3206 = vdwg.mxu0
        %v3207 = vsel %vm1060, %v955, 0
        %v3209 = vsel %vm1060, %v1015, 0
        %3211 = vmatprep.subr.mxu0 0.0
        %3212 = vmatpush1.xpose.msra.mxu0 %v3209
        %3213 = vmatprep.subr.mxu0 0.0
        %3214 = vmatpush1.xpose.msra.mxu0 0.0
        %3215 = vmatprep.subr.mxu0 0.0
        %3216 = vmatpush1.xpose.msra.mxu0 0.0
        %3217 = vmatprep.subr.mxu0 0.0
        %3218 = vmatpush1.xpose.msra.mxu0 0.0
        %3219 = vmatprep.subr.mxu0 0.0
        %3220 = vmatpush1.xpose.msra.mxu0 0.0
        %3221 = vmatprep.subr.mxu0 0.0
        %3222 = vmatpush1.xpose.msra.mxu0 0.0
        %3223 = vmatprep.subr.mxu0 0.0
        %3224 = vmatpush1.xpose.msra.mxu0 0.0
        %3225 = vmatprep.subr.mxu0 0.0
        %3226 = vmatpush1.xpose.msra.mxu0 0.0
        %3227 = vmatprep.subr.mxu0 0.0
        %3228 = vmatpush1.xpose.msra.mxu0 0.0
        %3229 = vmatprep.subr.mxu0 0.0
        %3230 = vmatpush1.xpose.msra.mxu0 0.0
        %3231 = vmatprep.subr.mxu0 0.0
        %3232 = vmatpush1.xpose.msra.mxu0 0.0
        %3233 = vmatprep.subr.mxu0 0.0
        %3234 = vmatpush1.xpose.msra.mxu0 0.0
        %3235 = vmatprep.subr.mxu0 0.0
        %3236 = vmatpush1.xpose.msra.mxu0 0.0
        %3237 = vmatprep.subr.mxu0 0.0
        %3238 = vmatpush1.xpose.msra.mxu0 0.0
        %3239 = vmatprep.subr.mxu0 0.0
        %3240 = vmatpush1.xpose.msra.mxu0 0.0
        %3241 = vmatprep.subr.mxu0 0.0
        %3242 = vmatpush1.xpose.msra.mxu0 0.0
        %3243 = vmatprep.subr.mxu0 0.0
        %3244 = vmatpush1.xpose.msra.mxu0 0.0
        %3245 = vmatprep.subr.mxu0 0.0
        %3246 = vmatpush1.xpose.msra.mxu0 0.0
        %3247 = vmatprep.subr.mxu0 0.0
        %3248 = vmatpush1.xpose.msra.mxu0 0.0
        %3249 = vmatprep.subr.mxu0 0.0
        %3250 = vmatpush1.xpose.msra.mxu0 0.0
        %3251 = vmatprep.subr.mxu0 0.0
        %3252 = vmatpush1.xpose.msra.mxu0 0.0
        %3253 = vmatprep.subr.mxu0 0.0
        %3254 = vmatpush1.xpose.msra.mxu0 0.0
        %3255 = vmatprep.subr.mxu0 0.0
        %3256 = vmatpush1.xpose.msra.mxu0 0.0
        %3257 = vmatprep.subr.mxu0 0.0
        %3258 = vmatpush1.xpose.msra.mxu0 0.0
        %3259 = vmatprep.subr.mxu0 0.0
        %3260 = vmatpush1.xpose.msra.mxu0 0.0
        %3261 = vmatprep.subr.mxu0 0.0
        %3262 = vmatpush1.xpose.msra.mxu0 0.0
        %3263 = vmatprep.subr.mxu0 0.0
        %3264 = vmatpush1.xpose.msra.mxu0 0.0
        %3265 = vmatprep.subr.mxu0 0.0
        %3266 = vmatpush1.xpose.msra.mxu0 0.0
        %3267 = vmatprep.subr.mxu0 0.0
        %3268 = vmatpush1.xpose.msra.mxu0 0.0
        %3269 = vmatprep.subr.mxu0 0.0
        %3270 = vmatpush1.xpose.msra.mxu0 0.0
        %3271 = vmatprep.subr.mxu0 0.0
        %3272 = vmatpush1.xpose.msra.mxu0 0.0
        %3273 = vmatprep.subr.mxu0 0.0
        %3274 = vmatpush1.xpose.msra.mxu0 0.0
        %3275 = vmatprep.mubr.f32.mxu0 0.0
        %3276 = vmatmul.mubr.f32.gmra.mrb[0].mxu0 %v3207
        %v3277 = vpop.f32.mrb[0].mxu0
        %v3278 = vadd.f32 0.0, %v3277
        %v3279 = vpop.f32.mrb[0].mxu0
        %3280 = vdwg.mxu0
        %v3281 = vsel %vm1060, %v957, 0
        %v3283 = vsel %vm1060, %v1017, 0
        %3285 = vmatprep.subr.mxu0 0.0
        %3286 = vmatpush1.xpose.msra.mxu0 %v3283
        %3287 = vmatprep.subr.mxu0 0.0
        %3288 = vmatpush1.xpose.msra.mxu0 0.0
        %3289 = vmatprep.subr.mxu0 0.0
        %3290 = vmatpush1.xpose.msra.mxu0 0.0
        %3291 = vmatprep.subr.mxu0 0.0
        %3292 = vmatpush1.xpose.msra.mxu0 0.0
        %3293 = vmatprep.subr.mxu0 0.0
        %3294 = vmatpush1.xpose.msra.mxu0 0.0
        %3295 = vmatprep.subr.mxu0 0.0
        %3296 = vmatpush1.xpose.msra.mxu0 0.0
        %3297 = vmatprep.subr.mxu0 0.0
        %3298 = vmatpush1.xpose.msra.mxu0 0.0
        %3299 = vmatprep.subr.mxu0 0.0
        %3300 = vmatpush1.xpose.msra.mxu0 0.0
        %3301 = vmatprep.subr.mxu0 0.0
        %3302 = vmatpush1.xpose.msra.mxu0 0.0
        %3303 = vmatprep.subr.mxu0 0.0
        %3304 = vmatpush1.xpose.msra.mxu0 0.0
        %3305 = vmatprep.subr.mxu0 0.0
        %3306 = vmatpush1.xpose.msra.mxu0 0.0
        %3307 = vmatprep.subr.mxu0 0.0
        %3308 = vmatpush1.xpose.msra.mxu0 0.0
        %3309 = vmatprep.subr.mxu0 0.0
        %3310 = vmatpush1.xpose.msra.mxu0 0.0
        %3311 = vmatprep.subr.mxu0 0.0
        %3312 = vmatpush1.xpose.msra.mxu0 0.0
        %3313 = vmatprep.subr.mxu0 0.0
        %3314 = vmatpush1.xpose.msra.mxu0 0.0
        %3315 = vmatprep.subr.mxu0 0.0
        %3316 = vmatpush1.xpose.msra.mxu0 0.0
        %3317 = vmatprep.subr.mxu0 0.0
        %3318 = vmatpush1.xpose.msra.mxu0 0.0
        %3319 = vmatprep.subr.mxu0 0.0
        %3320 = vmatpush1.xpose.msra.mxu0 0.0
        %3321 = vmatprep.subr.mxu0 0.0
        %3322 = vmatpush1.xpose.msra.mxu0 0.0
        %3323 = vmatprep.subr.mxu0 0.0
        %3324 = vmatpush1.xpose.msra.mxu0 0.0
        %3325 = vmatprep.subr.mxu0 0.0
        %3326 = vmatpush1.xpose.msra.mxu0 0.0
        %3327 = vmatprep.subr.mxu0 0.0
        %3328 = vmatpush1.xpose.msra.mxu0 0.0
        %3329 = vmatprep.subr.mxu0 0.0
        %3330 = vmatpush1.xpose.msra.mxu0 0.0
        %3331 = vmatprep.subr.mxu0 0.0
        %3332 = vmatpush1.xpose.msra.mxu0 0.0
        %3333 = vmatprep.subr.mxu0 0.0
        %3334 = vmatpush1.xpose.msra.mxu0 0.0
        %3335 = vmatprep.subr.mxu0 0.0
        %3336 = vmatpush1.xpose.msra.mxu0 0.0
        %3337 = vmatprep.subr.mxu0 0.0
        %3338 = vmatpush1.xpose.msra.mxu0 0.0
        %3339 = vmatprep.subr.mxu0 0.0
        %3340 = vmatpush1.xpose.msra.mxu0 0.0
        %3341 = vmatprep.subr.mxu0 0.0
        %3342 = vmatpush1.xpose.msra.mxu0 0.0
        %3343 = vmatprep.subr.mxu0 0.0
        %3344 = vmatpush1.xpose.msra.mxu0 0.0
        %3345 = vmatprep.subr.mxu0 0.0
        %3346 = vmatpush1.xpose.msra.mxu0 0.0
        %3347 = vmatprep.subr.mxu0 0.0
        %3348 = vmatpush1.xpose.msra.mxu0 0.0
        %3349 = vmatprep.mubr.f32.mxu0 0.0
        %3350 = vmatmul.mubr.f32.gmra.mrb[0].mxu0 %v3281
        %v3351 = vpop.f32.mrb[0].mxu0
        %v3352 = vadd.f32 0.0, %v3351
        %v3353 = vpop.f32.mrb[0].mxu0
        %3354 = vdwg.mxu0
        %v3355 = vsel %vm1060, %v959, 0
        %v3357 = vsel %vm1060, %v1019, 0
        %3359 = vmatprep.subr.mxu0 0.0
        %3360 = vmatpush1.xpose.msra.mxu0 %v3357
        %3361 = vmatprep.subr.mxu0 0.0
        %3362 = vmatpush1.xpose.msra.mxu0 0.0
        %3363 = vmatprep.subr.mxu0 0.0
        %3364 = vmatpush1.xpose.msra.mxu0 0.0
        %3365 = vmatprep.subr.mxu0 0.0
        %3366 = vmatpush1.xpose.msra.mxu0 0.0
        %3367 = vmatprep.subr.mxu0 0.0
        %3368 = vmatpush1.xpose.msra.mxu0 0.0
        %3369 = vmatprep.subr.mxu0 0.0
        %3370 = vmatpush1.xpose.msra.mxu0 0.0
        %3371 = vmatprep.subr.mxu0 0.0
        %3372 = vmatpush1.xpose.msra.mxu0 0.0
        %3373 = vmatprep.subr.mxu0 0.0
        %3374 = vmatpush1.xpose.msra.mxu0 0.0
        %3375 = vmatprep.subr.mxu0 0.0
        %3376 = vmatpush1.xpose.msra.mxu0 0.0
        %3377 = vmatprep.subr.mxu0 0.0
        %3378 = vmatpush1.xpose.msra.mxu0 0.0
        %3379 = vmatprep.subr.mxu0 0.0
        %3380 = vmatpush1.xpose.msra.mxu0 0.0
        %3381 = vmatprep.subr.mxu0 0.0
        %3382 = vmatpush1.xpose.msra.mxu0 0.0
        %3383 = vmatprep.subr.mxu0 0.0
        %3384 = vmatpush1.xpose.msra.mxu0 0.0
        %3385 = vmatprep.subr.mxu0 0.0
        %3386 = vmatpush1.xpose.msra.mxu0 0.0
        %3387 = vmatprep.subr.mxu0 0.0
        %3388 = vmatpush1.xpose.msra.mxu0 0.0
        %3389 = vmatprep.subr.mxu0 0.0
        %3390 = vmatpush1.xpose.msra.mxu0 0.0
        %3391 = vmatprep.subr.mxu0 0.0
        %3392 = vmatpush1.xpose.msra.mxu0 0.0
        %3393 = vmatprep.subr.mxu0 0.0
        %3394 = vmatpush1.xpose.msra.mxu0 0.0
        %3395 = vmatprep.subr.mxu0 0.0
        %3396 = vmatpush1.xpose.msra.mxu0 0.0
        %3397 = vmatprep.subr.mxu0 0.0
        %3398 = vmatpush1.xpose.msra.mxu0 0.0
        %3399 = vmatprep.subr.mxu0 0.0
        %3400 = vmatpush1.xpose.msra.mxu0 0.0
        %3401 = vmatprep.subr.mxu0 0.0
        %3402 = vmatpush1.xpose.msra.mxu0 0.0
        %3403 = vmatprep.subr.mxu0 0.0
        %3404 = vmatpush1.xpose.msra.mxu0 0.0
        %3405 = vmatprep.subr.mxu0 0.0
        %3406 = vmatpush1.xpose.msra.mxu0 0.0
        %3407 = vmatprep.subr.mxu0 0.0
        %3408 = vmatpush1.xpose.msra.mxu0 0.0
        %3409 = vmatprep.subr.mxu0 0.0
        %3410 = vmatpush1.xpose.msra.mxu0 0.0
        %3411 = vmatprep.subr.mxu0 0.0
        %3412 = vmatpush1.xpose.msra.mxu0 0.0
        %3413 = vmatprep.subr.mxu0 0.0
        %3414 = vmatpush1.xpose.msra.mxu0 0.0
        %3415 = vmatprep.subr.mxu0 0.0
        %3416 = vmatpush1.xpose.msra.mxu0 0.0
        %3417 = vmatprep.subr.mxu0 0.0
        %3418 = vmatpush1.xpose.msra.mxu0 0.0
        %3419 = vmatprep.subr.mxu0 0.0
        %3420 = vmatpush1.xpose.msra.mxu0 0.0
        %3421 = vmatprep.subr.mxu0 0.0
        %3422 = vmatpush1.xpose.msra.mxu0 0.0
        %3423 = vmatprep.mubr.f32.mxu0 0.0
        %3424 = vmatmul.mubr.f32.gmra.mrb[0].mxu0 %v3355
        %v3425 = vpop.f32.mrb[0].mxu0
        %v3426 = vadd.f32 0.0, %v3425
        %v3427 = vpop.f32.mrb[0].mxu0
        %3428 = vdwg.mxu0
        %v3429 = vlaneseq
        %v3430 = vshrl.u32 %v3429, 7
        %v3431 = vlaneseq
        %v3432 = vand.u32 %v3431, 127
        %vm3433 = vcmp.le.s32.totalorder %v3432, %v3430
        %v3434 = vsel %vm3433, 1, 0
        %vm3435 = vcmp.eq.s32.totalorder %v3434, 1
        %v3436 = vsel %vm3435, %v1132, -3.4028235e+38
        %v3437 = vsel %vm3435, %v1206, -3.4028235e+38
        %v3438 = vsel %vm3435, %v1280, -3.4028235e+38
        %v3439 = vsel %vm3435, %v1354, -3.4028235e+38
        %v3440 = vsel %vm3435, %v1428, -3.4028235e+38
        %v3441 = vsel %vm3435, %v1502, -3.4028235e+38
        %v3442 = vsel %vm3435, %v1576, -3.4028235e+38
        %v3443 = vsel %vm3435, %v1650, -3.4028235e+38
        %v3444 = vsel %vm3435, %v1724, -3.4028235e+38
        %v3445 = vsel %vm3435, %v1798, -3.4028235e+38
        %v3446 = vsel %vm3435, %v1872, -3.4028235e+38
        %v3447 = vsel %vm3435, %v1946, -3.4028235e+38
        %v3448 = vsel %vm3435, %v2020, -3.4028235e+38
        %v3449 = vsel %vm3435, %v2094, -3.4028235e+38
        %v3450 = vsel %vm3435, %v2168, -3.4028235e+38
        %v3451 = vsel %vm3435, %v2242, -3.4028235e+38
        %v3452 = vsel %vm3435, %v2316, -3.4028235e+38
        %v3453 = vsel %vm3435, %v2390, -3.4028235e+38
        %v3454 = vsel %vm3435, %v2464, -3.4028235e+38
        %v3455 = vsel %vm3435, %v2538, -3.4028235e+38
        %v3456 = vsel %vm3435, %v2612, -3.4028235e+38
        %v3457 = vsel %vm3435, %v2686, -3.4028235e+38
        %v3458 = vsel %vm3435, %v2760, -3.4028235e+38
        %v3459 = vsel %vm3435, %v2834, -3.4028235e+38
        %v3460 = vsel %vm3435, %v2908, -3.4028235e+38
        %v3461 = vsel %vm3435, %v2982, -3.4028235e+38
        %v3462 = vsel %vm3435, %v3056, -3.4028235e+38
        %v3463 = vsel %vm3435, %v3130, -3.4028235e+38
        %v3464 = vsel %vm3435, %v3204, -3.4028235e+38
        %v3465 = vsel %vm3435, %v3278, -3.4028235e+38
        %v3466 = vsel %vm3435, %v3352, -3.4028235e+38
        %v3467 = vsel %vm3435, %v3426, -3.4028235e+38
        %v3468 = vsel %vm1060, %v3436, -inf
        %3469 = vmax.xlane.f32.xlu0 %v3468
        %v3470 = vpop.xlane.xlu0 %3469
        %v3471 = vsel %vm1060, %v3437, -inf
        %3472 = vmax.xlane.f32.xlu0 %v3471
        %v3473 = vpop.xlane.xlu0 %3472
        %v3474 = vsel %vm1060, %v3438, -inf
        %3475 = vmax.xlane.f32.xlu0 %v3474
        %v3476 = vpop.xlane.xlu0 %3475
        %v3477 = vsel %vm1060, %v3439, -inf
        %3478 = vmax.xlane.f32.xlu0 %v3477
        %v3479 = vpop.xlane.xlu0 %3478
        %v3480 = vsel %vm1060, %v3440, -inf
        %3481 = vmax.xlane.f32.xlu0 %v3480
        %v3482 = vpop.xlane.xlu0 %3481
        %v3483 = vsel %vm1060, %v3441, -inf
        %3484 = vmax.xlane.f32.xlu0 %v3483
        %v3485 = vpop.xlane.xlu0 %3484
        %v3486 = vsel %vm1060, %v3442, -inf
        %3487 = vmax.xlane.f32.xlu0 %v3486
        %v3488 = vpop.xlane.xlu0 %3487
        %v3489 = vsel %vm1060, %v3443, -inf
        %3490 = vmax.xlane.f32.xlu0 %v3489
        %v3491 = vpop.xlane.xlu0 %3490
        %v3492 = vsel %vm1060, %v3444, -inf
        %3493 = vmax.xlane.f32.xlu0 %v3492
        %v3494 = vpop.xlane.xlu0 %3493
        %v3495 = vsel %vm1060, %v3445, -inf
        %3496 = vmax.xlane.f32.xlu0 %v3495
        %v3497 = vpop.xlane.xlu0 %3496
        %v3498 = vsel %vm1060, %v3446, -inf
        %3499 = vmax.xlane.f32.xlu0 %v3498
        %v3500 = vpop.xlane.xlu0 %3499
        %v3501 = vsel %vm1060, %v3447, -inf
        %3502 = vmax.xlane.f32.xlu0 %v3501
        %v3503 = vpop.xlane.xlu0 %3502
        %v3504 = vsel %vm1060, %v3448, -inf
        %3505 = vmax.xlane.f32.xlu0 %v3504
        %v3506 = vpop.xlane.xlu0 %3505
        %v3507 = vsel %vm1060, %v3449, -inf
        %3508 = vmax.xlane.f32.xlu0 %v3507
        %v3509 = vpop.xlane.xlu0 %3508
        %v3510 = vsel %vm1060, %v3450, -inf
        %3511 = vmax.xlane.f32.xlu0 %v3510
        %v3512 = vpop.xlane.xlu0 %3511
        %v3513 = vsel %vm1060, %v3451, -inf
        %3514 = vmax.xlane.f32.xlu0 %v3513
        %v3515 = vpop.xlane.xlu0 %3514
        %v3516 = vsel %vm1060, %v3452, -inf
        %3517 = vmax.xlane.f32.xlu0 %v3516
        %v3518 = vpop.xlane.xlu0 %3517
        %v3519 = vsel %vm1060, %v3453, -inf
        %3520 = vmax.xlane.f32.xlu0 %v3519
        %v3521 = vpop.xlane.xlu0 %3520
        %v3522 = vsel %vm1060, %v3454, -inf
        %3523 = vmax.xlane.f32.xlu0 %v3522
        %v3524 = vpop.xlane.xlu0 %3523
        %v3525 = vsel %vm1060, %v3455, -inf
        %3526 = vmax.xlane.f32.xlu0 %v3525
        %v3527 = vpop.xlane.xlu0 %3526
        %v3528 = vsel %vm1060, %v3456, -inf
        %3529 = vmax.xlane.f32.xlu0 %v3528
        %v3530 = vpop.xlane.xlu0 %3529
        %v3531 = vsel %vm1060, %v3457, -inf
        %3532 = vmax.xlane.f32.xlu0 %v3531
        %v3533 = vpop.xlane.xlu0 %3532
        %v3534 = vsel %vm1060, %v3458, -inf
        %3535 = vmax.xlane.f32.xlu0 %v3534
        %v3536 = vpop.xlane.xlu0 %3535
        %v3537 = vsel %vm1060, %v3459, -inf
        %3538 = vmax.xlane.f32.xlu0 %v3537
        %v3539 = vpop.xlane.xlu0 %3538
        %v3540 = vsel %vm1060, %v3460, -inf
        %3541 = vmax.xlane.f32.xlu0 %v3540
        %v3542 = vpop.xlane.xlu0 %3541
        %v3543 = vsel %vm1060, %v3461, -inf
        %3544 = vmax.xlane.f32.xlu0 %v3543
        %v3545 = vpop.xlane.xlu0 %3544
        %v3546 = vsel %vm1060, %v3462, -inf
        %3547 = vmax.xlane.f32.xlu0 %v3546
        %v3548 = vpop.xlane.xlu0 %3547
        %v3549 = vsel %vm1060, %v3463, -inf
        %3550 = vmax.xlane.f32.xlu0 %v3549
        %v3551 = vpop.xlane.xlu0 %3550
        %v3552 = vsel %vm1060, %v3464, -inf
        %3553 = vmax.xlane.f32.xlu0 %v3552
        %v3554 = vpop.xlane.xlu0 %3553
        %v3555 = vsel %vm1060, %v3465, -inf
        %3556 = vmax.xlane.f32.xlu0 %v3555
        %v3557 = vpop.xlane.xlu0 %3556
        %v3558 = vsel %vm1060, %v3466, -inf
        %3559 = vmax.xlane.f32.xlu0 %v3558
        %v3560 = vpop.xlane.xlu0 %3559
        %v3561 = vsel %vm1060, %v3467, -inf
        %3562 = vmax.xlane.f32.xlu0 %v3561
        %v3563 = vpop.xlane.xlu0 %3562
        %v3564 = vsub.f32 %v3436, %v3470
        %v3565 = vsub.f32 %v3437, %v3473
        %v3566 = vsub.f32 %v3438, %v3476
        %v3567 = vsub.f32 %v3439, %v3479
        %v3568 = vsub.f32 %v3440, %v3482
        %v3569 = vsub.f32 %v3441, %v3485
        %v3570 = vsub.f32 %v3442, %v3488
        %v3571 = vsub.f32 %v3443, %v3491
        %v3572 = vsub.f32 %v3444, %v3494
        %v3573 = vsub.f32 %v3445, %v3497
        %v3574 = vsub.f32 %v3446, %v3500
        %v3575 = vsub.f32 %v3447, %v3503
        %v3576 = vsub.f32 %v3448, %v3506
        %v3577 = vsub.f32 %v3449, %v3509
        %v3578 = vsub.f32 %v3450, %v3512
        %v3579 = vsub.f32 %v3451, %v3515
        %v3580 = vsub.f32 %v3452, %v3518
        %v3581 = vsub.f32 %v3453, %v3521
        %v3582 = vsub.f32 %v3454, %v3524
        %v3583 = vsub.f32 %v3455, %v3527
        %v3584 = vsub.f32 %v3456, %v3530
        %v3585 = vsub.f32 %v3457, %v3533
        %v3586 = vsub.f32 %v3458, %v3536
        %v3587 = vsub.f32 %v3459, %v3539
        %v3588 = vsub.f32 %v3460, %v3542
        %v3589 = vsub.f32 %v3461, %v3545
        %v3590 = vsub.f32 %v3462, %v3548
        %v3591 = vsub.f32 %v3463, %v3551
        %v3592 = vsub.f32 %v3464, %v3554
        %v3593 = vsub.f32 %v3465, %v3557
        %v3594 = vsub.f32 %v3466, %v3560
        %v3595 = vsub.f32 %v3467, %v3563
        %v3596 = vmul.f32 %v3564, 1.442695
        %v3597 = vpow.pop %v3596
        %v3598 = vmul.f32 %v3565, 1.442695
        %v3599 = vpow.pop %v3598
        %v3600 = vmul.f32 %v3566, 1.442695
        %v3601 = vpow.pop %v3600
        %v3602 = vmul.f32 %v3567, 1.442695
        %v3603 = vpow.pop %v3602
        %v3604 = vmul.f32 %v3568, 1.442695
        %v3605 = vpow.pop %v3604
        %v3606 = vmul.f32 %v3569, 1.442695
        %v3607 = vpow.pop %v3606
        %v3608 = vmul.f32 %v3570, 1.442695
        %v3609 = vpow.pop %v3608
        %v3610 = vmul.f32 %v3571, 1.442695
        %v3611 = vpow.pop %v3610
        %v3612 = vmul.f32 %v3572, 1.442695
        %v3613 = vpow.pop %v3612
        %v3614 = vmul.f32 %v3573, 1.442695
        %v3615 = vpow.pop %v3614
        %v3616 = vmul.f32 %v3574, 1.442695
        %v3617 = vpow.pop %v3616
        %v3618 = vmul.f32 %v3575, 1.442695
        %v3619 = vpow.pop %v3618
        %v3620 = vmul.f32 %v3576, 1.442695
        %v3621 = vpow.pop %v3620
        %v3622 = vmul.f32 %v3577, 1.442695
        %v3623 = vpow.pop %v3622
        %v3624 = vmul.f32 %v3578, 1.442695
        %v3625 = vpow.pop %v3624
        %v3626 = vmul.f32 %v3579, 1.442695
        %v3627 = vpow.pop %v3626
        %v3628 = vmul.f32 %v3580, 1.442695
        %v3629 = vpow.pop %v3628
        %v3630 = vmul.f32 %v3581, 1.442695
        %v3631 = vpow.pop %v3630
        %v3632 = vmul.f32 %v3582, 1.442695
        %v3633 = vpow.pop %v3632
        %v3634 = vmul.f32 %v3583, 1.442695
        %v3635 = vpow.pop %v3634
        %v3636 = vmul.f32 %v3584, 1.442695
        %v3637 = vpow.pop %v3636
        %v3638 = vmul.f32 %v3585, 1.442695
        %v3639 = vpow.pop %v3638
        %v3640 = vmul.f32 %v3586, 1.442695
        %v3641 = vpow.pop %v3640
        %v3642 = vmul.f32 %v3587, 1.442695
        %v3643 = vpow.pop %v3642
        %v3644 = vmul.f32 %v3588, 1.442695
        %v3645 = vpow.pop %v3644
        %v3646 = vmul.f32 %v3589, 1.442695
        %v3647 = vpow.pop %v3646
        %v3648 = vmul.f32 %v3590, 1.442695
        %v3649 = vpow.pop %v3648
        %v3650 = vmul.f32 %v3591, 1.442695
        %v3651 = vpow.pop %v3650
        %v3652 = vmul.f32 %v3592, 1.442695
        %v3653 = vpow.pop %v3652
        %v3654 = vmul.f32 %v3593, 1.442695
        %v3655 = vpow.pop %v3654
        %v3656 = vmul.f32 %v3594, 1.442695
        %v3657 = vpow.pop %v3656
        %v3658 = vmul.f32 %v3595, 1.442695
        %v3659 = vpow.pop %v3658
        %v3660 = vsel %vm1060, %v3597, 0.0
        %3661 = vadd.xlane.f32.xlu0 %v3660
        %v3662 = vpop.xlane.xlu0 %3661
        %v3663 = vsel %vm1060, %v3599, 0.0
        %3664 = vadd.xlane.f32.xlu0 %v3663
        %v3665 = vpop.xlane.xlu0 %3664
        %v3666 = vsel %vm1060, %v3601, 0.0
        %3667 = vadd.xlane.f32.xlu0 %v3666
        %v3668 = vpop.xlane.xlu0 %3667
        %v3669 = vsel %vm1060, %v3603, 0.0
        %3670 = vadd.xlane.f32.xlu0 %v3669
        %v3671 = vpop.xlane.xlu0 %3670
        %v3672 = vsel %vm1060, %v3605, 0.0
        %3673 = vadd.xlane.f32.xlu0 %v3672
        %v3674 = vpop.xlane.xlu0 %3673
        %v3675 = vsel %vm1060, %v3607, 0.0
        %3676 = vadd.xlane.f32.xlu0 %v3675
        %v3677 = vpop.xlane.xlu0 %3676
        %v3678 = vsel %vm1060, %v3609, 0.0
        %3679 = vadd.xlane.f32.xlu0 %v3678
        %v3680 = vpop.xlane.xlu0 %3679
        %v3681 = vsel %vm1060, %v3611, 0.0
        %3682 = vadd.xlane.f32.xlu0 %v3681
        %v3683 = vpop.xlane.xlu0 %3682
        %v3684 = vsel %vm1060, %v3613, 0.0
        %3685 = vadd.xlane.f32.xlu0 %v3684
        %v3686 = vpop.xlane.xlu0 %3685
        %v3687 = vsel %vm1060, %v3615, 0.0
        %3688 = vadd.xlane.f32.xlu0 %v3687
        %v3689 = vpop.xlane.xlu0 %3688
        %v3690 = vsel %vm1060, %v3617, 0.0
        %3691 = vadd.xlane.f32.xlu0 %v3690
        %v3692 = vpop.xlane.xlu0 %3691
        %v3693 = vsel %vm1060, %v3619, 0.0
        %3694 = vadd.xlane.f32.xlu0 %v3693
        %v3695 = vpop.xlane.xlu0 %3694
        %v3696 = vsel %vm1060, %v3621, 0.0
        %3697 = vadd.xlane.f32.xlu0 %v3696
        %v3698 = vpop.xlane.xlu0 %3697
        %v3699 = vsel %vm1060, %v3623, 0.0
        %3700 = vadd.xlane.f32.xlu0 %v3699
        %v3701 = vpop.xlane.xlu0 %3700
        %v3702 = vsel %vm1060, %v3625, 0.0
        %3703 = vadd.xlane.f32.xlu0 %v3702
        %v3704 = vpop.xlane.xlu0 %3703
        %v3705 = vsel %vm1060, %v3627, 0.0
        %3706 = vadd.xlane.f32.xlu0 %v3705
        %v3707 = vpop.xlane.xlu0 %3706
        %v3708 = vsel %vm1060, %v3629, 0.0
        %3709 = vadd.xlane.f32.xlu0 %v3708
        %v3710 = vpop.xlane.xlu0 %3709
        %v3711 = vsel %vm1060, %v3631, 0.0
        %3712 = vadd.xlane.f32.xlu0 %v3711
        %v3713 = vpop.xlane.xlu0 %3712
        %v3714 = vsel %vm1060, %v3633, 0.0
        %3715 = vadd.xlane.f32.xlu0 %v3714
        %v3716 = vpop.xlane.xlu0 %3715
        %v3717 = vsel %vm1060, %v3635, 0.0
        %3718 = vadd.xlane.f32.xlu0 %v3717
        %v3719 = vpop.xlane.xlu0 %3718
        %v3720 = vsel %vm1060, %v3637, 0.0
        %3721 = vadd.xlane.f32.xlu0 %v3720
        %v3722 = vpop.xlane.xlu0 %3721
        %v3723 = vsel %vm1060, %v3639, 0.0
        %3724 = vadd.xlane.f32.xlu0 %v3723
        %v3725 = vpop.xlane.xlu0 %3724
        %v3726 = vsel %vm1060, %v3641, 0.0
        %3727 = vadd.xlane.f32.xlu0 %v3726
        %v3728 = vpop.xlane.xlu0 %3727
        %v3729 = vsel %vm1060, %v3643, 0.0
        %3730 = vadd.xlane.f32.xlu0 %v3729
        %v3731 = vpop.xlane.xlu0 %3730
        %v3732 = vsel %vm1060, %v3645, 0.0
        %3733 = vadd.xlane.f32.xlu0 %v3732
        %v3734 = vpop.xlane.xlu0 %3733
        %v3735 = vsel %vm1060, %v3647, 0.0
        %3736 = vadd.xlane.f32.xlu0 %v3735
        %v3737 = vpop.xlane.xlu0 %3736
        %v3738 = vsel %vm1060, %v3649, 0.0
        %3739 = vadd.xlane.f32.xlu0 %v3738
        %v3740 = vpop.xlane.xlu0 %3739
        %v3741 = vsel %vm1060, %v3651, 0.0
        %3742 = vadd.xlane.f32.xlu0 %v3741
        %v3743 = vpop.xlane.xlu0 %3742
        %v3744 = vsel %vm1060, %v3653, 0.0
        %3745 = vadd.xlane.f32.xlu0 %v3744
        %v3746 = vpop.xlane.xlu0 %3745
        %v3747 = vsel %vm1060, %v3655, 0.0
        %3748 = vadd.xlane.f32.xlu0 %v3747
        %v3749 = vpop.xlane.xlu0 %3748
        %v3750 = vsel %vm1060, %v3657, 0.0
        %3751 = vadd.xlane.f32.xlu0 %v3750
        %v3752 = vpop.xlane.xlu0 %3751
        %v3753 = vsel %vm1060, %v3659, 0.0
        %3754 = vadd.xlane.f32.xlu0 %v3753
        %v3755 = vpop.xlane.xlu0 %3754
        %v3756 = vrcp.pop %v3662
        %v3757 = vmul.f32 %v3597, %v3756
        %v3758 = vrcp.pop %v3665
        %v3759 = vmul.f32 %v3599, %v3758
        %v3760 = vrcp.pop %v3668
        %v3761 = vmul.f32 %v3601, %v3760
        %v3762 = vrcp.pop %v3671
        %v3763 = vmul.f32 %v3603, %v3762
        %v3764 = vrcp.pop %v3674
        %v3765 = vmul.f32 %v3605, %v3764
        %v3766 = vrcp.pop %v3677
        %v3767 = vmul.f32 %v3607, %v3766
        %v3768 = vrcp.pop %v3680
        %v3769 = vmul.f32 %v3609, %v3768
        %v3770 = vrcp.pop %v3683
        %v3771 = vmul.f32 %v3611, %v3770
        %v3772 = vrcp.pop %v3686
        %v3773 = vmul.f32 %v3613, %v3772
        %v3774 = vrcp.pop %v3689
        %v3775 = vmul.f32 %v3615, %v3774
        %v3776 = vrcp.pop %v3692
        %v3777 = vmul.f32 %v3617, %v3776
        %v3778 = vrcp.pop %v3695
        %v3779 = vmul.f32 %v3619, %v3778
        %v3780 = vrcp.pop %v3698
        %v3781 = vmul.f32 %v3621, %v3780
        %v3782 = vrcp.pop %v3701
        %v3783 = vmul.f32 %v3623, %v3782
        %v3784 = vrcp.pop %v3704
        %v3785 = vmul.f32 %v3625, %v3784
        %v3786 = vrcp.pop %v3707
        %v3787 = vmul.f32 %v3627, %v3786
        %v3788 = vrcp.pop %v3710
        %v3789 = vmul.f32 %v3629, %v3788
        %v3790 = vrcp.pop %v3713
        %v3791 = vmul.f32 %v3631, %v3790
        %v3792 = vrcp.pop %v3716
        %v3793 = vmul.f32 %v3633, %v3792
        %v3794 = vrcp.pop %v3719
        %v3795 = vmul.f32 %v3635, %v3794
        %v3796 = vrcp.pop %v3722
        %v3797 = vmul.f32 %v3637, %v3796
        %v3798 = vrcp.pop %v3725
        %v3799 = vmul.f32 %v3639, %v3798
        %v3800 = vrcp.pop %v3728
        %v3801 = vmul.f32 %v3641, %v3800
        %v3802 = vrcp.pop %v3731
        %v3803 = vmul.f32 %v3643, %v3802
        %v3804 = vrcp.pop %v3734
        %v3805 = vmul.f32 %v3645, %v3804
        %v3806 = vrcp.pop %v3737
        %v3807 = vmul.f32 %v3647, %v3806
        %v3808 = vrcp.pop %v3740
        %v3809 = vmul.f32 %v3649, %v3808
        %v3810 = vrcp.pop %v3743
        %v3811 = vmul.f32 %v3651, %v3810
        %v3812 = vrcp.pop %v3746
        %v3813 = vmul.f32 %v3653, %v3812
        %v3814 = vrcp.pop %v3749
        %v3815 = vmul.f32 %v3655, %v3814
        %v3816 = vrcp.pop %v3752
        %v3817 = vmul.f32 %v3657, %v3816
        %v3818 = vrcp.pop %v3755
        %v3819 = vmul.f32 %v3659, %v3818
        %v3820 = vstv %s549
        %v3821 = vmul.f32 %v3820, %v3789
        %v3822 = vmul.f32 %v3820, %v3791
        %v3823 = vmul.f32 %v3820, %v3793
        %v3824 = vmul.f32 %v3820, %v3795
        %v3825 = vmul.f32 %v3820, %v3797
        %v3826 = vmul.f32 %v3820, %v3799
        %v3827 = vmul.f32 %v3820, %v3801
        %v3828 = vmul.f32 %v3820, %v3803
        %v3829 = vmul.f32 %v3820, %v3805
        %v3830 = vmul.f32 %v3820, %v3807
        %v3831 = vmul.f32 %v3820, %v3809
        %v3832 = vmul.f32 %v3820, %v3811
        %v3833 = vmul.f32 %v3820, %v3813
        %v3834 = vmul.f32 %v3820, %v3815
        %v3835 = vmul.f32 %v3820, %v3817
        %v3836 = vmul.f32 %v3820, %v3819
        %v3837 = vsub.f32 %v3757, %v3821
        %v3838 = vsub.f32 %v3759, %v3822
        %v3839 = vsub.f32 %v3761, %v3823
        %v3840 = vsub.f32 %v3763, %v3824
        %v3841 = vsub.f32 %v3765, %v3825
        %v3842 = vsub.f32 %v3767, %v3826
        %v3843 = vsub.f32 %v3769, %v3827
        %v3844 = vsub.f32 %v3771, %v3828
        %v3845 = vsub.f32 %v3773, %v3829
        %v3846 = vsub.f32 %v3775, %v3830
        %v3847 = vsub.f32 %v3777, %v3831
        %v3848 = vsub.f32 %v3779, %v3832
        %v3849 = vsub.f32 %v3781, %v3833
        %v3850 = vsub.f32 %v3783, %v3834
        %v3851 = vsub.f32 %v3785, %v3835
        %v3852 = vsub.f32 %v3787, %v3836
        %v3854 = vsel %vm1060, %v3837, 0
        %3856 = vmatprep.subr.mxu0 0.0
        %3857 = vmatpush1.msra.mxu0 %v882
        %3858 = vmatprep.subr.mxu0 0.0
        %3859 = vmatpush1.msra.mxu0 0.0
        %3860 = vmatprep.subr.mxu0 0.0
        %3861 = vmatpush1.msra.mxu0 0.0
        %3862 = vmatprep.subr.mxu0 0.0
        %3863 = vmatpush1.msra.mxu0 0.0
        %3864 = vmatprep.subr.mxu0 0.0
        %3865 = vmatpush1.msra.mxu0 0.0
        %3866 = vmatprep.subr.mxu0 0.0
        %3867 = vmatpush1.msra.mxu0 0.0
        %3868 = vmatprep.subr.mxu0 0.0
        %3869 = vmatpush1.msra.mxu0 0.0
        %3870 = vmatprep.subr.mxu0 0.0
        %3871 = vmatpush1.msra.mxu0 0.0
        %3872 = vmatprep.subr.mxu0 0.0
        %3873 = vmatpush1.msra.mxu0 0.0
        %3874 = vmatprep.subr.mxu0 0.0
        %3875 = vmatpush1.msra.mxu0 0.0
        %3876 = vmatprep.subr.mxu0 0.0
        %3877 = vmatpush1.msra.mxu0 0.0
        %3878 = vmatprep.subr.mxu0 0.0
        %3879 = vmatpush1.msra.mxu0 0.0
        %3880 = vmatprep.subr.mxu0 0.0
        %3881 = vmatpush1.msra.mxu0 0.0
        %3882 = vmatprep.subr.mxu0 0.0
        %3883 = vmatpush1.msra.mxu0 0.0
        %3884 = vmatprep.subr.mxu0 0.0
        %3885 = vmatpush1.msra.mxu0 0.0
        %3886 = vmatprep.subr.mxu0 0.0
        %3887 = vmatpush1.msra.mxu0 0.0
        %3888 = vmatprep.subr.mxu0 0.0
        %3889 = vmatpush1.msra.mxu0 0.0
        %3890 = vmatprep.subr.mxu0 0.0
        %3891 = vmatpush1.msra.mxu0 0.0
        %3892 = vmatprep.subr.mxu0 0.0
        %3893 = vmatpush1.msra.mxu0 0.0
        %3894 = vmatprep.subr.mxu0 0.0
        %3895 = vmatpush1.msra.mxu0 0.0
        %3896 = vmatprep.subr.mxu0 0.0
        %3897 = vmatpush1.msra.mxu0 0.0
        %3898 = vmatprep.subr.mxu0 0.0
        %3899 = vmatpush1.msra.mxu0 0.0
        %3900 = vmatprep.subr.mxu0 0.0
        %3901 = vmatpush1.msra.mxu0 0.0
        %3902 = vmatprep.subr.mxu0 0.0
        %3903 = vmatpush1.msra.mxu0 0.0
        %3904 = vmatprep.subr.mxu0 0.0
        %3905 = vmatpush1.msra.mxu0 0.0
        %3906 = vmatprep.subr.mxu0 0.0
        %3907 = vmatpush1.msra.mxu0 0.0
        %3908 = vmatprep.subr.mxu0 0.0
        %3909 = vmatpush1.msra.mxu0 0.0
        %3910 = vmatprep.subr.mxu0 0.0
        %3911 = vmatpush1.msra.mxu0 0.0
        %3912 = vmatprep.subr.mxu0 0.0
        %3913 = vmatpush1.msra.mxu0 0.0
        %3914 = vmatprep.subr.mxu0 0.0
        %3915 = vmatpush1.msra.mxu0 0.0
        %3916 = vmatprep.subr.mxu0 0.0
        %3917 = vmatpush1.msra.mxu0 0.0
        %3918 = vmatprep.subr.mxu0 0.0
        %3919 = vmatpush1.msra.mxu0 0.0
        %3920 = vmatprep.mubr.f32.mxu0 0.0
        %3921 = vmatmul.mubr.f32.gmra.mrb[0].mxu0 %v3854
        %v3922 = vpop.f32.mrb[0].mxu0
        %v3923 = vadd.f32 0.0, %v3922
        %v3924 = vpop.f32.mrb[0].mxu0
        %3925 = vdwg.mxu0
        %v3927 = vsel %vm1060, %v3838, 0
        %3929 = vmatprep.subr.mxu0 0.0
        %3930 = vmatpush1.msra.mxu0 %v887
        %3931 = vmatprep.subr.mxu0 0.0
        %3932 = vmatpush1.msra.mxu0 0.0
        %3933 = vmatprep.subr.mxu0 0.0
        %3934 = vmatpush1.msra.mxu0 0.0
        %3935 = vmatprep.subr.mxu0 0.0
        %3936 = vmatpush1.msra.mxu0 0.0
        %3937 = vmatprep.subr.mxu0 0.0
        %3938 = vmatpush1.msra.mxu0 0.0
        %3939 = vmatprep.subr.mxu0 0.0
        %3940 = vmatpush1.msra.mxu0 0.0
        %3941 = vmatprep.subr.mxu0 0.0
        %3942 = vmatpush1.msra.mxu0 0.0
        %3943 = vmatprep.subr.mxu0 0.0
        %3944 = vmatpush1.msra.mxu0 0.0
        %3945 = vmatprep.subr.mxu0 0.0
        %3946 = vmatpush1.msra.mxu0 0.0
        %3947 = vmatprep.subr.mxu0 0.0
        %3948 = vmatpush1.msra.mxu0 0.0
        %3949 = vmatprep.subr.mxu0 0.0
        %3950 = vmatpush1.msra.mxu0 0.0
        %3951 = vmatprep.subr.mxu0 0.0
        %3952 = vmatpush1.msra.mxu0 0.0
        %3953 = vmatprep.subr.mxu0 0.0
        %3954 = vmatpush1.msra.mxu0 0.0
        %3955 = vmatprep.subr.mxu0 0.0
        %3956 = vmatpush1.msra.mxu0 0.0
        %3957 = vmatprep.subr.mxu0 0.0
        %3958 = vmatpush1.msra.mxu0 0.0
        %3959 = vmatprep.subr.mxu0 0.0
        %3960 = vmatpush1.msra.mxu0 0.0
        %3961 = vmatprep.subr.mxu0 0.0
        %3962 = vmatpush1.msra.mxu0 0.0
        %3963 = vmatprep.subr.mxu0 0.0
        %3964 = vmatpush1.msra.mxu0 0.0
        %3965 = vmatprep.subr.mxu0 0.0
        %3966 = vmatpush1.msra.mxu0 0.0
        %3967 = vmatprep.subr.mxu0 0.0
        %3968 = vmatpush1.msra.mxu0 0.0
        %3969 = vmatprep.subr.mxu0 0.0
        %3970 = vmatpush1.msra.mxu0 0.0
        %3971 = vmatprep.subr.mxu0 0.0
        %3972 = vmatpush1.msra.mxu0 0.0
        %3973 = vmatprep.subr.mxu0 0.0
        %3974 = vmatpush1.msra.mxu0 0.0
        %3975 = vmatprep.subr.mxu0 0.0
        %3976 = vmatpush1.msra.mxu0 0.0
        %3977 = vmatprep.subr.mxu0 0.0
        %3978 = vmatpush1.msra.mxu0 0.0
        %3979 = vmatprep.subr.mxu0 0.0
        %3980 = vmatpush1.msra.mxu0 0.0
        %3981 = vmatprep.subr.mxu0 0.0
        %3982 = vmatpush1.msra.mxu0 0.0
        %3983 = vmatprep.subr.mxu0 0.0
        %3984 = vmatpush1.msra.mxu0 0.0
        %3985 = vmatprep.subr.mxu0 0.0
        %3986 = vmatpush1.msra.mxu0 0.0
        %3987 = vmatprep.subr.mxu0 0.0
        %3988 = vmatpush1.msra.mxu0 0.0
        %3989 = vmatprep.subr.mxu0 0.0
        %3990 = vmatpush1.msra.mxu0 0.0
        %3991 = vmatprep.subr.mxu0 0.0
        %3992 = vmatpush1.msra.mxu0 0.0
        %3993 = vmatprep.mubr.f32.mxu0 0.0
        %3994 = vmatmul.mubr.f32.gmra.mrb[0].mxu0 %v3927
        %v3995 = vpop.f32.mrb[0].mxu0
        %v3996 = vadd.f32 0.0, %v3995
        %v3997 = vpop.f32.mrb[0].mxu0
        %3998 = vdwg.mxu0
        %v4000 = vsel %vm1060, %v3839, 0
        %4002 = vmatprep.subr.mxu0 0.0
        %4003 = vmatpush1.msra.mxu0 %v892
        %4004 = vmatprep.subr.mxu0 0.0
        %4005 = vmatpush1.msra.mxu0 0.0
        %4006 = vmatprep.subr.mxu0 0.0
        %4007 = vmatpush1.msra.mxu0 0.0
        %4008 = vmatprep.subr.mxu0 0.0
        %4009 = vmatpush1.msra.mxu0 0.0
        %4010 = vmatprep.subr.mxu0 0.0
        %4011 = vmatpush1.msra.mxu0 0.0
        %4012 = vmatprep.subr.mxu0 0.0
        %4013 = vmatpush1.msra.mxu0 0.0
        %4014 = vmatprep.subr.mxu0 0.0
        %4015 = vmatpush1.msra.mxu0 0.0
        %4016 = vmatprep.subr.mxu0 0.0
        %4017 = vmatpush1.msra.mxu0 0.0
        %4018 = vmatprep.subr.mxu0 0.0
        %4019 = vmatpush1.msra.mxu0 0.0
        %4020 = vmatprep.subr.mxu0 0.0
        %4021 = vmatpush1.msra.mxu0 0.0
        %4022 = vmatprep.subr.mxu0 0.0
        %4023 = vmatpush1.msra.mxu0 0.0
        %4024 = vmatprep.subr.mxu0 0.0
        %4025 = vmatpush1.msra.mxu0 0.0
        %4026 = vmatprep.subr.mxu0 0.0
        %4027 = vmatpush1.msra.mxu0 0.0
        %4028 = vmatprep.subr.mxu0 0.0
        %4029 = vmatpush1.msra.mxu0 0.0
        %4030 = vmatprep.subr.mxu0 0.0
        %4031 = vmatpush1.msra.mxu0 0.0
        %4032 = vmatprep.subr.mxu0 0.0
        %4033 = vmatpush1.msra.mxu0 0.0
        %4034 = vmatprep.subr.mxu0 0.0
        %4035 = vmatpush1.msra.mxu0 0.0
        %4036 = vmatprep.subr.mxu0 0.0
        %4037 = vmatpush1.msra.mxu0 0.0
        %4038 = vmatprep.subr.mxu0 0.0
        %4039 = vmatpush1.msra.mxu0 0.0
        %4040 = vmatprep.subr.mxu0 0.0
        %4041 = vmatpush1.msra.mxu0 0.0
        %4042 = vmatprep.subr.mxu0 0.0
        %4043 = vmatpush1.msra.mxu0 0.0
        %4044 = vmatprep.subr.mxu0 0.0
        %4045 = vmatpush1.msra.mxu0 0.0
        %4046 = vmatprep.subr.mxu0 0.0
        %4047 = vmatpush1.msra.mxu0 0.0
        %4048 = vmatprep.subr.mxu0 0.0
        %4049 = vmatpush1.msra.mxu0 0.0
        %4050 = vmatprep.subr.mxu0 0.0
        %4051 = vmatpush1.msra.mxu0 0.0
        %4052 = vmatprep.subr.mxu0 0.0
        %4053 = vmatpush1.msra.mxu0 0.0
        %4054 = vmatprep.subr.mxu0 0.0
        %4055 = vmatpush1.msra.mxu0 0.0
        %4056 = vmatprep.subr.mxu0 0.0
        %4057 = vmatpush1.msra.mxu0 0.0
        %4058 = vmatprep.subr.mxu0 0.0
        %4059 = vmatpush1.msra.mxu0 0.0
        %4060 = vmatprep.subr.mxu0 0.0
        %4061 = vmatpush1.msra.mxu0 0.0
        %4062 = vmatprep.subr.mxu0 0.0
        %4063 = vmatpush1.msra.mxu0 0.0
        %4064 = vmatprep.subr.mxu0 0.0
        %4065 = vmatpush1.msra.mxu0 0.0
        %4066 = vmatprep.mubr.f32.mxu0 0.0
        %4067 = vmatmul.mubr.f32.gmra.mrb[0].mxu0 %v4000
        %v4068 = vpop.f32.mrb[0].mxu0
        %v4069 = vadd.f32 0.0, %v4068
        %v4070 = vpop.f32.mrb[0].mxu0
        %4071 = vdwg.mxu0
        %v4073 = vsel %vm1060, %v3840, 0
        %4075 = vmatprep.subr.mxu0 0.0
        %4076 = vmatpush1.msra.mxu0 %v897
        %4077 = vmatprep.subr.mxu0 0.0
        %4078 = vmatpush1.msra.mxu0 0.0
        %4079 = vmatprep.subr.mxu0 0.0
        %4080 = vmatpush1.msra.mxu0 0.0
        %4081 = vmatprep.subr.mxu0 0.0
        %4082 = vmatpush1.msra.mxu0 0.0
        %4083 = vmatprep.subr.mxu0 0.0
        %4084 = vmatpush1.msra.mxu0 0.0
        %4085 = vmatprep.subr.mxu0 0.0
        %4086 = vmatpush1.msra.mxu0 0.0
        %4087 = vmatprep.subr.mxu0 0.0
        %4088 = vmatpush1.msra.mxu0 0.0
        %4089 = vmatprep.subr.mxu0 0.0
        %4090 = vmatpush1.msra.mxu0 0.0
        %4091 = vmatprep.subr.mxu0 0.0
        %4092 = vmatpush1.msra.mxu0 0.0
        %4093 = vmatprep.subr.mxu0 0.0
        %4094 = vmatpush1.msra.mxu0 0.0
        %4095 = vmatprep.subr.mxu0 0.0
        %4096 = vmatpush1.msra.mxu0 0.0
        %4097 = vmatprep.subr.mxu0 0.0
        %4098 = vmatpush1.msra.mxu0 0.0
        %4099 = vmatprep.subr.mxu0 0.0
        %4100 = vmatpush1.msra.mxu0 0.0
        %4101 = vmatprep.subr.mxu0 0.0
        %4102 = vmatpush1.msra.mxu0 0.0
        %4103 = vmatprep.subr.mxu0 0.0
        %4104 = vmatpush1.msra.mxu0 0.0
        %4105 = vmatprep.subr.mxu0 0.0
        %4106 = vmatpush1.msra.mxu0 0.0
        %4107 = vmatprep.subr.mxu0 0.0
        %4108 = vmatpush1.msra.mxu0 0.0
        %4109 = vmatprep.subr.mxu0 0.0
        %4110 = vmatpush1.msra.mxu0 0.0
        %4111 = vmatprep.subr.mxu0 0.0
        %4112 = vmatpush1.msra.mxu0 0.0
        %4113 = vmatprep.subr.mxu0 0.0
        %4114 = vmatpush1.msra.mxu0 0.0
        %4115 = vmatprep.subr.mxu0 0.0
        %4116 = vmatpush1.msra.mxu0 0.0
        %4117 = vmatprep.subr.mxu0 0.0
        %4118 = vmatpush1.msra.mxu0 0.0
        %4119 = vmatprep.subr.mxu0 0.0
        %4120 = vmatpush1.msra.mxu0 0.0
        %4121 = vmatprep.subr.mxu0 0.0
        %4122 = vmatpush1.msra.mxu0 0.0
        %4123 = vmatprep.subr.mxu0 0.0
        %4124 = vmatpush1.msra.mxu0 0.0
        %4125 = vmatprep.subr.mxu0 0.0
        %4126 = vmatpush1.msra.mxu0 0.0
        %4127 = vmatprep.subr.mxu0 0.0
        %4128 = vmatpush1.msra.mxu0 0.0
        %4129 = vmatprep.subr.mxu0 0.0
        %4130 = vmatpush1.msra.mxu0 0.0
        %4131 = vmatprep.subr.mxu0 0.0
        %4132 = vmatpush1.msra.mxu0 0.0
        %4133 = vmatprep.subr.mxu0 0.0
        %4134 = vmatpush1.msra.mxu0 0.0
        %4135 = vmatprep.subr.mxu0 0.0
        %4136 = vmatpush1.msra.mxu0 0.0
        %4137 = vmatprep.subr.mxu0 0.0
        %4138 = vmatpush1.msra.mxu0 0.0
        %4139 = vmatprep.mubr.f32.mxu0 0.0
        %4140 = vmatmul.mubr.f32.gmra.mrb[0].mxu0 %v4073
        %v4141 = vpop.f32.mrb[0].mxu0
        %v4142 = vadd.f32 0.0, %v4141
        %v4143 = vpop.f32.mrb[0].mxu0
        %4144 = vdwg.mxu0
        %v4146 = vsel %vm1060, %v3841, 0
        %4148 = vmatprep.subr.mxu0 0.0
        %4149 = vmatpush1.msra.mxu0 %v1025
        %4150 = vmatprep.subr.mxu0 0.0
        %4151 = vmatpush1.msra.mxu0 0.0
        %4152 = vmatprep.subr.mxu0 0.0
        %4153 = vmatpush1.msra.mxu0 0.0
        %4154 = vmatprep.subr.mxu0 0.0
        %4155 = vmatpush1.msra.mxu0 0.0
        %4156 = vmatprep.subr.mxu0 0.0
        %4157 = vmatpush1.msra.mxu0 0.0
        %4158 = vmatprep.subr.mxu0 0.0
        %4159 = vmatpush1.msra.mxu0 0.0
        %4160 = vmatprep.subr.mxu0 0.0
        %4161 = vmatpush1.msra.mxu0 0.0
        %4162 = vmatprep.subr.mxu0 0.0
        %4163 = vmatpush1.msra.mxu0 0.0
        %4164 = vmatprep.subr.mxu0 0.0
        %4165 = vmatpush1.msra.mxu0 0.0
        %4166 = vmatprep.subr.mxu0 0.0
        %4167 = vmatpush1.msra.mxu0 0.0
        %4168 = vmatprep.subr.mxu0 0.0
        %4169 = vmatpush1.msra.mxu0 0.0
        %4170 = vmatprep.subr.mxu0 0.0
        %4171 = vmatpush1.msra.mxu0 0.0
        %4172 = vmatprep.subr.mxu0 0.0
        %4173 = vmatpush1.msra.mxu0 0.0
        %4174 = vmatprep.subr.mxu0 0.0
        %4175 = vmatpush1.msra.mxu0 0.0
        %4176 = vmatprep.subr.mxu0 0.0
        %4177 = vmatpush1.msra.mxu0 0.0
        %4178 = vmatprep.subr.mxu0 0.0
        %4179 = vmatpush1.msra.mxu0 0.0
        %4180 = vmatprep.subr.mxu0 0.0
        %4181 = vmatpush1.msra.mxu0 0.0
        %4182 = vmatprep.subr.mxu0 0.0
        %4183 = vmatpush1.msra.mxu0 0.0
        %4184 = vmatprep.subr.mxu0 0.0
        %4185 = vmatpush1.msra.mxu0 0.0
        %4186 = vmatprep.subr.mxu0 0.0
        %4187 = vmatpush1.msra.mxu0 0.0
        %4188 = vmatprep.subr.mxu0 0.0
        %4189 = vmatpush1.msra.mxu0 0.0
        %4190 = vmatprep.subr.mxu0 0.0
        %4191 = vmatpush1.msra.mxu0 0.0
        %4192 = vmatprep.subr.mxu0 0.0
        %4193 = vmatpush1.msra.mxu0 0.0
        %4194 = vmatprep.subr.mxu0 0.0
        %4195 = vmatpush1.msra.mxu0 0.0
        %4196 = vmatprep.subr.mxu0 0.0
        %4197 = vmatpush1.msra.mxu0 0.0
        %4198 = vmatprep.subr.mxu0 0.0
        %4199 = vmatpush1.msra.mxu0 0.0
        %4200 = vmatprep.subr.mxu0 0.0
        %4201 = vmatpush1.msra.mxu0 0.0
        %4202 = vmatprep.subr.mxu0 0.0
        %4203 = vmatpush1.msra.mxu0 0.0
        %4204 = vmatprep.subr.mxu0 0.0
        %4205 = vmatpush1.msra.mxu0 0.0
        %4206 = vmatprep.subr.mxu0 0.0
        %4207 = vmatpush1.msra.mxu0 0.0
        %4208 = vmatprep.subr.mxu0 0.0
        %4209 = vmatpush1.msra.mxu0 0.0
        %4210 = vmatprep.subr.mxu0 0.0
        %4211 = vmatpush1.msra.mxu0 0.0
        %4212 = vmatprep.mubr.f32.mxu0 0.0
        %4213 = vmatmul.mubr.f32.gmra.mrb[0].mxu0 %v4146
        %v4214 = vpop.f32.mrb[0].mxu0
        %v4215 = vadd.f32 0.0, %v4214
        %v4216 = vpop.f32.mrb[0].mxu0
        %4217 = vdwg.mxu0
        %v4219 = vsel %vm1060, %v3842, 0
        %4221 = vmatprep.subr.mxu0 0.0
        %4222 = vmatpush1.msra.mxu0 %v1027
        %4223 = vmatprep.subr.mxu0 0.0
        %4224 = vmatpush1.msra.mxu0 0.0
        %4225 = vmatprep.subr.mxu0 0.0
        %4226 = vmatpush1.msra.mxu0 0.0
        %4227 = vmatprep.subr.mxu0 0.0
        %4228 = vmatpush1.msra.mxu0 0.0
        %4229 = vmatprep.subr.mxu0 0.0
        %4230 = vmatpush1.msra.mxu0 0.0
        %4231 = vmatprep.subr.mxu0 0.0
        %4232 = vmatpush1.msra.mxu0 0.0
        %4233 = vmatprep.subr.mxu0 0.0
        %4234 = vmatpush1.msra.mxu0 0.0
        %4235 = vmatprep.subr.mxu0 0.0
        %4236 = vmatpush1.msra.mxu0 0.0
        %4237 = vmatprep.subr.mxu0 0.0
        %4238 = vmatpush1.msra.mxu0 0.0
        %4239 = vmatprep.subr.mxu0 0.0
        %4240 = vmatpush1.msra.mxu0 0.0
        %4241 = vmatprep.subr.mxu0 0.0
        %4242 = vmatpush1.msra.mxu0 0.0
        %4243 = vmatprep.subr.mxu0 0.0
        %4244 = vmatpush1.msra.mxu0 0.0
        %4245 = vmatprep.subr.mxu0 0.0
        %4246 = vmatpush1.msra.mxu0 0.0
        %4247 = vmatprep.subr.mxu0 0.0
        %4248 = vmatpush1.msra.mxu0 0.0
        %4249 = vmatprep.subr.mxu0 0.0
        %4250 = vmatpush1.msra.mxu0 0.0
        %4251 = vmatprep.subr.mxu0 0.0
        %4252 = vmatpush1.msra.mxu0 0.0
        %4253 = vmatprep.subr.mxu0 0.0
        %4254 = vmatpush1.msra.mxu0 0.0
        %4255 = vmatprep.subr.mxu0 0.0
        %4256 = vmatpush1.msra.mxu0 0.0
        %4257 = vmatprep.subr.mxu0 0.0
        %4258 = vmatpush1.msra.mxu0 0.0
        %4259 = vmatprep.subr.mxu0 0.0
        %4260 = vmatpush1.msra.mxu0 0.0
        %4261 = vmatprep.subr.mxu0 0.0
        %4262 = vmatpush1.msra.mxu0 0.0
        %4263 = vmatprep.subr.mxu0 0.0
        %4264 = vmatpush1.msra.mxu0 0.0
        %4265 = vmatprep.subr.mxu0 0.0
        %4266 = vmatpush1.msra.mxu0 0.0
        %4267 = vmatprep.subr.mxu0 0.0
        %4268 = vmatpush1.msra.mxu0 0.0
        %4269 = vmatprep.subr.mxu0 0.0
        %4270 = vmatpush1.msra.mxu0 0.0
        %4271 = vmatprep.subr.mxu0 0.0
        %4272 = vmatpush1.msra.mxu0 0.0
        %4273 = vmatprep.subr.mxu0 0.0
        %4274 = vmatpush1.msra.mxu0 0.0
        %4275 = vmatprep.subr.mxu0 0.0
        %4276 = vmatpush1.msra.mxu0 0.0
        %4277 = vmatprep.subr.mxu0 0.0
        %4278 = vmatpush1.msra.mxu0 0.0
        %4279 = vmatprep.subr.mxu0 0.0
        %4280 = vmatpush1.msra.mxu0 0.0
        %4281 = vmatprep.subr.mxu0 0.0
        %4282 = vmatpush1.msra.mxu0 0.0
        %4283 = vmatprep.subr.mxu0 0.0
        %4284 = vmatpush1.msra.mxu0 0.0
        %4285 = vmatprep.mubr.f32.mxu0 0.0
        %4286 = vmatmul.mubr.f32.gmra.mrb[0].mxu0 %v4219
        %v4287 = vpop.f32.mrb[0].mxu0
        %v4288 = vadd.f32 0.0, %v4287
        %v4289 = vpop.f32.mrb[0].mxu0
        %4290 = vdwg.mxu0
        %v4292 = vsel %vm1060, %v3843, 0
        %4294 = vmatprep.subr.mxu0 0.0
        %4295 = vmatpush1.msra.mxu0 %v1029
        %4296 = vmatprep.subr.mxu0 0.0
        %4297 = vmatpush1.msra.mxu0 0.0
        %4298 = vmatprep.subr.mxu0 0.0
        %4299 = vmatpush1.msra.mxu0 0.0
        %4300 = vmatprep.subr.mxu0 0.0
        %4301 = vmatpush1.msra.mxu0 0.0
        %4302 = vmatprep.subr.mxu0 0.0
        %4303 = vmatpush1.msra.mxu0 0.0
        %4304 = vmatprep.subr.mxu0 0.0
        %4305 = vmatpush1.msra.mxu0 0.0
        %4306 = vmatprep.subr.mxu0 0.0
        %4307 = vmatpush1.msra.mxu0 0.0
        %4308 = vmatprep.subr.mxu0 0.0
        %4309 = vmatpush1.msra.mxu0 0.0
        %4310 = vmatprep.subr.mxu0 0.0
        %4311 = vmatpush1.msra.mxu0 0.0
        %4312 = vmatprep.subr.mxu0 0.0
        %4313 = vmatpush1.msra.mxu0 0.0
        %4314 = vmatprep.subr.mxu0 0.0
        %4315 = vmatpush1.msra.mxu0 0.0
        %4316 = vmatprep.subr.mxu0 0.0
        %4317 = vmatpush1.msra.mxu0 0.0
        %4318 = vmatprep.subr.mxu0 0.0
        %4319 = vmatpush1.msra.mxu0 0.0
        %4320 = vmatprep.subr.mxu0 0.0
        %4321 = vmatpush1.msra.mxu0 0.0
        %4322 = vmatprep.subr.mxu0 0.0
        %4323 = vmatpush1.msra.mxu0 0.0
        %4324 = vmatprep.subr.mxu0 0.0
        %4325 = vmatpush1.msra.mxu0 0.0
        %4326 = vmatprep.subr.mxu0 0.0
        %4327 = vmatpush1.msra.mxu0 0.0
        %4328 = vmatprep.subr.mxu0 0.0
        %4329 = vmatpush1.msra.mxu0 0.0
        %4330 = vmatprep.subr.mxu0 0.0
        %4331 = vmatpush1.msra.mxu0 0.0
        %4332 = vmatprep.subr.mxu0 0.0
        %4333 = vmatpush1.msra.mxu0 0.0
        %4334 = vmatprep.subr.mxu0 0.0
        %4335 = vmatpush1.msra.mxu0 0.0
        %4336 = vmatprep.subr.mxu0 0.0
        %4337 = vmatpush1.msra.mxu0 0.0
        %4338 = vmatprep.subr.mxu0 0.0
        %4339 = vmatpush1.msra.mxu0 0.0
        %4340 = vmatprep.subr.mxu0 0.0
        %4341 = vmatpush1.msra.mxu0 0.0
        %4342 = vmatprep.subr.mxu0 0.0
        %4343 = vmatpush1.msra.mxu0 0.0
        %4344 = vmatprep.subr.mxu0 0.0
        %4345 = vmatpush1.msra.mxu0 0.0
        %4346 = vmatprep.subr.mxu0 0.0
        %4347 = vmatpush1.msra.mxu0 0.0
        %4348 = vmatprep.subr.mxu0 0.0
        %4349 = vmatpush1.msra.mxu0 0.0
        %4350 = vmatprep.subr.mxu0 0.0
        %4351 = vmatpush1.msra.mxu0 0.0
        %4352 = vmatprep.subr.mxu0 0.0
        %4353 = vmatpush1.msra.mxu0 0.0
        %4354 = vmatprep.subr.mxu0 0.0
        %4355 = vmatpush1.msra.mxu0 0.0
        %4356 = vmatprep.subr.mxu0 0.0
        %4357 = vmatpush1.msra.mxu0 0.0
        %4358 = vmatprep.mubr.f32.mxu0 0.0
        %4359 = vmatmul.mubr.f32.gmra.mrb[0].mxu0 %v4292
        %v4360 = vpop.f32.mrb[0].mxu0
        %v4361 = vadd.f32 0.0, %v4360
        %v4362 = vpop.f32.mrb[0].mxu0
        %4363 = vdwg.mxu0
        %v4365 = vsel %vm1060, %v3844, 0
        %4367 = vmatprep.subr.mxu0 0.0
        %4368 = vmatpush1.msra.mxu0 %v1031
        %4369 = vmatprep.subr.mxu0 0.0
        %4370 = vmatpush1.msra.mxu0 0.0
        %4371 = vmatprep.subr.mxu0 0.0
        %4372 = vmatpush1.msra.mxu0 0.0
        %4373 = vmatprep.subr.mxu0 0.0
        %4374 = vmatpush1.msra.mxu0 0.0
        %4375 = vmatprep.subr.mxu0 0.0
        %4376 = vmatpush1.msra.mxu0 0.0
        %4377 = vmatprep.subr.mxu0 0.0
        %4378 = vmatpush1.msra.mxu0 0.0
        %4379 = vmatprep.subr.mxu0 0.0
        %4380 = vmatpush1.msra.mxu0 0.0
        %4381 = vmatprep.subr.mxu0 0.0
        %4382 = vmatpush1.msra.mxu0 0.0
        %4383 = vmatprep.subr.mxu0 0.0
        %4384 = vmatpush1.msra.mxu0 0.0
        %4385 = vmatprep.subr.mxu0 0.0
        %4386 = vmatpush1.msra.mxu0 0.0
        %4387 = vmatprep.subr.mxu0 0.0
        %4388 = vmatpush1.msra.mxu0 0.0
        %4389 = vmatprep.subr.mxu0 0.0
        %4390 = vmatpush1.msra.mxu0 0.0
        %4391 = vmatprep.subr.mxu0 0.0
        %4392 = vmatpush1.msra.mxu0 0.0
        %4393 = vmatprep.subr.mxu0 0.0
        %4394 = vmatpush1.msra.mxu0 0.0
        %4395 = vmatprep.subr.mxu0 0.0
        %4396 = vmatpush1.msra.mxu0 0.0
        %4397 = vmatprep.subr.mxu0 0.0
        %4398 = vmatpush1.msra.mxu0 0.0
        %4399 = vmatprep.subr.mxu0 0.0
        %4400 = vmatpush1.msra.mxu0 0.0
        %4401 = vmatprep.subr.mxu0 0.0
        %4402 = vmatpush1.msra.mxu0 0.0
        %4403 = vmatprep.subr.mxu0 0.0
        %4404 = vmatpush1.msra.mxu0 0.0
        %4405 = vmatprep.subr.mxu0 0.0
        %4406 = vmatpush1.msra.mxu0 0.0
        %4407 = vmatprep.subr.mxu0 0.0
        %4408 = vmatpush1.msra.mxu0 0.0
        %4409 = vmatprep.subr.mxu0 0.0
        %4410 = vmatpush1.msra.mxu0 0.0
        %4411 = vmatprep.subr.mxu0 0.0
        %4412 = vmatpush1.msra.mxu0 0.0
        %4413 = vmatprep.subr.mxu0 0.0
        %4414 = vmatpush1.msra.mxu0 0.0
        %4415 = vmatprep.subr.mxu0 0.0
        %4416 = vmatpush1.msra.mxu0 0.0
        %4417 = vmatprep.subr.mxu0 0.0
        %4418 = vmatpush1.msra.mxu0 0.0
        %4419 = vmatprep.subr.mxu0 0.0
        %4420 = vmatpush1.msra.mxu0 0.0
        %4421 = vmatprep.subr.mxu0 0.0
        %4422 = vmatpush1.msra.mxu0 0.0
        %4423 = vmatprep.subr.mxu0 0.0
        %4424 = vmatpush1.msra.mxu0 0.0
        %4425 = vmatprep.subr.mxu0 0.0
        %4426 = vmatpush1.msra.mxu0 0.0
        %4427 = vmatprep.subr.mxu0 0.0
        %4428 = vmatpush1.msra.mxu0 0.0
        %4429 = vmatprep.subr.mxu0 0.0
        %4430 = vmatpush1.msra.mxu0 0.0
        %4431 = vmatprep.mubr.f32.mxu0 0.0
        %4432 = vmatmul.mubr.f32.gmra.mrb[0].mxu0 %v4365
        %v4433 = vpop.f32.mrb[0].mxu0
        %v4434 = vadd.f32 0.0, %v4433
        %v4435 = vpop.f32.mrb[0].mxu0
        %4436 = vdwg.mxu0
        %v4438 = vsel %vm1060, %v3845, 0
        %4440 = vmatprep.subr.mxu0 0.0
        %4441 = vmatpush1.msra.mxu0 %v1037
        %4442 = vmatprep.subr.mxu0 0.0
        %4443 = vmatpush1.msra.mxu0 0.0
        %4444 = vmatprep.subr.mxu0 0.0
        %4445 = vmatpush1.msra.mxu0 0.0
        %4446 = vmatprep.subr.mxu0 0.0
        %4447 = vmatpush1.msra.mxu0 0.0
        %4448 = vmatprep.subr.mxu0 0.0
        %4449 = vmatpush1.msra.mxu0 0.0
        %4450 = vmatprep.subr.mxu0 0.0
        %4451 = vmatpush1.msra.mxu0 0.0
        %4452 = vmatprep.subr.mxu0 0.0
        %4453 = vmatpush1.msra.mxu0 0.0
        %4454 = vmatprep.subr.mxu0 0.0
        %4455 = vmatpush1.msra.mxu0 0.0
        %4456 = vmatprep.subr.mxu0 0.0
        %4457 = vmatpush1.msra.mxu0 0.0
        %4458 = vmatprep.subr.mxu0 0.0
        %4459 = vmatpush1.msra.mxu0 0.0
        %4460 = vmatprep.subr.mxu0 0.0
        %4461 = vmatpush1.msra.mxu0 0.0
        %4462 = vmatprep.subr.mxu0 0.0
        %4463 = vmatpush1.msra.mxu0 0.0
        %4464 = vmatprep.subr.mxu0 0.0
        %4465 = vmatpush1.msra.mxu0 0.0
        %4466 = vmatprep.subr.mxu0 0.0
        %4467 = vmatpush1.msra.mxu0 0.0
        %4468 = vmatprep.subr.mxu0 0.0
        %4469 = vmatpush1.msra.mxu0 0.0
        %4470 = vmatprep.subr.mxu0 0.0
        %4471 = vmatpush1.msra.mxu0 0.0
        %4472 = vmatprep.subr.mxu0 0.0
        %4473 = vmatpush1.msra.mxu0 0.0
        %4474 = vmatprep.subr.mxu0 0.0
        %4475 = vmatpush1.msra.mxu0 0.0
        %4476 = vmatprep.subr.mxu0 0.0
        %4477 = vmatpush1.msra.mxu0 0.0
        %4478 = vmatprep.subr.mxu0 0.0
        %4479 = vmatpush1.msra.mxu0 0.0
        %4480 = vmatprep.subr.mxu0 0.0
        %4481 = vmatpush1.msra.mxu0 0.0
        %4482 = vmatprep.subr.mxu0 0.0
        %4483 = vmatpush1.msra.mxu0 0.0
        %4484 = vmatprep.subr.mxu0 0.0
        %4485 = vmatpush1.msra.mxu0 0.0
        %4486 = vmatprep.subr.mxu0 0.0
        %4487 = vmatpush1.msra.mxu0 0.0
        %4488 = vmatprep.subr.mxu0 0.0
        %4489 = vmatpush1.msra.mxu0 0.0
        %4490 = vmatprep.subr.mxu0 0.0
        %4491 = vmatpush1.msra.mxu0 0.0
        %4492 = vmatprep.subr.mxu0 0.0
        %4493 = vmatpush1.msra.mxu0 0.0
        %4494 = vmatprep.subr.mxu0 0.0
        %4495 = vmatpush1.msra.mxu0 0.0
        %4496 = vmatprep.subr.mxu0 0.0
        %4497 = vmatpush1.msra.mxu0 0.0
        %4498 = vmatprep.subr.mxu0 0.0
        %4499 = vmatpush1.msra.mxu0 0.0
        %4500 = vmatprep.subr.mxu0 0.0
        %4501 = vmatpush1.msra.mxu0 0.0
        %4502 = vmatprep.subr.mxu0 0.0
        %4503 = vmatpush1.msra.mxu0 0.0
        %4504 = vmatprep.mubr.f32.mxu0 0.0
        %4505 = vmatmul.mubr.f32.gmra.mrb[0].mxu0 %v4438
        %v4506 = vpop.f32.mrb[0].mxu0
        %v4507 = vadd.f32 0.0, %v4506
        %v4508 = vpop.f32.mrb[0].mxu0
        %4509 = vdwg.mxu0
        %v4511 = vsel %vm1060, %v3846, 0
        %4513 = vmatprep.subr.mxu0 0.0
        %4514 = vmatpush1.msra.mxu0 %v1039
        %4515 = vmatprep.subr.mxu0 0.0
        %4516 = vmatpush1.msra.mxu0 0.0
        %4517 = vmatprep.subr.mxu0 0.0
        %4518 = vmatpush1.msra.mxu0 0.0
        %4519 = vmatprep.subr.mxu0 0.0
        %4520 = vmatpush1.msra.mxu0 0.0
        %4521 = vmatprep.subr.mxu0 0.0
        %4522 = vmatpush1.msra.mxu0 0.0
        %4523 = vmatprep.subr.mxu0 0.0
        %4524 = vmatpush1.msra.mxu0 0.0
        %4525 = vmatprep.subr.mxu0 0.0
        %4526 = vmatpush1.msra.mxu0 0.0
        %4527 = vmatprep.subr.mxu0 0.0
        %4528 = vmatpush1.msra.mxu0 0.0
        %4529 = vmatprep.subr.mxu0 0.0
        %4530 = vmatpush1.msra.mxu0 0.0
        %4531 = vmatprep.subr.mxu0 0.0
        %4532 = vmatpush1.msra.mxu0 0.0
        %4533 = vmatprep.subr.mxu0 0.0
        %4534 = vmatpush1.msra.mxu0 0.0
        %4535 = vmatprep.subr.mxu0 0.0
        %4536 = vmatpush1.msra.mxu0 0.0
        %4537 = vmatprep.subr.mxu0 0.0
        %4538 = vmatpush1.msra.mxu0 0.0
        %4539 = vmatprep.subr.mxu0 0.0
        %4540 = vmatpush1.msra.mxu0 0.0
        %4541 = vmatprep.subr.mxu0 0.0
        %4542 = vmatpush1.msra.mxu0 0.0
        %4543 = vmatprep.subr.mxu0 0.0
        %4544 = vmatpush1.msra.mxu0 0.0
        %4545 = vmatprep.subr.mxu0 0.0
        %4546 = vmatpush1.msra.mxu0 0.0
        %4547 = vmatprep.subr.mxu0 0.0
        %4548 = vmatpush1.msra.mxu0 0.0
        %4549 = vmatprep.subr.mxu0 0.0
        %4550 = vmatpush1.msra.mxu0 0.0
        %4551 = vmatprep.subr.mxu0 0.0
        %4552 = vmatpush1.msra.mxu0 0.0
        %4553 = vmatprep.subr.mxu0 0.0
        %4554 = vmatpush1.msra.mxu0 0.0
        %4555 = vmatprep.subr.mxu0 0.0
        %4556 = vmatpush1.msra.mxu0 0.0
        %4557 = vmatprep.subr.mxu0 0.0
        %4558 = vmatpush1.msra.mxu0 0.0
        %4559 = vmatprep.subr.mxu0 0.0
        %4560 = vmatpush1.msra.mxu0 0.0
        %4561 = vmatprep.subr.mxu0 0.0
        %4562 = vmatpush1.msra.mxu0 0.0
        %4563 = vmatprep.subr.mxu0 0.0
        %4564 = vmatpush1.msra.mxu0 0.0
        %4565 = vmatprep.subr.mxu0 0.0
        %4566 = vmatpush1.msra.mxu0 0.0
        %4567 = vmatprep.subr.mxu0 0.0
        %4568 = vmatpush1.msra.mxu0 0.0
        %4569 = vmatprep.subr.mxu0 0.0
        %4570 = vmatpush1.msra.mxu0 0.0
        %4571 = vmatprep.subr.mxu0 0.0
        %4572 = vmatpush1.msra.mxu0 0.0
        %4573 = vmatprep.subr.mxu0 0.0
        %4574 = vmatpush1.msra.mxu0 0.0
        %4575 = vmatprep.subr.mxu0 0.0
        %4576 = vmatpush1.msra.mxu0 0.0
        %4577 = vmatprep.mubr.f32.mxu0 0.0
        %4578 = vmatmul.mubr.f32.gmra.mrb[0].mxu0 %v4511
        %v4579 = vpop.f32.mrb[0].mxu0
        %v4580 = vadd.f32 0.0, %v4579
        %v4581 = vpop.f32.mrb[0].mxu0
        %4582 = vdwg.mxu0
        %v4584 = vsel %vm1060, %v3847, 0
        %4586 = vmatprep.subr.mxu0 0.0
        %4587 = vmatpush1.msra.mxu0 %v1041
        %4588 = vmatprep.subr.mxu0 0.0
        %4589 = vmatpush1.msra.mxu0 0.0
        %4590 = vmatprep.subr.mxu0 0.0
        %4591 = vmatpush1.msra.mxu0 0.0
        %4592 = vmatprep.subr.mxu0 0.0
        %4593 = vmatpush1.msra.mxu0 0.0
        %4594 = vmatprep.subr.mxu0 0.0
        %4595 = vmatpush1.msra.mxu0 0.0
        %4596 = vmatprep.subr.mxu0 0.0
        %4597 = vmatpush1.msra.mxu0 0.0
        %4598 = vmatprep.subr.mxu0 0.0
        %4599 = vmatpush1.msra.mxu0 0.0
        %4600 = vmatprep.subr.mxu0 0.0
        %4601 = vmatpush1.msra.mxu0 0.0
        %4602 = vmatprep.subr.mxu0 0.0
        %4603 = vmatpush1.msra.mxu0 0.0
        %4604 = vmatprep.subr.mxu0 0.0
        %4605 = vmatpush1.msra.mxu0 0.0
        %4606 = vmatprep.subr.mxu0 0.0
        %4607 = vmatpush1.msra.mxu0 0.0
        %4608 = vmatprep.subr.mxu0 0.0
        %4609 = vmatpush1.msra.mxu0 0.0
        %4610 = vmatprep.subr.mxu0 0.0
        %4611 = vmatpush1.msra.mxu0 0.0
        %4612 = vmatprep.subr.mxu0 0.0
        %4613 = vmatpush1.msra.mxu0 0.0
        %4614 = vmatprep.subr.mxu0 0.0
        %4615 = vmatpush1.msra.mxu0 0.0
        %4616 = vmatprep.subr.mxu0 0.0
        %4617 = vmatpush1.msra.mxu0 0.0
        %4618 = vmatprep.subr.mxu0 0.0
        %4619 = vmatpush1.msra.mxu0 0.0
        %4620 = vmatprep.subr.mxu0 0.0
        %4621 = vmatpush1.msra.mxu0 0.0
        %4622 = vmatprep.subr.mxu0 0.0
        %4623 = vmatpush1.msra.mxu0 0.0
        %4624 = vmatprep.subr.mxu0 0.0
        %4625 = vmatpush1.msra.mxu0 0.0
        %4626 = vmatprep.subr.mxu0 0.0
        %4627 = vmatpush1.msra.mxu0 0.0
        %4628 = vmatprep.subr.mxu0 0.0
        %4629 = vmatpush1.msra.mxu0 0.0
        %4630 = vmatprep.subr.mxu0 0.0
        %4631 = vmatpush1.msra.mxu0 0.0
        %4632 = vmatprep.subr.mxu0 0.0
        %4633 = vmatpush1.msra.mxu0 0.0
        %4634 = vmatprep.subr.mxu0 0.0
        %4635 = vmatpush1.msra.mxu0 0.0
        %4636 = vmatprep.subr.mxu0 0.0
        %4637 = vmatpush1.msra.mxu0 0.0
        %4638 = vmatprep.subr.mxu0 0.0
        %4639 = vmatpush1.msra.mxu0 0.0
        %4640 = vmatprep.subr.mxu0 0.0
        %4641 = vmatpush1.msra.mxu0 0.0
        %4642 = vmatprep.subr.mxu0 0.0
        %4643 = vmatpush1.msra.mxu0 0.0
        %4644 = vmatprep.subr.mxu0 0.0
        %4645 = vmatpush1.msra.mxu0 0.0
        %4646 = vmatprep.subr.mxu0 0.0
        %4647 = vmatpush1.msra.mxu0 0.0
        %4648 = vmatprep.subr.mxu0 0.0
        %4649 = vmatpush1.msra.mxu0 0.0
        %4650 = vmatprep.mubr.f32.mxu0 0.0
        %4651 = vmatmul.mubr.f32.gmra.mrb[0].mxu0 %v4584
        %v4652 = vpop.f32.mrb[0].mxu0
        %v4653 = vadd.f32 0.0, %v4652
        %v4654 = vpop.f32.mrb[0].mxu0
        %4655 = vdwg.mxu0
        %v4657 = vsel %vm1060, %v3848, 0
        %4659 = vmatprep.subr.mxu0 0.0
        %4660 = vmatpush1.msra.mxu0 %v1043
        %4661 = vmatprep.subr.mxu0 0.0
        %4662 = vmatpush1.msra.mxu0 0.0
        %4663 = vmatprep.subr.mxu0 0.0
        %4664 = vmatpush1.msra.mxu0 0.0
        %4665 = vmatprep.subr.mxu0 0.0
        %4666 = vmatpush1.msra.mxu0 0.0
        %4667 = vmatprep.subr.mxu0 0.0
        %4668 = vmatpush1.msra.mxu0 0.0
        %4669 = vmatprep.subr.mxu0 0.0
        %4670 = vmatpush1.msra.mxu0 0.0
        %4671 = vmatprep.subr.mxu0 0.0
        %4672 = vmatpush1.msra.mxu0 0.0
        %4673 = vmatprep.subr.mxu0 0.0
        %4674 = vmatpush1.msra.mxu0 0.0
        %4675 = vmatprep.subr.mxu0 0.0
        %4676 = vmatpush1.msra.mxu0 0.0
        %4677 = vmatprep.subr.mxu0 0.0
        %4678 = vmatpush1.msra.mxu0 0.0
        %4679 = vmatprep.subr.mxu0 0.0
        %4680 = vmatpush1.msra.mxu0 0.0
        %4681 = vmatprep.subr.mxu0 0.0
        %4682 = vmatpush1.msra.mxu0 0.0
        %4683 = vmatprep.subr.mxu0 0.0
        %4684 = vmatpush1.msra.mxu0 0.0
        %4685 = vmatprep.subr.mxu0 0.0
        %4686 = vmatpush1.msra.mxu0 0.0
        %4687 = vmatprep.subr.mxu0 0.0
        %4688 = vmatpush1.msra.mxu0 0.0
        %4689 = vmatprep.subr.mxu0 0.0
        %4690 = vmatpush1.msra.mxu0 0.0
        %4691 = vmatprep.subr.mxu0 0.0
        %4692 = vmatpush1.msra.mxu0 0.0
        %4693 = vmatprep.subr.mxu0 0.0
        %4694 = vmatpush1.msra.mxu0 0.0
        %4695 = vmatprep.subr.mxu0 0.0
        %4696 = vmatpush1.msra.mxu0 0.0
        %4697 = vmatprep.subr.mxu0 0.0
        %4698 = vmatpush1.msra.mxu0 0.0
        %4699 = vmatprep.subr.mxu0 0.0
        %4700 = vmatpush1.msra.mxu0 0.0
        %4701 = vmatprep.subr.mxu0 0.0
        %4702 = vmatpush1.msra.mxu0 0.0
        %4703 = vmatprep.subr.mxu0 0.0
        %4704 = vmatpush1.msra.mxu0 0.0
        %4705 = vmatprep.subr.mxu0 0.0
        %4706 = vmatpush1.msra.mxu0 0.0
        %4707 = vmatprep.subr.mxu0 0.0
        %4708 = vmatpush1.msra.mxu0 0.0
        %4709 = vmatprep.subr.mxu0 0.0
        %4710 = vmatpush1.msra.mxu0 0.0
        %4711 = vmatprep.subr.mxu0 0.0
        %4712 = vmatpush1.msra.mxu0 0.0
        %4713 = vmatprep.subr.mxu0 0.0
        %4714 = vmatpush1.msra.mxu0 0.0
        %4715 = vmatprep.subr.mxu0 0.0
        %4716 = vmatpush1.msra.mxu0 0.0
        %4717 = vmatprep.subr.mxu0 0.0
        %4718 = vmatpush1.msra.mxu0 0.0
        %4719 = vmatprep.subr.mxu0 0.0
        %4720 = vmatpush1.msra.mxu0 0.0
        %4721 = vmatprep.subr.mxu0 0.0
        %4722 = vmatpush1.msra.mxu0 0.0
        %4723 = vmatprep.mubr.f32.mxu0 0.0
        %4724 = vmatmul.mubr.f32.gmra.mrb[0].mxu0 %v4657
        %v4725 = vpop.f32.mrb[0].mxu0
        %v4726 = vadd.f32 0.0, %v4725
        %v4727 = vpop.f32.mrb[0].mxu0
        %4728 = vdwg.mxu0
        %v4730 = vsel %vm1060, %v3849, 0
        %4732 = vmatprep.subr.mxu0 0.0
        %4733 = vmatpush1.msra.mxu0 %v1049
        %4734 = vmatprep.subr.mxu0 0.0
        %4735 = vmatpush1.msra.mxu0 0.0
        %4736 = vmatprep.subr.mxu0 0.0
        %4737 = vmatpush1.msra.mxu0 0.0
        %4738 = vmatprep.subr.mxu0 0.0
        %4739 = vmatpush1.msra.mxu0 0.0
        %4740 = vmatprep.subr.mxu0 0.0
        %4741 = vmatpush1.msra.mxu0 0.0
        %4742 = vmatprep.subr.mxu0 0.0
        %4743 = vmatpush1.msra.mxu0 0.0
        %4744 = vmatprep.subr.mxu0 0.0
        %4745 = vmatpush1.msra.mxu0 0.0
        %4746 = vmatprep.subr.mxu0 0.0
        %4747 = vmatpush1.msra.mxu0 0.0
        %4748 = vmatprep.subr.mxu0 0.0
        %4749 = vmatpush1.msra.mxu0 0.0
        %4750 = vmatprep.subr.mxu0 0.0
        %4751 = vmatpush1.msra.mxu0 0.0
        %4752 = vmatprep.subr.mxu0 0.0
        %4753 = vmatpush1.msra.mxu0 0.0
        %4754 = vmatprep.subr.mxu0 0.0
        %4755 = vmatpush1.msra.mxu0 0.0
        %4756 = vmatprep.subr.mxu0 0.0
        %4757 = vmatpush1.msra.mxu0 0.0
        %4758 = vmatprep.subr.mxu0 0.0
        %4759 = vmatpush1.msra.mxu0 0.0
        %4760 = vmatprep.subr.mxu0 0.0
        %4761 = vmatpush1.msra.mxu0 0.0
        %4762 = vmatprep.subr.mxu0 0.0
        %4763 = vmatpush1.msra.mxu0 0.0
        %4764 = vmatprep.subr.mxu0 0.0
        %4765 = vmatpush1.msra.mxu0 0.0
        %4766 = vmatprep.subr.mxu0 0.0
        %4767 = vmatpush1.msra.mxu0 0.0
        %4768 = vmatprep.subr.mxu0 0.0
        %4769 = vmatpush1.msra.mxu0 0.0
        %4770 = vmatprep.subr.mxu0 0.0
        %4771 = vmatpush1.msra.mxu0 0.0
        %4772 = vmatprep.subr.mxu0 0.0
        %4773 = vmatpush1.msra.mxu0 0.0
        %4774 = vmatprep.subr.mxu0 0.0
        %4775 = vmatpush1.msra.mxu0 0.0
        %4776 = vmatprep.subr.mxu0 0.0
        %4777 = vmatpush1.msra.mxu0 0.0
        %4778 = vmatprep.subr.mxu0 0.0
        %4779 = vmatpush1.msra.mxu0 0.0
        %4780 = vmatprep.subr.mxu0 0.0
        %4781 = vmatpush1.msra.mxu0 0.0
        %4782 = vmatprep.subr.mxu0 0.0
        %4783 = vmatpush1.msra.mxu0 0.0
        %4784 = vmatprep.subr.mxu0 0.0
        %4785 = vmatpush1.msra.mxu0 0.0
        %4786 = vmatprep.subr.mxu0 0.0
        %4787 = vmatpush1.msra.mxu0 0.0
        %4788 = vmatprep.subr.mxu0 0.0
        %4789 = vmatpush1.msra.mxu0 0.0
        %4790 = vmatprep.subr.mxu0 0.0
        %4791 = vmatpush1.msra.mxu0 0.0
        %4792 = vmatprep.subr.mxu0 0.0
        %4793 = vmatpush1.msra.mxu0 0.0
        %4794 = vmatprep.subr.mxu0 0.0
        %4795 = vmatpush1.msra.mxu0 0.0
        %4796 = vmatprep.mubr.f32.mxu0 0.0
        %4797 = vmatmul.mubr.f32.gmra.mrb[0].mxu0 %v4730
        %v4798 = vpop.f32.mrb[0].mxu0
        %v4799 = vadd.f32 0.0, %v4798
        %v4800 = vpop.f32.mrb[0].mxu0
        %4801 = vdwg.mxu0
        %v4803 = vsel %vm1060, %v3850, 0
        %4805 = vmatprep.subr.mxu0 0.0
        %4806 = vmatpush1.msra.mxu0 %v1051
        %4807 = vmatprep.subr.mxu0 0.0
        %4808 = vmatpush1.msra.mxu0 0.0
        %4809 = vmatprep.subr.mxu0 0.0
        %4810 = vmatpush1.msra.mxu0 0.0
        %4811 = vmatprep.subr.mxu0 0.0
        %4812 = vmatpush1.msra.mxu0 0.0
        %4813 = vmatprep.subr.mxu0 0.0
        %4814 = vmatpush1.msra.mxu0 0.0
        %4815 = vmatprep.subr.mxu0 0.0
        %4816 = vmatpush1.msra.mxu0 0.0
        %4817 = vmatprep.subr.mxu0 0.0
        %4818 = vmatpush1.msra.mxu0 0.0
        %4819 = vmatprep.subr.mxu0 0.0
        %4820 = vmatpush1.msra.mxu0 0.0
        %4821 = vmatprep.subr.mxu0 0.0
        %4822 = vmatpush1.msra.mxu0 0.0
        %4823 = vmatprep.subr.mxu0 0.0
        %4824 = vmatpush1.msra.mxu0 0.0
        %4825 = vmatprep.subr.mxu0 0.0
        %4826 = vmatpush1.msra.mxu0 0.0
        %4827 = vmatprep.subr.mxu0 0.0
        %4828 = vmatpush1.msra.mxu0 0.0
        %4829 = vmatprep.subr.mxu0 0.0
        %4830 = vmatpush1.msra.mxu0 0.0
        %4831 = vmatprep.subr.mxu0 0.0
        %4832 = vmatpush1.msra.mxu0 0.0
        %4833 = vmatprep.subr.mxu0 0.0
        %4834 = vmatpush1.msra.mxu0 0.0
        %4835 = vmatprep.subr.mxu0 0.0
        %4836 = vmatpush1.msra.mxu0 0.0
        %4837 = vmatprep.subr.mxu0 0.0
        %4838 = vmatpush1.msra.mxu0 0.0
        %4839 = vmatprep.subr.mxu0 0.0
        %4840 = vmatpush1.msra.mxu0 0.0
        %4841 = vmatprep.subr.mxu0 0.0
        %4842 = vmatpush1.msra.mxu0 0.0
        %4843 = vmatprep.subr.mxu0 0.0
        %4844 = vmatpush1.msra.mxu0 0.0
        %4845 = vmatprep.subr.mxu0 0.0
        %4846 = vmatpush1.msra.mxu0 0.0
        %4847 = vmatprep.subr.mxu0 0.0
        %4848 = vmatpush1.msra.mxu0 0.0
        %4849 = vmatprep.subr.mxu0 0.0
        %4850 = vmatpush1.msra.mxu0 0.0
        %4851 = vmatprep.subr.mxu0 0.0
        %4852 = vmatpush1.msra.mxu0 0.0
        %4853 = vmatprep.subr.mxu0 0.0
        %4854 = vmatpush1.msra.mxu0 0.0
        %4855 = vmatprep.subr.mxu0 0.0
        %4856 = vmatpush1.msra.mxu0 0.0
        %4857 = vmatprep.subr.mxu0 0.0
        %4858 = vmatpush1.msra.mxu0 0.0
        %4859 = vmatprep.subr.mxu0 0.0
        %4860 = vmatpush1.msra.mxu0 0.0
        %4861 = vmatprep.subr.mxu0 0.0
        %4862 = vmatpush1.msra.mxu0 0.0
        %4863 = vmatprep.subr.mxu0 0.0
        %4864 = vmatpush1.msra.mxu0 0.0
        %4865 = vmatprep.subr.mxu0 0.0
        %4866 = vmatpush1.msra.mxu0 0.0
        %4867 = vmatprep.subr.mxu0 0.0
        %4868 = vmatpush1.msra.mxu0 0.0
        %4869 = vmatprep.mubr.f32.mxu0 0.0
        %4870 = vmatmul.mubr.f32.gmra.mrb[0].mxu0 %v4803
        %v4871 = vpop.f32.mrb[0].mxu0
        %v4872 = vadd.f32 0.0, %v4871
        %v4873 = vpop.f32.mrb[0].mxu0
        %4874 = vdwg.mxu0
        %v4876 = vsel %vm1060, %v3851, 0
        %4878 = vmatprep.subr.mxu0 0.0
        %4879 = vmatpush1.msra.mxu0 %v1053
        %4880 = vmatprep.subr.mxu0 0.0
        %4881 = vmatpush1.msra.mxu0 0.0
        %4882 = vmatprep.subr.mxu0 0.0
        %4883 = vmatpush1.msra.mxu0 0.0
        %4884 = vmatprep.subr.mxu0 0.0
        %4885 = vmatpush1.msra.mxu0 0.0
        %4886 = vmatprep.subr.mxu0 0.0
        %4887 = vmatpush1.msra.mxu0 0.0
        %4888 = vmatprep.subr.mxu0 0.0
        %4889 = vmatpush1.msra.mxu0 0.0
        %4890 = vmatprep.subr.mxu0 0.0
        %4891 = vmatpush1.msra.mxu0 0.0
        %4892 = vmatprep.subr.mxu0 0.0
        %4893 = vmatpush1.msra.mxu0 0.0
        %4894 = vmatprep.subr.mxu0 0.0
        %4895 = vmatpush1.msra.mxu0 0.0
        %4896 = vmatprep.subr.mxu0 0.0
        %4897 = vmatpush1.msra.mxu0 0.0
        %4898 = vmatprep.subr.mxu0 0.0
        %4899 = vmatpush1.msra.mxu0 0.0
        %4900 = vmatprep.subr.mxu0 0.0
        %4901 = vmatpush1.msra.mxu0 0.0
        %4902 = vmatprep.subr.mxu0 0.0
        %4903 = vmatpush1.msra.mxu0 0.0
        %4904 = vmatprep.subr.mxu0 0.0
        %4905 = vmatpush1.msra.mxu0 0.0
        %4906 = vmatprep.subr.mxu0 0.0
        %4907 = vmatpush1.msra.mxu0 0.0
        %4908 = vmatprep.subr.mxu0 0.0
        %4909 = vmatpush1.msra.mxu0 0.0
        %4910 = vmatprep.subr.mxu0 0.0
        %4911 = vmatpush1.msra.mxu0 0.0
        %4912 = vmatprep.subr.mxu0 0.0
        %4913 = vmatpush1.msra.mxu0 0.0
        %4914 = vmatprep.subr.mxu0 0.0
        %4915 = vmatpush1.msra.mxu0 0.0
        %4916 = vmatprep.subr.mxu0 0.0
        %4917 = vmatpush1.msra.mxu0 0.0
        %4918 = vmatprep.subr.mxu0 0.0
        %4919 = vmatpush1.msra.mxu0 0.0
        %4920 = vmatprep.subr.mxu0 0.0
        %4921 = vmatpush1.msra.mxu0 0.0
        %4922 = vmatprep.subr.mxu0 0.0
        %4923 = vmatpush1.msra.mxu0 0.0
        %4924 = vmatprep.subr.mxu0 0.0
        %4925 = vmatpush1.msra.mxu0 0.0
        %4926 = vmatprep.subr.mxu0 0.0
        %4927 = vmatpush1.msra.mxu0 0.0
        %4928 = vmatprep.subr.mxu0 0.0
        %4929 = vmatpush1.msra.mxu0 0.0
        %4930 = vmatprep.subr.mxu0 0.0
        %4931 = vmatpush1.msra.mxu0 0.0
        %4932 = vmatprep.subr.mxu0 0.0
        %4933 = vmatpush1.msra.mxu0 0.0
        %4934 = vmatprep.subr.mxu0 0.0
        %4935 = vmatpush1.msra.mxu0 0.0
        %4936 = vmatprep.subr.mxu0 0.0
        %4937 = vmatpush1.msra.mxu0 0.0
        %4938 = vmatprep.subr.mxu0 0.0
        %4939 = vmatpush1.msra.mxu0 0.0
        %4940 = vmatprep.subr.mxu0 0.0
        %4941 = vmatpush1.msra.mxu0 0.0
        %4942 = vmatprep.mubr.f32.mxu0 0.0
        %4943 = vmatmul.mubr.f32.gmra.mrb[0].mxu0 %v4876
        %v4944 = vpop.f32.mrb[0].mxu0
        %v4945 = vadd.f32 0.0, %v4944
        %v4946 = vpop.f32.mrb[0].mxu0
        %4947 = vdwg.mxu0
        %v4949 = vsel %vm1060, %v3852, 0
        %4951 = vmatprep.subr.mxu0 0.0
        %4952 = vmatpush1.msra.mxu0 %v1055
        %4953 = vmatprep.subr.mxu0 0.0
        %4954 = vmatpush1.msra.mxu0 0.0
        %4955 = vmatprep.subr.mxu0 0.0
        %4956 = vmatpush1.msra.mxu0 0.0
        %4957 = vmatprep.subr.mxu0 0.0
        %4958 = vmatpush1.msra.mxu0 0.0
        %4959 = vmatprep.subr.mxu0 0.0
        %4960 = vmatpush1.msra.mxu0 0.0
        %4961 = vmatprep.subr.mxu0 0.0
        %4962 = vmatpush1.msra.mxu0 0.0
        %4963 = vmatprep.subr.mxu0 0.0
        %4964 = vmatpush1.msra.mxu0 0.0
        %4965 = vmatprep.subr.mxu0 0.0
        %4966 = vmatpush1.msra.mxu0 0.0
        %4967 = vmatprep.subr.mxu0 0.0
        %4968 = vmatpush1.msra.mxu0 0.0
        %4969 = vmatprep.subr.mxu0 0.0
        %4970 = vmatpush1.msra.mxu0 0.0
        %4971 = vmatprep.subr.mxu0 0.0
        %4972 = vmatpush1.msra.mxu0 0.0
        %4973 = vmatprep.subr.mxu0 0.0
        %4974 = vmatpush1.msra.mxu0 0.0
        %4975 = vmatprep.subr.mxu0 0.0
        %4976 = vmatpush1.msra.mxu0 0.0
        %4977 = vmatprep.subr.mxu0 0.0
        %4978 = vmatpush1.msra.mxu0 0.0
        %4979 = vmatprep.subr.mxu0 0.0
        %4980 = vmatpush1.msra.mxu0 0.0
        %4981 = vmatprep.subr.mxu0 0.0
        %4982 = vmatpush1.msra.mxu0 0.0
        %4983 = vmatprep.subr.mxu0 0.0
        %4984 = vmatpush1.msra.mxu0 0.0
        %4985 = vmatprep.subr.mxu0 0.0
        %4986 = vmatpush1.msra.mxu0 0.0
        %4987 = vmatprep.subr.mxu0 0.0
        %4988 = vmatpush1.msra.mxu0 0.0
        %4989 = vmatprep.subr.mxu0 0.0
        %4990 = vmatpush1.msra.mxu0 0.0
        %4991 = vmatprep.subr.mxu0 0.0
        %4992 = vmatpush1.msra.mxu0 0.0
        %4993 = vmatprep.subr.mxu0 0.0
        %4994 = vmatpush1.msra.mxu0 0.0
        %4995 = vmatprep.subr.mxu0 0.0
        %4996 = vmatpush1.msra.mxu0 0.0
        %4997 = vmatprep.subr.mxu0 0.0
        %4998 = vmatpush1.msra.mxu0 0.0
        %4999 = vmatprep.subr.mxu0 0.0
        %5000 = vmatpush1.msra.mxu0 0.0
        %5001 = vmatprep.subr.mxu0 0.0
        %5002 = vmatpush1.msra.mxu0 0.0
        %5003 = vmatprep.subr.mxu0 0.0
        %5004 = vmatpush1.msra.mxu0 0.0
        %5005 = vmatprep.subr.mxu0 0.0
        %5006 = vmatpush1.msra.mxu0 0.0
        %5007 = vmatprep.subr.mxu0 0.0
        %5008 = vmatpush1.msra.mxu0 0.0
        %5009 = vmatprep.subr.mxu0 0.0
        %5010 = vmatpush1.msra.mxu0 0.0
        %5011 = vmatprep.subr.mxu0 0.0
        %5012 = vmatpush1.msra.mxu0 0.0
        %5013 = vmatprep.subr.mxu0 0.0
        %5014 = vmatpush1.msra.mxu0 0.0
        %5015 = vmatprep.mubr.f32.mxu0 0.0
        %5016 = vmatmul.mubr.f32.gmra.mrb[0].mxu0 %v4949
        %v5017 = vpop.f32.mrb[0].mxu0
        %v5018 = vadd.f32 0.0, %v5017
        %v5019 = vpop.f32.mrb[0].mxu0
        %5020 = vdwg.mxu0
        %v5021 = vmul.f32 %v3923, %v3923
        %v5022 = vmul.f32 %v3996, %v3996
        %v5023 = vmul.f32 %v4069, %v4069
        %v5024 = vmul.f32 %v4142, %v4142
        %v5025 = vmul.f32 %v4215, %v4215
        %v5026 = vmul.f32 %v4288, %v4288
        %v5027 = vmul.f32 %v4361, %v4361
        %v5028 = vmul.f32 %v4434, %v4434
        %v5029 = vmul.f32 %v4507, %v4507
        %v5030 = vmul.f32 %v4580, %v4580
        %v5031 = vmul.f32 %v4653, %v4653
        %v5032 = vmul.f32 %v4726, %v4726
        %v5033 = vmul.f32 %v4799, %v4799
        %v5034 = vmul.f32 %v4872, %v4872
        %v5035 = vmul.f32 %v4945, %v4945
        %v5036 = vmul.f32 %v5018, %v5018
        %vm5037 = vcmask 130048
        %v5038 = vsel %vm5037, %v5021, 0.0
        %5039 = vadd.xlane.f32.xlu0 %v5038
        %v5040 = vpop.xlane.xlu0 %5039
        %v5041 = vsel %vm5037, %v5022, 0.0
        %5042 = vadd.xlane.f32.xlu0 %v5041
        %v5043 = vpop.xlane.xlu0 %5042
        %v5044 = vsel %vm5037, %v5023, 0.0
        %5045 = vadd.xlane.f32.xlu0 %v5044
        %v5046 = vpop.xlane.xlu0 %5045
        %v5047 = vsel %vm5037, %v5024, 0.0
        %5048 = vadd.xlane.f32.xlu0 %v5047
        %v5049 = vpop.xlane.xlu0 %5048
        %v5050 = vsel %vm5037, %v5025, 0.0
        %5051 = vadd.xlane.f32.xlu0 %v5050
        %v5052 = vpop.xlane.xlu0 %5051
        %v5053 = vsel %vm5037, %v5026, 0.0
        %5054 = vadd.xlane.f32.xlu0 %v5053
        %v5055 = vpop.xlane.xlu0 %5054
        %v5056 = vsel %vm5037, %v5027, 0.0
        %5057 = vadd.xlane.f32.xlu0 %v5056
        %v5058 = vpop.xlane.xlu0 %5057
        %v5059 = vsel %vm5037, %v5028, 0.0
        %5060 = vadd.xlane.f32.xlu0 %v5059
        %v5061 = vpop.xlane.xlu0 %5060
        %v5062 = vsel %vm5037, %v5029, 0.0
        %5063 = vadd.xlane.f32.xlu0 %v5062
        %v5064 = vpop.xlane.xlu0 %5063
        %v5065 = vsel %vm5037, %v5030, 0.0
        %5066 = vadd.xlane.f32.xlu0 %v5065
        %v5067 = vpop.xlane.xlu0 %5066
        %v5068 = vsel %vm5037, %v5031, 0.0
        %5069 = vadd.xlane.f32.xlu0 %v5068
        %v5070 = vpop.xlane.xlu0 %5069
        %v5071 = vsel %vm5037, %v5032, 0.0
        %5072 = vadd.xlane.f32.xlu0 %v5071
        %v5073 = vpop.xlane.xlu0 %5072
        %v5074 = vsel %vm5037, %v5033, 0.0
        %5075 = vadd.xlane.f32.xlu0 %v5074
        %v5076 = vpop.xlane.xlu0 %5075
        %v5077 = vsel %vm5037, %v5034, 0.0
        %5078 = vadd.xlane.f32.xlu0 %v5077
        %v5079 = vpop.xlane.xlu0 %5078
        %v5080 = vsel %vm5037, %v5035, 0.0
        %5081 = vadd.xlane.f32.xlu0 %v5080
        %v5082 = vpop.xlane.xlu0 %5081
        %v5083 = vsel %vm5037, %v5036, 0.0
        %5084 = vadd.xlane.f32.xlu0 %v5083
        %v5085 = vpop.xlane.xlu0 %5084
        %v5086 = vrcp.pop 16.0
        %v5087 = vmul.f32 %v5040, %v5086
        %v5088 = vmul.f32 %v5043, %v5086
        %v5089 = vmul.f32 %v5046, %v5086
        %v5090 = vmul.f32 %v5049, %v5086
        %v5091 = vmul.f32 %v5052, %v5086
        %v5092 = vmul.f32 %v5055, %v5086
        %v5093 = vmul.f32 %v5058, %v5086
        %v5094 = vmul.f32 %v5061, %v5086
        %v5095 = vmul.f32 %v5064, %v5086
        %v5096 = vmul.f32 %v5067, %v5086
        %v5097 = vmul.f32 %v5070, %v5086
        %v5098 = vmul.f32 %v5073, %v5086
        %v5099 = vmul.f32 %v5076, %v5086
        %v5100 = vmul.f32 %v5079, %v5086
        %v5101 = vmul.f32 %v5082, %v5086
        %v5102 = vmul.f32 %v5085, %v5086
        %v5103 = vstv %s550
        %v5104 = vadd.f32 %v5087, %v5103
        %v5105 = vadd.f32 %v5088, %v5103
        %v5106 = vadd.f32 %v5089, %v5103
        %v5107 = vadd.f32 %v5090, %v5103
        %v5108 = vadd.f32 %v5091, %v5103
        %v5109 = vadd.f32 %v5092, %v5103
        %v5110 = vadd.f32 %v5093, %v5103
        %v5111 = vadd.f32 %v5094, %v5103
        %v5112 = vadd.f32 %v5095, %v5103
        %v5113 = vadd.f32 %v5096, %v5103
        %v5114 = vadd.f32 %v5097, %v5103
        %v5115 = vadd.f32 %v5098, %v5103
        %v5116 = vadd.f32 %v5099, %v5103
        %v5117 = vadd.f32 %v5100, %v5103
        %v5118 = vadd.f32 %v5101, %v5103
        %v5119 = vadd.f32 %v5102, %v5103
        %v5120 = vrsqrt.pop %v5104
        %v5121 = vrsqrt.pop %v5105
        %v5122 = vrsqrt.pop %v5106
        %v5123 = vrsqrt.pop %v5107
        %v5124 = vrsqrt.pop %v5108
        %v5125 = vrsqrt.pop %v5109
        %v5126 = vrsqrt.pop %v5110
        %v5127 = vrsqrt.pop %v5111
        %v5128 = vrsqrt.pop %v5112
        %v5129 = vrsqrt.pop %v5113
        %v5130 = vrsqrt.pop %v5114
        %v5131 = vrsqrt.pop %v5115
        %v5132 = vrsqrt.pop %v5116
        %v5133 = vrsqrt.pop %v5117
        %v5134 = vrsqrt.pop %v5118
        %v5135 = vrsqrt.pop %v5119
        %v5136 = vmul.f32 %v3923, %v5120
        %v5137 = vmul.f32 %v3996, %v5121
        %v5138 = vmul.f32 %v4069, %v5122
        %v5139 = vmul.f32 %v4142, %v5123
        %v5140 = vmul.f32 %v4215, %v5124
        %v5141 = vmul.f32 %v4288, %v5125
        %v5142 = vmul.f32 %v4361, %v5126
        %v5143 = vmul.f32 %v4434, %v5127
        %v5144 = vmul.f32 %v4507, %v5128
        %v5145 = vmul.f32 %v4580, %v5129
        %v5146 = vmul.f32 %v4653, %v5130
        %v5147 = vmul.f32 %v4726, %v5131
        %v5148 = vmul.f32 %v4799, %v5132
        %v5149 = vmul.f32 %v4872, %v5133
        %v5150 = vmul.f32 %v4945, %v5134
        %v5151 = vmul.f32 %v5018, %v5135
        %v5152 = vld [vmem:[#allocation15] sm:$0xff]
        %v5153 = vld [vmem:[#allocation15 + $0x8] sm:$0xff]
        %v5154 = vld [vmem:[#allocation15 + $0x10] sm:$0xff]
        %v5155 = vld [vmem:[#allocation15 + $0x18] sm:$0xff]
        %v5156 = vld [vmem:[#allocation15 + $0x20] sm:$0xff]
        %v5157 = vld [vmem:[#allocation15 + $0x28] sm:$0xff]
        %v5158 = vld [vmem:[#allocation15 + $0x30] sm:$0xff]
        %v5159 = vld [vmem:[#allocation15 + $0x38] sm:$0xff]
        %v5161 = vsel %vm5037, %v5140, 0
        %v5164 = vsel %vm5037, %v5141, 0
        %v5167 = vsel %vm5037, %v5142, 0
        %v5170 = vsel %vm5037, %v5143, 0
        %5172 = vmatprep.subr.mxu0 0.0
        %5173 = vmatpush1.msra.mxu0 %v5154
        %5174 = vmatprep.subr.mxu0 0.0
        %5175 = vmatpush1.msra.mxu0 %v5155
        %5176 = vmatprep.subr.mxu0 0.0
        %5177 = vmatpush1.msra.mxu0 0.0
        %5178 = vmatprep.subr.mxu0 0.0
        %5179 = vmatpush1.msra.mxu0 0.0
        %5180 = vmatprep.subr.mxu0 0.0
        %5181 = vmatpush1.msra.mxu0 0.0
        %5182 = vmatprep.subr.mxu0 0.0
        %5183 = vmatpush1.msra.mxu0 0.0
        %5184 = vmatprep.subr.mxu0 0.0
        %5185 = vmatpush1.msra.mxu0 0.0
        %5186 = vmatprep.subr.mxu0 0.0
        %5187 = vmatpush1.msra.mxu0 0.0
        %5188 = vmatprep.subr.mxu0 0.0
        %5189 = vmatpush1.msra.mxu0 0.0
        %5190 = vmatprep.subr.mxu0 0.0
        %5191 = vmatpush1.msra.mxu0 0.0
        %5192 = vmatprep.subr.mxu0 0.0
        %5193 = vmatpush1.msra.mxu0 0.0
        %5194 = vmatprep.subr.mxu0 0.0
        %5195 = vmatpush1.msra.mxu0 0.0
        %5196 = vmatprep.subr.mxu0 0.0
        %5197 = vmatpush1.msra.mxu0 0.0
        %5198 = vmatprep.subr.mxu0 0.0
        %5199 = vmatpush1.msra.mxu0 0.0
        %5200 = vmatprep.subr.mxu0 0.0
        %5201 = vmatpush1.msra.mxu0 0.0
        %5202 = vmatprep.subr.mxu0 0.0
        %5203 = vmatpush1.msra.mxu0 0.0
        %5204 = vmatprep.subr.mxu0 0.0
        %5205 = vmatpush1.msra.mxu0 0.0
        %5206 = vmatprep.subr.mxu0 0.0
        %5207 = vmatpush1.msra.mxu0 0.0
        %5208 = vmatprep.subr.mxu0 0.0
        %5209 = vmatpush1.msra.mxu0 0.0
        %5210 = vmatprep.subr.mxu0 0.0
        %5211 = vmatpush1.msra.mxu0 0.0
        %5212 = vmatprep.subr.mxu0 0.0
        %5213 = vmatpush1.msra.mxu0 0.0
        %5214 = vmatprep.subr.mxu0 0.0
        %5215 = vmatpush1.msra.mxu0 0.0
        %5216 = vmatprep.subr.mxu0 0.0
        %5217 = vmatpush1.msra.mxu0 0.0
        %5218 = vmatprep.subr.mxu0 0.0
        %5219 = vmatpush1.msra.mxu0 0.0
        %5220 = vmatprep.subr.mxu0 0.0
        %5221 = vmatpush1.msra.mxu0 0.0
        %5222 = vmatprep.subr.mxu0 0.0
        %5223 = vmatpush1.msra.mxu0 0.0
        %5224 = vmatprep.subr.mxu0 0.0
        %5225 = vmatpush1.msra.mxu0 0.0
        %5226 = vmatprep.subr.mxu0 0.0
        %5227 = vmatpush1.msra.mxu0 0.0
        %5228 = vmatprep.subr.mxu0 0.0
        %5229 = vmatpush1.msra.mxu0 0.0
        %5230 = vmatprep.subr.mxu0 0.0
        %5231 = vmatpush1.msra.mxu0 0.0
        %5232 = vmatprep.subr.mxu0 0.0
        %5233 = vmatpush1.msra.mxu0 0.0
        %5234 = vmatprep.subr.mxu0 0.0
        %5235 = vmatpush1.msra.mxu0 0.0
        %5236 = vmatprep.mubr.f32.mxu0 0.0
        %5237 = vmatmul.mubr.f32.gmra.mrb[0].mxu0 %v5161
        %v5238 = vpop.f32.mrb[0].mxu0
        %v5239 = vadd.f32 0.0, %v5238
        %v5240 = vpop.f32.mrb[0].mxu0
        %5241 = vmatprep.mubr.f32.mxu0 0.0
        %5242 = vmatmul.mubr.f32.gmra.mrb[0].mxu0 %v5164
        %v5243 = vpop.f32.mrb[0].mxu0
        %v5244 = vadd.f32 0.0, %v5243
        %v5245 = vpop.f32.mrb[0].mxu0
        %5246 = vmatprep.mubr.f32.mxu0 0.0
        %5247 = vmatmul.mubr.f32.gmra.mrb[0].mxu0 %v5167
        %v5248 = vpop.f32.mrb[0].mxu0
        %v5249 = vadd.f32 0.0, %v5248
        %v5250 = vpop.f32.mrb[0].mxu0
        %5251 = vmatprep.mubr.f32.mxu0 0.0
        %5252 = vmatmul.mubr.f32.gmra.mrb[0].mxu0 %v5170
        %v5253 = vpop.f32.mrb[0].mxu0
        %v5254 = vadd.f32 0.0, %v5253
        %v5255 = vpop.f32.mrb[0].mxu0
        %5256 = vdwg.mxu0
        %v5258 = vsel %vm5037, %v5136, 0
        %v5261 = vsel %vm5037, %v5137, 0
        %v5264 = vsel %vm5037, %v5138, 0
        %v5267 = vsel %vm5037, %v5139, 0
        %5269 = vmatprep.subr.mxu0 0.0
        %5270 = vmatpush1.msra.mxu0 %v5152
        %5271 = vmatprep.subr.mxu0 0.0
        %5272 = vmatpush1.msra.mxu0 %v5153
        %5273 = vmatprep.subr.mxu0 0.0
        %5274 = vmatpush1.msra.mxu0 0.0
        %5275 = vmatprep.subr.mxu0 0.0
        %5276 = vmatpush1.msra.mxu0 0.0
        %5277 = vmatprep.subr.mxu0 0.0
        %5278 = vmatpush1.msra.mxu0 0.0
        %5279 = vmatprep.subr.mxu0 0.0
        %5280 = vmatpush1.msra.mxu0 0.0
        %5281 = vmatprep.subr.mxu0 0.0
        %5282 = vmatpush1.msra.mxu0 0.0
        %5283 = vmatprep.subr.mxu0 0.0
        %5284 = vmatpush1.msra.mxu0 0.0
        %5285 = vmatprep.subr.mxu0 0.0
        %5286 = vmatpush1.msra.mxu0 0.0
        %5287 = vmatprep.subr.mxu0 0.0
        %5288 = vmatpush1.msra.mxu0 0.0
        %5289 = vmatprep.subr.mxu0 0.0
        %5290 = vmatpush1.msra.mxu0 0.0
        %5291 = vmatprep.subr.mxu0 0.0
        %5292 = vmatpush1.msra.mxu0 0.0
        %5293 = vmatprep.subr.mxu0 0.0
        %5294 = vmatpush1.msra.mxu0 0.0
        %5295 = vmatprep.subr.mxu0 0.0
        %5296 = vmatpush1.msra.mxu0 0.0
        %5297 = vmatprep.subr.mxu0 0.0
        %5298 = vmatpush1.msra.mxu0 0.0
        %5299 = vmatprep.subr.mxu0 0.0
        %5300 = vmatpush1.msra.mxu0 0.0
        %5301 = vmatprep.subr.mxu0 0.0
        %5302 = vmatpush1.msra.mxu0 0.0
        %5303 = vmatprep.subr.mxu0 0.0
        %5304 = vmatpush1.msra.mxu0 0.0
        %5305 = vmatprep.subr.mxu0 0.0
        %5306 = vmatpush1.msra.mxu0 0.0
        %5307 = vmatprep.subr.mxu0 0.0
        %5308 = vmatpush1.msra.mxu0 0.0
        %5309 = vmatprep.subr.mxu0 0.0
        %5310 = vmatpush1.msra.mxu0 0.0
        %5311 = vmatprep.subr.mxu0 0.0
        %5312 = vmatpush1.msra.mxu0 0.0
        %5313 = vmatprep.subr.mxu0 0.0
        %5314 = vmatpush1.msra.mxu0 0.0
        %5315 = vmatprep.subr.mxu0 0.0
        %5316 = vmatpush1.msra.mxu0 0.0
        %5317 = vmatprep.subr.mxu0 0.0
        %5318 = vmatpush1.msra.mxu0 0.0
        %5319 = vmatprep.subr.mxu0 0.0
        %5320 = vmatpush1.msra.mxu0 0.0
        %5321 = vmatprep.subr.mxu0 0.0
        %5322 = vmatpush1.msra.mxu0 0.0
        %5323 = vmatprep.subr.mxu0 0.0
        %5324 = vmatpush1.msra.mxu0 0.0
        %5325 = vmatprep.subr.mxu0 0.0
        %5326 = vmatpush1.msra.mxu0 0.0
        %5327 = vmatprep.subr.mxu0 0.0
        %5328 = vmatpush1.msra.mxu0 0.0
        %5329 = vmatprep.subr.mxu0 0.0
        %5330 = vmatpush1.msra.mxu0 0.0
        %5331 = vmatprep.subr.mxu0 0.0
        %5332 = vmatpush1.msra.mxu0 0.0
        %5333 = vmatprep.mubr.f32.mxu0 0.0
        %5334 = vmatmul.mubr.f32.gmra.mrb[0].mxu0 %v5258
        %v5335 = vpop.f32.mrb[0].mxu0
        %v5336 = vadd.f32 %v5239, %v5335
        %v5337 = vpop.f32.mrb[0].mxu0
        %5338 = vmatprep.mubr.f32.mxu0 0.0
        %5339 = vmatmul.mubr.f32.gmra.mrb[0].mxu0 %v5261
        %v5340 = vpop.f32.mrb[0].mxu0
        %v5341 = vadd.f32 %v5244, %v5340
        %v5342 = vpop.f32.mrb[0].mxu0
        %5343 = vmatprep.mubr.f32.mxu0 0.0
        %5344 = vmatmul.mubr.f32.gmra.mrb[0].mxu0 %v5264
        %v5345 = vpop.f32.mrb[0].mxu0
        %v5346 = vadd.f32 %v5249, %v5345
        %v5347 = vpop.f32.mrb[0].mxu0
        %5348 = vmatprep.mubr.f32.mxu0 0.0
        %5349 = vmatmul.mubr.f32.gmra.mrb[0].mxu0 %v5267
        %v5350 = vpop.f32.mrb[0].mxu0
        %v5351 = vadd.f32 %v5254, %v5350
        %v5352 = vpop.f32.mrb[0].mxu0
        %5353 = vdwg.mxu0
        %v5355 = vsel %vm5037, %v5144, 0
        %v5358 = vsel %vm5037, %v5145, 0
        %v5361 = vsel %vm5037, %v5146, 0
        %v5364 = vsel %vm5037, %v5147, 0
        %5366 = vmatprep.subr.mxu0 0.0
        %5367 = vmatpush1.msra.mxu0 %v5156
        %5368 = vmatprep.subr.mxu0 0.0
        %5369 = vmatpush1.msra.mxu0 %v5157
        %5370 = vmatprep.subr.mxu0 0.0
        %5371 = vmatpush1.msra.mxu0 0.0
        %5372 = vmatprep.subr.mxu0 0.0
        %5373 = vmatpush1.msra.mxu0 0.0
        %5374 = vmatprep.subr.mxu0 0.0
        %5375 = vmatpush1.msra.mxu0 0.0
        %5376 = vmatprep.subr.mxu0 0.0
        %5377 = vmatpush1.msra.mxu0 0.0
        %5378 = vmatprep.subr.mxu0 0.0
        %5379 = vmatpush1.msra.mxu0 0.0
        %5380 = vmatprep.subr.mxu0 0.0
        %5381 = vmatpush1.msra.mxu0 0.0
        %5382 = vmatprep.subr.mxu0 0.0
        %5383 = vmatpush1.msra.mxu0 0.0
        %5384 = vmatprep.subr.mxu0 0.0
        %5385 = vmatpush1.msra.mxu0 0.0
        %5386 = vmatprep.subr.mxu0 0.0
        %5387 = vmatpush1.msra.mxu0 0.0
        %5388 = vmatprep.subr.mxu0 0.0
        %5389 = vmatpush1.msra.mxu0 0.0
        %5390 = vmatprep.subr.mxu0 0.0
        %5391 = vmatpush1.msra.mxu0 0.0
        %5392 = vmatprep.subr.mxu0 0.0
        %5393 = vmatpush1.msra.mxu0 0.0
        %5394 = vmatprep.subr.mxu0 0.0
        %5395 = vmatpush1.msra.mxu0 0.0
        %5396 = vmatprep.subr.mxu0 0.0
        %5397 = vmatpush1.msra.mxu0 0.0
        %5398 = vmatprep.subr.mxu0 0.0
        %5399 = vmatpush1.msra.mxu0 0.0
        %5400 = vmatprep.subr.mxu0 0.0
        %5401 = vmatpush1.msra.mxu0 0.0
        %5402 = vmatprep.subr.mxu0 0.0
        %5403 = vmatpush1.msra.mxu0 0.0
        %5404 = vmatprep.subr.mxu0 0.0
        %5405 = vmatpush1.msra.mxu0 0.0
        %5406 = vmatprep.subr.mxu0 0.0
        %5407 = vmatpush1.msra.mxu0 0.0
        %5408 = vmatprep.subr.mxu0 0.0
        %5409 = vmatpush1.msra.mxu0 0.0
        %5410 = vmatprep.subr.mxu0 0.0
        %5411 = vmatpush1.msra.mxu0 0.0
        %5412 = vmatprep.subr.mxu0 0.0
        %5413 = vmatpush1.msra.mxu0 0.0
        %5414 = vmatprep.subr.mxu0 0.0
        %5415 = vmatpush1.msra.mxu0 0.0
        %5416 = vmatprep.subr.mxu0 0.0
        %5417 = vmatpush1.msra.mxu0 0.0
        %5418 = vmatprep.subr.mxu0 0.0
        %5419 = vmatpush1.msra.mxu0 0.0
        %5420 = vmatprep.subr.mxu0 0.0
        %5421 = vmatpush1.msra.mxu0 0.0
        %5422 = vmatprep.subr.mxu0 0.0
        %5423 = vmatpush1.msra.mxu0 0.0
        %5424 = vmatprep.subr.mxu0 0.0
        %5425 = vmatpush1.msra.mxu0 0.0
        %5426 = vmatprep.subr.mxu0 0.0
        %5427 = vmatpush1.msra.mxu0 0.0
        %5428 = vmatprep.subr.mxu0 0.0
        %5429 = vmatpush1.msra.mxu0 0.0
        %5430 = vmatprep.mubr.f32.mxu0 0.0
        %5431 = vmatmul.mubr.f32.gmra.mrb[0].mxu0 %v5355
        %v5432 = vpop.f32.mrb[0].mxu0
        %v5433 = vadd.f32 0.0, %v5432
        %v5434 = vpop.f32.mrb[0].mxu0
        %5435 = vmatprep.mubr.f32.mxu0 0.0
        %5436 = vmatmul.mubr.f32.gmra.mrb[0].mxu0 %v5358
        %v5437 = vpop.f32.mrb[0].mxu0
        %v5438 = vadd.f32 0.0, %v5437
        %v5439 = vpop.f32.mrb[0].mxu0
        %5440 = vmatprep.mubr.f32.mxu0 0.0
        %5441 = vmatmul.mubr.f32.gmra.mrb[0].mxu0 %v5361
        %v5442 = vpop.f32.mrb[0].mxu0
        %v5443 = vadd.f32 0.0, %v5442
        %v5444 = vpop.f32.mrb[0].mxu0
        %5445 = vmatprep.mubr.f32.mxu0 0.0
        %5446 = vmatmul.mubr.f32.gmra.mrb[0].mxu0 %v5364
        %v5447 = vpop.f32.mrb[0].mxu0
        %v5448 = vadd.f32 0.0, %v5447
        %v5449 = vpop.f32.mrb[0].mxu0
        %5450 = vdwg.mxu0
        %v5451 = vadd.f32 %v5336, %v5433
        %v5452 = vadd.f32 %v5341, %v5438
        %v5453 = vadd.f32 %v5346, %v5443
        %v5454 = vadd.f32 %v5351, %v5448
        %v5456 = vsel %vm5037, %v5148, 0
        %v5459 = vsel %vm5037, %v5149, 0
        %v5462 = vsel %vm5037, %v5150, 0
        %v5465 = vsel %vm5037, %v5151, 0
        %5467 = vmatprep.subr.mxu0 0.0
        %5468 = vmatpush1.msra.mxu0 %v5158
        %5469 = vmatprep.subr.mxu0 0.0
        %5470 = vmatpush1.msra.mxu0 %v5159
        %5471 = vmatprep.subr.mxu0 0.0
        %5472 = vmatpush1.msra.mxu0 0.0
        %5473 = vmatprep.subr.mxu0 0.0
        %5474 = vmatpush1.msra.mxu0 0.0
        %5475 = vmatprep.subr.mxu0 0.0
        %5476 = vmatpush1.msra.mxu0 0.0
        %5477 = vmatprep.subr.mxu0 0.0
        %5478 = vmatpush1.msra.mxu0 0.0
        %5479 = vmatprep.subr.mxu0 0.0
        %5480 = vmatpush1.msra.mxu0 0.0
        %5481 = vmatprep.subr.mxu0 0.0
        %5482 = vmatpush1.msra.mxu0 0.0
        %5483 = vmatprep.subr.mxu0 0.0
        %5484 = vmatpush1.msra.mxu0 0.0
        %5485 = vmatprep.subr.mxu0 0.0
        %5486 = vmatpush1.msra.mxu0 0.0
        %5487 = vmatprep.subr.mxu0 0.0
        %5488 = vmatpush1.msra.mxu0 0.0
        %5489 = vmatprep.subr.mxu0 0.0
        %5490 = vmatpush1.msra.mxu0 0.0
        %5491 = vmatprep.subr.mxu0 0.0
        %5492 = vmatpush1.msra.mxu0 0.0
        %5493 = vmatprep.subr.mxu0 0.0
        %5494 = vmatpush1.msra.mxu0 0.0
        %5495 = vmatprep.subr.mxu0 0.0
        %5496 = vmatpush1.msra.mxu0 0.0
        %5497 = vmatprep.subr.mxu0 0.0
        %5498 = vmatpush1.msra.mxu0 0.0
        %5499 = vmatprep.subr.mxu0 0.0
        %5500 = vmatpush1.msra.mxu0 0.0
        %5501 = vmatprep.subr.mxu0 0.0
        %5502 = vmatpush1.msra.mxu0 0.0
        %5503 = vmatprep.subr.mxu0 0.0
        %5504 = vmatpush1.msra.mxu0 0.0
        %5505 = vmatprep.subr.mxu0 0.0
        %5506 = vmatpush1.msra.mxu0 0.0
        %5507 = vmatprep.subr.mxu0 0.0
        %5508 = vmatpush1.msra.mxu0 0.0
        %5509 = vmatprep.subr.mxu0 0.0
        %5510 = vmatpush1.msra.mxu0 0.0
        %5511 = vmatprep.subr.mxu0 0.0
        %5512 = vmatpush1.msra.mxu0 0.0
        %5513 = vmatprep.subr.mxu0 0.0
        %5514 = vmatpush1.msra.mxu0 0.0
        %5515 = vmatprep.subr.mxu0 0.0
        %5516 = vmatpush1.msra.mxu0 0.0
        %5517 = vmatprep.subr.mxu0 0.0
        %5518 = vmatpush1.msra.mxu0 0.0
        %5519 = vmatprep.subr.mxu0 0.0
        %5520 = vmatpush1.msra.mxu0 0.0
        %5521 = vmatprep.subr.mxu0 0.0
        %5522 = vmatpush1.msra.mxu0 0.0
        %5523 = vmatprep.subr.mxu0 0.0
        %5524 = vmatpush1.msra.mxu0 0.0
        %5525 = vmatprep.subr.mxu0 0.0
        %5526 = vmatpush1.msra.mxu0 0.0
        %5527 = vmatprep.subr.mxu0 0.0
        %5528 = vmatpush1.msra.mxu0 0.0
        %5529 = vmatprep.subr.mxu0 0.0
        %5530 = vmatpush1.msra.mxu0 0.0
        %5531 = vmatprep.mubr.f32.mxu0 0.0
        %5532 = vmatmul.mubr.f32.gmra.mrb[0].mxu0 %v5456
        %v5533 = vpop.f32.mrb[0].mxu0
        %v5534 = vadd.f32 0.0, %v5533
        %v5535 = vpop.f32.mrb[0].mxu0
        %5536 = vmatprep.mubr.f32.mxu0 0.0
        %5537 = vmatmul.mubr.f32.gmra.mrb[0].mxu0 %v5459
        %v5538 = vpop.f32.mrb[0].mxu0
        %v5539 = vadd.f32 0.0, %v5538
        %v5540 = vpop.f32.mrb[0].mxu0
        %5541 = vmatprep.mubr.f32.mxu0 0.0
        %5542 = vmatmul.mubr.f32.gmra.mrb[0].mxu0 %v5462
        %v5543 = vpop.f32.mrb[0].mxu0
        %v5544 = vadd.f32 0.0, %v5543
        %v5545 = vpop.f32.mrb[0].mxu0
        %5546 = vmatprep.mubr.f32.mxu0 0.0
        %5547 = vmatmul.mubr.f32.gmra.mrb[0].mxu0 %v5465
        %v5548 = vpop.f32.mrb[0].mxu0
        %v5549 = vadd.f32 0.0, %v5548
        %v5550 = vpop.f32.mrb[0].mxu0
        %5551 = vdwg.mxu0
        %v5552 = vadd.f32 %v5451, %v5534
        %v5553 = vadd.f32 %v5452, %v5539
        %v5554 = vadd.f32 %v5453, %v5544
        %v5555 = vadd.f32 %v5454, %v5549
        %v5556 = vld [vmem:[%s11] sm:$0x1]
        %v5558 = vlaneseq
        %v5559 = vshrl.u32 %v5558, 7
        %v5560 = vsub.s32 0, %v5559
        %v5561 = vrot.slane %v5556, %v5560
        %v5563 = vadd.f32 %v5552, %v5561
        %v5564 = vadd.f32 %v5553, %v5561
        %v5565 = vadd.f32 %v5554, %v5561
        %v5566 = vadd.f32 %v5555, %v5561
        %5567 = vst.msk [vmem:[%s544] sm:$0xff] %vm570, %v5563
        %5568 = vst.msk [vmem:[%s544 + $0x8] sm:$0xff] %vm570, %v5564
        %5569 = vst.msk [vmem:[%s544 + $0x10] sm:$0xff] %vm570, %v5565
        %5570 = vst.msk [vmem:[%s544 + $0x18] sm:$0xff] %vm570, %v5566
        %s5571 = sand.u32 %s292, 1
        %s5572 = scalar_lea.sflag [#allocation6], %s5571
        %s5573 = sand.u32 %s292, 1
        %s5574 = smul.addr %s5573, 32
        %s5575 = scalar_lea.vmem [#allocation16], %s5574
        // Predicated region
        $region93: #{tpu_custom_call.1} parent=63 // pred_check
          %p5576 = pneg %p302
        $region94: #{tpu_custom_call.1} parent=63 // pred_check_branch
          %5578 = sbr.rel (%p5576) target = $region96
        $region95: #{tpu_custom_call.1} parent=63 // pred_region
          %s5579 = smul.u32 4, %s38
          %s5581 = ssub.s32 512, 512
          %5582 = vsyncadd %s5572, %s5581
          %s5583 = smul.addr %s5579, 128
          %s5584 = scalar_lea.hbm %s12, %s5583
          %s5585 = sshll.u32 %s5575, 4
          %s5586 = int_to_ptr.vmem [resolvable:$true] %s5585
          %5591 = dma.vmem_to_hbm [thread:$0]  %s5586, 512, %s5584, %s5572, 128, 128, 8
        $region96: #{tpu_custom_call.1} parent=63 // pred_fallthru
          _
      $region64: #{tpu_custom_call.1} parent=5 // pred_fallthru
        _
      %p5592 = scmp.le.s32.totalorder 2, %s33
      // Predicated region
      $region97: #{tpu_custom_call.1} parent=5 // pred_check
        %p5593 = pneg %p5592
      $region98: #{tpu_custom_call.1} parent=5 // pred_check_branch
        %5595 = sbr.rel (%p5593) target = $region100
      $region99: #{tpu_custom_call.1} parent=5 // pred_region
        %s5596 = ssub.s32 %s33, 2
        // Predicated region
        $region101: #{tpu_custom_call.1} parent=99 // pred_check
          %p5597 = pneg %p308
        $region102: #{tpu_custom_call.1} parent=99 // pred_check_branch
          %5599 = sbr.rel (%p5597) target = $region104
        $region103: #{tpu_custom_call.1} parent=99 // pred_region
          %s5600 = sand.u32 %s293, 1
          %s5601 = scalar_lea.sflag [#allocation6], %s5600
          %s5602 = sand.u32 %s293, 1
          %s5603 = smul.addr %s5602, 32
          %s5604 = scalar_lea.vmem [#allocation16], %s5603
          %5605 = dma.done %s5601, 512
        $region104: #{tpu_custom_call.1} parent=99 // pred_fallthru
          _
      $region100: #{tpu_custom_call.1} parent=5 // pred_fallthru
        _
    $region6: #{tpu_custom_call.1} parent=1 // loop_footer
      %s37 = sadd.s32 1, %s33
    $region7: #{tpu_custom_call.1} parent=1 // loop_footer_branch
      %32 = sbr.rel target = $region3
    $region8: #{tpu_custom_call.1} parent=1 // loop_exit
      _
    %5606 = vsyncpa [#allocation5], 1
    %s5607 = scalar_lea.sflag [#allocation5], 1
    %5608 = vsyncpa %s5607, 1
    %5609 = vsyncpa [#allocation8], 1
    %s5610 = scalar_lea.sflag [#allocation8], 1
    %5611 = vsyncpa %s5610, 1
    %5612 = vsyncpa [#allocation11], 1
    %5613 = vsyncpa [#allocation14], 1
    %5614 = vsyncpa [#allocation6], 1
    %s5615 = scalar_lea.sflag [#allocation6], 1
    %5616 = vsyncpa %s5615, 1

</llo_original>
